<compile_context>
chip_gen: v7x
topology: tpu7x:2x2x1
jax: 0.10.0
libtpu: 0.0.40
codegen_flags: <defaults>
</compile_context>

<pallas_src>
import functools
import math

import jax
import jax.numpy as jnp
from jax import lax
from jax.experimental import pallas as pl
from jax.experimental.pallas import tpu as pltpu

HEADS = 8
DIM = 256
HID = DIM * 4
HEAD_DIM = DIM // HEADS
LN_EPS = 1e-5
_SQRT_2_OVER_PI = 0.7978845608028654


def _gelu_tanh(x):
    # TODO(synk): PyTorch nn.GELU() default is the exact erf form; the tanh
    # approximation is used here (Mosaic-safe transcendentals), max dev ~1e-3.
    return 0.5 * x * (1.0 + jnp.tanh(_SQRT_2_OVER_PI * (x + 0.044715 * x * x * x)))


def _layernorm(x, gamma, beta):
    mu = jnp.mean(x, axis=-1, keepdims=True)
    var = jnp.mean(jnp.square(x - mu), axis=-1, keepdims=True)
    return (x - mu) * lax.rsqrt(var + LN_EPS) * gamma + beta


def _make_kernel(seq_len):
    """Build the kernel for a (BB*seq_len, 256) token slab (BB whole sequences)."""

    def kernel(x_ref, wqkv_ref, bqkv_ref, wo_ref, bo_ref,
               g1_ref, be1_ref, wf1_ref, bf1_ref,
               wf2_ref, bf2_ref, g2_ref, be2_ref,
               o_ref, ctx_ref):
        R, D = x_ref.shape                       # R = BB * seq_len tokens
        BB = R // seq_len
        scale = 1.0 / math.sqrt(HEAD_DIM)

        x = x_ref[...]                           # (R, 256) f32 residual copy
        x_bf = x.astype(jnp.bfloat16)

        # Fused QKV projection over all BB*S tokens (fills the MXU M dim),
        # bf16 operands, f32 accumulation.
        qkv = jnp.dot(x_bf, wqkv_ref[...],
                      preferred_element_type=jnp.float32) + bqkv_ref[...]
        qkv_bf = qkv.astype(jnp.bfloat16)        # one bulk cast, reused by all heads

        # Per-sequence / per-head attention.  Each head's (S, 32) context tile
        # is scattered into the (R, 256) VMEM scratch at its lane offset so the
        # output projection below is a single K=256 matmul.
        for b in range(BB):                      # BB is capped small (static unroll)
            r0 = b * seq_len
            q_b = qkv_bf[r0:r0 + seq_len, 0:DIM]             # lane-aligned views
            k_b = qkv_bf[r0:r0 + seq_len, DIM:2 * DIM]
            v_b = qkv_bf[r0:r0 + seq_len, 2 * DIM:3 * DIM]
            for h in range(HEADS):
                lo = h * HEAD_DIM
                q_h = q_b[:, lo:lo + HEAD_DIM]
                k_h = k_b[:, lo:lo + HEAD_DIM]
                v_h = v_b[:, lo:lo + HEAD_DIM]
                s = lax.dot_general(q_h, k_h, (((1,), (1,)), ((), ())),
                                    preferred_element_type=jnp.float32) * scale
                s = s - jnp.max(s, axis=-1, keepdims=True)   # stable softmax
                p = jnp.exp(s)
                p = p * pl.reciprocal(jnp.sum(p, axis=-1, keepdims=True),
                                      approx=True)
                ctx_ref[r0:r0 + seq_len, lo:lo + HEAD_DIM] = jnp.dot(
                    p.astype(jnp.bfloat16), v_h,
                    preferred_element_type=jnp.float32)

        # Output projection: one (R,256)@(256,256) matmul + bias.
        attn = jnp.dot(ctx_ref[...].astype(jnp.bfloat16), wo_ref[...],
                       preferred_element_type=jnp.float32) + bo_ref[...]
        # TODO(synk): key_padding_mask / attention dropout not implemented
        # (mask=None path, eval-mode dropout = identity).

        # Residual + LayerNorm 1
        h1 = _layernorm(attn + x, g1_ref[...], be1_ref[...])

        # FFN: (R,256)@(256,1024) -> GELU -> (R,1024)@(1024,256)
        f = jnp.dot(h1.astype(jnp.bfloat16), wf1_ref[...],
                    preferred_element_type=jnp.float32) + bf1_ref[...]
        f = _gelu_tanh(f)
        f = jnp.dot(f.astype(jnp.bfloat16), wf2_ref[...],
                    preferred_element_type=jnp.float32) + bf2_ref[...]

        # Residual + LayerNorm 2 -> lane-dense 256-wide f32 output slab.
        o_ref[...] = _layernorm(f + h1, g2_ref[...], be2_ref[...]).astype(o_ref.dtype)

    return kernel


def _pick_batch_block(B, S):
    """Largest divisor of B (capped) so a block holds ~>=256 tokens (MXU fill)
    while keeping the static unroll and per-step VMEM bounded."""
    target_rows, max_bb, max_rows = 256, 8, 2048
    best = 1
    for bb in range(1, min(B, max_bb) + 1):
        if B % bb:
            continue
        rows = bb * S
        if bb > 1 and rows > max_rows:
            break
        if rows % 8 and rows != B * S:
            continue                              # (8,128) block-shape constraint
        best = bb
        if rows >= target_rows:
            break
    return best


def self_transformer_pallas(inputs, params, mask=None):
    """inputs: (B, S, 256) float32. Returns (B, S, 256) float32 (eval mode)."""
    if mask is not None:
        # TODO(synk): key_padding_mask not supported; only the module's default
        # mask=None path is implemented.
        raise NotImplementedError("key_padding_mask not supported")
    B, S, D = inputs.shape
    assert D == DIM, D
    # TODO(synk): no S-tiling (flash-style KV streaming) yet; the fused block
    # keeps 8 SxS score tiles + (rows,1024) FFN intermediates live, so cap S
    # (particularly relevant for v7x's 64 MiB VMEM).
    assert S <= 2048, "sequence too long for the fused single-block kernel"

    BB = _pick_batch_block(B, S)
    rows = BB * S

    # bf16 matmul weights (half the VMEM/DMA, native MXU rate); biases/LN in f32.
    weights = [
        params["wqkv"].astype(jnp.bfloat16), params["bqkv"],
        params["wo"].astype(jnp.bfloat16), params["bo"],
        params["g1"], params["be1"],
        params["wf1"].astype(jnp.bfloat16), params["bf1"],
        params["wf2"].astype(jnp.bfloat16), params["bf2"],
        params["g2"], params["be2"],
    ]

    def resident_spec(w):
        # Constant index map: DMA'd once, stays in VMEM across all grid steps.
        nd = w.ndim
        return pl.BlockSpec(w.shape, lambda *_: (0,) * nd)

    # Token-flattened view: each grid step owns BB whole sequences as a
    # lane-dense (BB*S, 256) slab -> no in-kernel 3-D reshapes.
    x2 = inputs.reshape(B * S, D)
    tok_spec = pl.BlockSpec((rows, D), lambda i: (i, 0))

    flops = (2 * B * S * D * (3 * D + D + 2 * HID)            # QKV, out-proj, FFN
             + 4 * B * HEADS * S * S * HEAD_DIM)              # scores + ctx
    transcendentals = B * HEADS * S * (S + 1) + B * S * HID   # exp, recip, tanh
    bytes_accessed = (2 * B * S * D * 4                       # activations in/out
                      + (3 * D * D + D * D + 2 * D * HID) * 2 # bf16 weights
                      + (9 * D + HID) * 4)                    # biases + LN params

    out2 = pl.pallas_call(
        _make_kernel(S),
        out_shape=jax.ShapeDtypeStruct((B * S, D), jnp.float32),
        grid=(B // BB,),
        in_specs=[tok_spec] + [resident_spec(w) for w in weights],
        out_specs=tok_spec,
        scratch_shapes=[pltpu.VMEM((rows, DIM), jnp.float32)],   # per-head ctx scatter
        compiler_params=pltpu.CompilerParams(
            dimension_semantics=("parallel",),        # shard batch blocks over v7x TCs
            vmem_limit_bytes=64 * 1024 * 1024),
        cost_estimate=pl.CostEstimate(flops=flops,
                                      transcendentals=transcendentals,
                                      bytes_accessed=bytes_accessed),
    )(x2, *weights)
    return out2.reshape(B, S, D)


def init_params(key):
    keys = jax.random.split(key, 8)

    def uni(k, shape, fan_in):
        bound = 1.0 / math.sqrt(fan_in)
        return jax.random.uniform(k, shape, jnp.float32, -bound, bound)

    return {
        "wqkv": uni(keys[0], (DIM, 3 * DIM), DIM),
        "bqkv": uni(keys[1], (1, 3 * DIM), DIM),
        "wo":   uni(keys[2], (DIM, DIM), DIM),
        "bo":   uni(keys[3], (1, DIM), DIM),
        "g1":   jnp.ones((1, DIM), jnp.float32),
        "be1":  jnp.zeros((1, DIM), jnp.float32),
        "wf1":  uni(keys[4], (DIM, HID), DIM),
        "bf1":  uni(keys[5], (1, HID), DIM),
        "wf2":  uni(keys[6], (HID, DIM), HID),
        "bf2":  uni(keys[7], (1, DIM), HID),
        "g2":   jnp.ones((1, DIM), jnp.float32),
        "be2":  jnp.zeros((1, DIM), jnp.float32),
    }


def reference(x, p):
    """Pure-JAX f32 reference of the SelfTransformer forward pass (eval mode)."""
    B, S, D = x.shape
    qkv = x @ p["wqkv"] + p["bqkv"][0]
    q, k, v = qkv[..., :D], qkv[..., D:2 * D], qkv[..., 2 * D:]

    def split(t):
        return t.reshape(B, S, HEADS, HEAD_DIM).transpose(0, 2, 1, 3)

    q, k, v = split(q), split(k), split(v)
    s = jnp.einsum("bhqd,bhkd->bhqk", q, k) / math.sqrt(HEAD_DIM)
    a = jax.nn.softmax(s, axis=-1)
    ctx = jnp.einsum("bhqk,bhkd->bhqd", a, v).transpose(0, 2, 1, 3).reshape(B, S, D)
    attn = ctx @ p["wo"] + p["bo"][0]

    h1 = _layernorm(attn + x, p["g1"], p["be1"])
    f = _gelu_tanh(h1 @ p["wf1"] + p["bf1"][0]) @ p["wf2"] + p["bf2"][0]
    return _layernorm(f + h1, p["g2"], p["be2"])


if __name__ == "__main__":
    key = jax.random.PRNGKey(0)
    k_param, k_in = jax.random.split(key)
    params = init_params(k_param)

    # Small shapes: batch=2, seq=8; dim=256 is fixed by the module.
    inputs = jax.random.normal(k_in, (2, 8, DIM), dtype=jnp.float32)

    out = self_transformer_pallas(inputs, params)
    out = jax.block_until_ready(out)

    ref = reference(inputs, params)
    assert out.shape == (2, 8, DIM), out.shape
    # bf16 matmul inputs (f32 accumulation) -> relaxed tolerance vs f32 reference.
    max_err = float(jnp.max(jnp.abs(out - ref)))
    assert jnp.allclose(out, ref, atol=3e-2, rtol=3e-2), (
        f"mismatch vs reference (max abs err {max_err})")

    print("KERNEL_OK")
</pallas_src>

<mosaic_0001>
module attributes {stable_mosaic.version = 11 : i64} {
  func.func @kernel(%arg0: i32, %arg1: memref<16x256xf32, #tpu.memory_space<vmem>>, %arg2: memref<256x768xbf16, #tpu.memory_space<vmem>>, %arg3: memref<1x768xf32, #tpu.memory_space<vmem>>, %arg4: memref<256x256xbf16, #tpu.memory_space<vmem>>, %arg5: memref<1x256xf32, #tpu.memory_space<vmem>>, %arg6: memref<1x256xf32, #tpu.memory_space<vmem>>, %arg7: memref<1x256xf32, #tpu.memory_space<vmem>>, %arg8: memref<256x1024xbf16, #tpu.memory_space<vmem>>, %arg9: memref<1x1024xf32, #tpu.memory_space<vmem>>, %arg10: memref<1024x256xbf16, #tpu.memory_space<vmem>>, %arg11: memref<1x256xf32, #tpu.memory_space<vmem>>, %arg12: memref<1x256xf32, #tpu.memory_space<vmem>>, %arg13: memref<1x256xf32, #tpu.memory_space<vmem>>, %arg14: memref<16x256xf32, #tpu.memory_space<vmem>>, %arg15: memref<16x256xf32, #tpu.memory_space<vmem>>) attributes {dimension_semantics = [#tpu.dimension_semantics<parallel>], iteration_bounds = array<i64: 1>, scalar_prefetch = 0 : i64, scratch_operands = 1 : i64, tpu.core_type = #tpu.core_type<tc>, window_params = [{transform_indices = @transform_0, window_bounds = array<i64: 16, 256>}, {pipeline_mode = #tpu.pipeline_mode<synchronous>, transform_indices = @transform_1, window_bounds = array<i64: 256, 768>}, {pipeline_mode = #tpu.pipeline_mode<synchronous>, transform_indices = @transform_2, window_bounds = array<i64: 1, 768>}, {pipeline_mode = #tpu.pipeline_mode<synchronous>, transform_indices = @transform_3, window_bounds = array<i64: 256, 256>}, {pipeline_mode = #tpu.pipeline_mode<synchronous>, transform_indices = @transform_4, window_bounds = array<i64: 1, 256>}, {pipeline_mode = #tpu.pipeline_mode<synchronous>, transform_indices = @transform_5, window_bounds = array<i64: 1, 256>}, {pipeline_mode = #tpu.pipeline_mode<synchronous>, transform_indices = @transform_6, window_bounds = array<i64: 1, 256>}, {pipeline_mode = #tpu.pipeline_mode<synchronous>, transform_indices = @transform_7, window_bounds = array<i64: 256, 1024>}, {pipeline_mode = #tpu.pipeline_mode<synchronous>, transform_indices = @transform_8, window_bounds = array<i64: 1, 1024>}, {pipeline_mode = #tpu.pipeline_mode<synchronous>, transform_indices = @transform_9, window_bounds = array<i64: 1024, 256>}, {pipeline_mode = #tpu.pipeline_mode<synchronous>, transform_indices = @transform_10, window_bounds = array<i64: 1, 256>}, {pipeline_mode = #tpu.pipeline_mode<synchronous>, transform_indices = @transform_11, window_bounds = array<i64: 1, 256>}, {pipeline_mode = #tpu.pipeline_mode<synchronous>, transform_indices = @transform_12, window_bounds = array<i64: 1, 256>}, {transform_indices = @transform_13, window_bounds = array<i64: 16, 256>}]} {
    %c0 = arith.constant 0 : index
    %c0_0 = arith.constant 0 : index
    %0 = vector.load %arg1[%c0, %c0_0] : memref<16x256xf32, #tpu.memory_space<vmem>>, vector<16x256xf32>
    %1 = arith.truncf %0 : vector<16x256xf32> to vector<16x256xbf16>
    %c0_1 = arith.constant 0 : index
    %c0_2 = arith.constant 0 : index
    %2 = vector.load %arg2[%c0_1, %c0_2] : memref<256x768xbf16, #tpu.memory_space<vmem>>, vector<256x768xbf16>
    %cst = arith.constant dense<0.000000e+00> : vector<16x768xf32>
    %3 = tpu.matmul %1, %2, %cst {dimension_numbers = #tpu.dot_dimension_numbers<[1], [0], [0], [1], [0, 0, 1, 1], [], []>} : vector<16x256xbf16>, vector<256x768xbf16>, vector<16x768xf32> -> vector<16x768xf32>
    %c0_3 = arith.constant 0 : index
    %c0_4 = arith.constant 0 : index
    %4 = vector.load %arg3[%c0_3, %c0_4] : memref<1x768xf32, #tpu.memory_space<vmem>>, vector<1x768xf32>
    %5 = vector.broadcast %4 : vector<1x768xf32> to vector<16x768xf32>
    %6 = arith.addf %3, %5 : vector<16x768xf32>
    %7 = arith.truncf %6 : vector<16x768xf32> to vector<16x768xbf16>
    %8 = vector.extract_strided_slice %7 {offsets = [0, 0], sizes = [8, 256], strides = [1, 1]} : vector<16x768xbf16> to vector<8x256xbf16>
    %9 = vector.extract_strided_slice %7 {offsets = [0, 256], sizes = [8, 256], strides = [1, 1]} : vector<16x768xbf16> to vector<8x256xbf16>
    %10 = vector.extract_strided_slice %7 {offsets = [0, 512], sizes = [8, 256], strides = [1, 1]} : vector<16x768xbf16> to vector<8x256xbf16>
    %11 = vector.extract_strided_slice %8 {offsets = [0, 0], sizes = [8, 32], strides = [1, 1]} : vector<8x256xbf16> to vector<8x32xbf16>
    %12 = vector.extract_strided_slice %9 {offsets = [0, 0], sizes = [8, 32], strides = [1, 1]} : vector<8x256xbf16> to vector<8x32xbf16>
    %13 = vector.extract_strided_slice %10 {offsets = [0, 0], sizes = [8, 32], strides = [1, 1]} : vector<8x256xbf16> to vector<8x32xbf16>
    %cst_5 = arith.constant dense<0.000000e+00> : vector<8x8xf32>
    %14 = tpu.matmul %11, %12, %cst_5 {dimension_numbers = #tpu.dot_dimension_numbers<[1], [1], [0], [0], [0, 0, 1, 0], [], []>} : vector<8x32xbf16>, vector<8x32xbf16>, vector<8x8xf32> -> vector<8x8xf32>
    %cst_6 = arith.constant 0.176776692 : f32
    %15 = vector.broadcast %cst_6 : f32 to vector<8x8xf32>
    %16 = arith.mulf %14, %15 : vector<8x8xf32>
    %cst_7 = arith.constant dense<0xFF800000> : vector<8xf32>
    %17 = vector.multi_reduction <maximumf>, %16, %cst_7 [1] : vector<8x8xf32> to vector<8xf32>
    %18 = vector.shape_cast %17 : vector<8xf32> to vector<8x1xf32>
    %19 = vector.broadcast %18 : vector<8x1xf32> to vector<8x8xf32>
    %20 = arith.subf %16, %19 : vector<8x8xf32>
    %21 = math.exp %20 : vector<8x8xf32>
    %cst_8 = arith.constant dense<0.000000e+00> : vector<8xf32>
    %22 = vector.multi_reduction <add>, %21, %cst_8 [1] : vector<8x8xf32> to vector<8xf32>
    %23 = vector.shape_cast %22 : vector<8xf32> to vector<8x1xf32>
    %24 = tpu.reciprocal %23 {approx = true} : vector<8x1xf32> -> vector<8x1xf32>
    %25 = vector.broadcast %24 : vector<8x1xf32> to vector<8x8xf32>
    %26 = arith.mulf %21, %25 : vector<8x8xf32>
    %27 = arith.truncf %26 : vector<8x8xf32> to vector<8x8xbf16>
    %cst_9 = arith.constant dense<0.000000e+00> : vector<8x32xf32>
    %28 = tpu.matmul %27, %13, %cst_9 {dimension_numbers = #tpu.dot_dimension_numbers<[1], [0], [0], [1], [0, 0, 1, 1], [], []>} : vector<8x8xbf16>, vector<8x32xbf16>, vector<8x32xf32> -> vector<8x32xf32>
    %c0_10 = arith.constant 0 : index
    %c0_11 = arith.constant 0 : index
    %29 = vector.load %arg15[%c0_10, %c0_11] : memref<16x256xf32, #tpu.memory_space<vmem>>, vector<8x32xf32>
    tpu.vector_store %arg15[%c0_10, %c0_11], %28 {strides = array<i32>} : memref<16x256xf32, #tpu.memory_space<vmem>>, vector<8x32xf32>,
    %30 = vector.extract_strided_slice %8 {offsets = [0, 32], sizes = [8, 32], strides = [1, 1]} : vector<8x256xbf16> to vector<8x32xbf16>
    %31 = vector.extract_strided_slice %9 {offsets = [0, 32], sizes = [8, 32], strides = [1, 1]} : vector<8x256xbf16> to vector<8x32xbf16>
    %32 = vector.extract_strided_slice %10 {offsets = [0, 32], sizes = [8, 32], strides = [1, 1]} : vector<8x256xbf16> to vector<8x32xbf16>
    %cst_12 = arith.constant dense<0.000000e+00> : vector<8x8xf32>
    %33 = tpu.matmul %30, %31, %cst_12 {dimension_numbers = #tpu.dot_dimension_numbers<[1], [1], [0], [0], [0, 0, 1, 0], [], []>} : vector<8x32xbf16>, vector<8x32xbf16>, vector<8x8xf32> -> vector<8x8xf32>
    %cst_13 = arith.constant 0.176776692 : f32
    %34 = vector.broadcast %cst_13 : f32 to vector<8x8xf32>
    %35 = arith.mulf %33, %34 : vector<8x8xf32>
    %cst_14 = arith.constant dense<0xFF800000> : vector<8xf32>
    %36 = vector.multi_reduction <maximumf>, %35, %cst_14 [1] : vector<8x8xf32> to vector<8xf32>
    %37 = vector.shape_cast %36 : vector<8xf32> to vector<8x1xf32>
    %38 = vector.broadcast %37 : vector<8x1xf32> to vector<8x8xf32>
    %39 = arith.subf %35, %38 : vector<8x8xf32>
    %40 = math.exp %39 : vector<8x8xf32>
    %cst_15 = arith.constant dense<0.000000e+00> : vector<8xf32>
    %41 = vector.multi_reduction <add>, %40, %cst_15 [1] : vector<8x8xf32> to vector<8xf32>
    %42 = vector.shape_cast %41 : vector<8xf32> to vector<8x1xf32>
    %43 = tpu.reciprocal %42 {approx = true} : vector<8x1xf32> -> vector<8x1xf32>
    %44 = vector.broadcast %43 : vector<8x1xf32> to vector<8x8xf32>
    %45 = arith.mulf %40, %44 : vector<8x8xf32>
    %46 = arith.truncf %45 : vector<8x8xf32> to vector<8x8xbf16>
    %cst_16 = arith.constant dense<0.000000e+00> : vector<8x32xf32>
    %47 = tpu.matmul %46, %32, %cst_16 {dimension_numbers = #tpu.dot_dimension_numbers<[1], [0], [0], [1], [0, 0, 1, 1], [], []>} : vector<8x8xbf16>, vector<8x32xbf16>, vector<8x32xf32> -> vector<8x32xf32>
    %c0_17 = arith.constant 0 : index
    %c32 = arith.constant 32 : index
    %48 = vector.load %arg15[%c0_17, %c32] : memref<16x256xf32, #tpu.memory_space<vmem>>, vector<8x32xf32>
    tpu.vector_store %arg15[%c0_17, %c32], %47 {strides = array<i32>} : memref<16x256xf32, #tpu.memory_space<vmem>>, vector<8x32xf32>,
    %49 = vector.extract_strided_slice %8 {offsets = [0, 64], sizes = [8, 32], strides = [1, 1]} : vector<8x256xbf16> to vector<8x32xbf16>
    %50 = vector.extract_strided_slice %9 {offsets = [0, 64], sizes = [8, 32], strides = [1, 1]} : vector<8x256xbf16> to vector<8x32xbf16>
    %51 = vector.extract_strided_slice %10 {offsets = [0, 64], sizes = [8, 32], strides = [1, 1]} : vector<8x256xbf16> to vector<8x32xbf16>
    %cst_18 = arith.constant dense<0.000000e+00> : vector<8x8xf32>
    %52 = tpu.matmul %49, %50, %cst_18 {dimension_numbers = #tpu.dot_dimension_numbers<[1], [1], [0], [0], [0, 0, 1, 0], [], []>} : vector<8x32xbf16>, vector<8x32xbf16>, vector<8x8xf32> -> vector<8x8xf32>
    %cst_19 = arith.constant 0.176776692 : f32
    %53 = vector.broadcast %cst_19 : f32 to vector<8x8xf32>
    %54 = arith.mulf %52, %53 : vector<8x8xf32>
    %cst_20 = arith.constant dense<0xFF800000> : vector<8xf32>
    %55 = vector.multi_reduction <maximumf>, %54, %cst_20 [1] : vector<8x8xf32> to vector<8xf32>
    %56 = vector.shape_cast %55 : vector<8xf32> to vector<8x1xf32>
    %57 = vector.broadcast %56 : vector<8x1xf32> to vector<8x8xf32>
    %58 = arith.subf %54, %57 : vector<8x8xf32>
    %59 = math.exp %58 : vector<8x8xf32>
    %cst_21 = arith.constant dense<0.000000e+00> : vector<8xf32>
    %60 = vector.multi_reduction <add>, %59, %cst_21 [1] : vector<8x8xf32> to vector<8xf32>
    %61 = vector.shape_cast %60 : vector<8xf32> to vector<8x1xf32>
    %62 = tpu.reciprocal %61 {approx = true} : vector<8x1xf32> -> vector<8x1xf32>
    %63 = vector.broadcast %62 : vector<8x1xf32> to vector<8x8xf32>
    %64 = arith.mulf %59, %63 : vector<8x8xf32>
    %65 = arith.truncf %64 : vector<8x8xf32> to vector<8x8xbf16>
    %cst_22 = arith.constant dense<0.000000e+00> : vector<8x32xf32>
    %66 = tpu.matmul %65, %51, %cst_22 {dimension_numbers = #tpu.dot_dimension_numbers<[1], [0], [0], [1], [0, 0, 1, 1], [], []>} : vector<8x8xbf16>, vector<8x32xbf16>, vector<8x32xf32> -> vector<8x32xf32>
    %c0_23 = arith.constant 0 : index
    %c64 = arith.constant 64 : index
    %67 = vector.load %arg15[%c0_23, %c64] : memref<16x256xf32, #tpu.memory_space<vmem>>, vector<8x32xf32>
    tpu.vector_store %arg15[%c0_23, %c64], %66 {strides = array<i32>} : memref<16x256xf32, #tpu.memory_space<vmem>>, vector<8x32xf32>,
    %68 = vector.extract_strided_slice %8 {offsets = [0, 96], sizes = [8, 32], strides = [1, 1]} : vector<8x256xbf16> to vector<8x32xbf16>
    %69 = vector.extract_strided_slice %9 {offsets = [0, 96], sizes = [8, 32], strides = [1, 1]} : vector<8x256xbf16> to vector<8x32xbf16>
    %70 = vector.extract_strided_slice %10 {offsets = [0, 96], sizes = [8, 32], strides = [1, 1]} : vector<8x256xbf16> to vector<8x32xbf16>
    %cst_24 = arith.constant dense<0.000000e+00> : vector<8x8xf32>
    %71 = tpu.matmul %68, %69, %cst_24 {dimension_numbers = #tpu.dot_dimension_numbers<[1], [1], [0], [0], [0, 0, 1, 0], [], []>} : vector<8x32xbf16>, vector<8x32xbf16>, vector<8x8xf32> -> vector<8x8xf32>
    %cst_25 = arith.constant 0.176776692 : f32
    %72 = vector.broadcast %cst_25 : f32 to vector<8x8xf32>
    %73 = arith.mulf %71, %72 : vector<8x8xf32>
    %cst_26 = arith.constant dense<0xFF800000> : vector<8xf32>
    %74 = vector.multi_reduction <maximumf>, %73, %cst_26 [1] : vector<8x8xf32> to vector<8xf32>
    %75 = vector.shape_cast %74 : vector<8xf32> to vector<8x1xf32>
    %76 = vector.broadcast %75 : vector<8x1xf32> to vector<8x8xf32>
    %77 = arith.subf %73, %76 : vector<8x8xf32>
    %78 = math.exp %77 : vector<8x8xf32>
    %cst_27 = arith.constant dense<0.000000e+00> : vector<8xf32>
    %79 = vector.multi_reduction <add>, %78, %cst_27 [1] : vector<8x8xf32> to vector<8xf32>
    %80 = vector.shape_cast %79 : vector<8xf32> to vector<8x1xf32>
    %81 = tpu.reciprocal %80 {approx = true} : vector<8x1xf32> -> vector<8x1xf32>
    %82 = vector.broadcast %81 : vector<8x1xf32> to vector<8x8xf32>
    %83 = arith.mulf %78, %82 : vector<8x8xf32>
    %84 = arith.truncf %83 : vector<8x8xf32> to vector<8x8xbf16>
    %cst_28 = arith.constant dense<0.000000e+00> : vector<8x32xf32>
    %85 = tpu.matmul %84, %70, %cst_28 {dimension_numbers = #tpu.dot_dimension_numbers<[1], [0], [0], [1], [0, 0, 1, 1], [], []>} : vector<8x8xbf16>, vector<8x32xbf16>, vector<8x32xf32> -> vector<8x32xf32>
    %c0_29 = arith.constant 0 : index
    %c96 = arith.constant 96 : index
    %86 = vector.load %arg15[%c0_29, %c96] : memref<16x256xf32, #tpu.memory_space<vmem>>, vector<8x32xf32>
    tpu.vector_store %arg15[%c0_29, %c96], %85 {strides = array<i32>} : memref<16x256xf32, #tpu.memory_space<vmem>>, vector<8x32xf32>,
    %87 = vector.extract_strided_slice %8 {offsets = [0, 128], sizes = [8, 32], strides = [1, 1]} : vector<8x256xbf16> to vector<8x32xbf16>
    %88 = vector.extract_strided_slice %9 {offsets = [0, 128], sizes = [8, 32], strides = [1, 1]} : vector<8x256xbf16> to vector<8x32xbf16>
    %89 = vector.extract_strided_slice %10 {offsets = [0, 128], sizes = [8, 32], strides = [1, 1]} : vector<8x256xbf16> to vector<8x32xbf16>
    %cst_30 = arith.constant dense<0.000000e+00> : vector<8x8xf32>
    %90 = tpu.matmul %87, %88, %cst_30 {dimension_numbers = #tpu.dot_dimension_numbers<[1], [1], [0], [0], [0, 0, 1, 0], [], []>} : vector<8x32xbf16>, vector<8x32xbf16>, vector<8x8xf32> -> vector<8x8xf32>
    %cst_31 = arith.constant 0.176776692 : f32
    %91 = vector.broadcast %cst_31 : f32 to vector<8x8xf32>
    %92 = arith.mulf %90, %91 : vector<8x8xf32>
    %cst_32 = arith.constant dense<0xFF800000> : vector<8xf32>
    %93 = vector.multi_reduction <maximumf>, %92, %cst_32 [1] : vector<8x8xf32> to vector<8xf32>
    %94 = vector.shape_cast %93 : vector<8xf32> to vector<8x1xf32>
    %95 = vector.broadcast %94 : vector<8x1xf32> to vector<8x8xf32>
    %96 = arith.subf %92, %95 : vector<8x8xf32>
    %97 = math.exp %96 : vector<8x8xf32>
    %cst_33 = arith.constant dense<0.000000e+00> : vector<8xf32>
    %98 = vector.multi_reduction <add>, %97, %cst_33 [1] : vector<8x8xf32> to vector<8xf32>
    %99 = vector.shape_cast %98 : vector<8xf32> to vector<8x1xf32>
    %100 = tpu.reciprocal %99 {approx = true} : vector<8x1xf32> -> vector<8x1xf32>
    %101 = vector.broadcast %100 : vector<8x1xf32> to vector<8x8xf32>
    %102 = arith.mulf %97, %101 : vector<8x8xf32>
    %103 = arith.truncf %102 : vector<8x8xf32> to vector<8x8xbf16>
    %cst_34 = arith.constant dense<0.000000e+00> : vector<8x32xf32>
    %104 = tpu.matmul %103, %89, %cst_34 {dimension_numbers = #tpu.dot_dimension_numbers<[1], [0], [0], [1], [0, 0, 1, 1], [], []>} : vector<8x8xbf16>, vector<8x32xbf16>, vector<8x32xf32> -> vector<8x32xf32>
    %c0_35 = arith.constant 0 : index
    %c128 = arith.constant 128 : index
    %105 = vector.load %arg15[%c0_35, %c128] : memref<16x256xf32, #tpu.memory_space<vmem>>, vector<8x32xf32>
    tpu.vector_store %arg15[%c0_35, %c128], %104 {strides = array<i32>} : memref<16x256xf32, #tpu.memory_space<vmem>>, vector<8x32xf32>,
    %106 = vector.extract_strided_slice %8 {offsets = [0, 160], sizes = [8, 32], strides = [1, 1]} : vector<8x256xbf16> to vector<8x32xbf16>
    %107 = vector.extract_strided_slice %9 {offsets = [0, 160], sizes = [8, 32], strides = [1, 1]} : vector<8x256xbf16> to vector<8x32xbf16>
    %108 = vector.extract_strided_slice %10 {offsets = [0, 160], sizes = [8, 32], strides = [1, 1]} : vector<8x256xbf16> to vector<8x32xbf16>
    %cst_36 = arith.constant dense<0.000000e+00> : vector<8x8xf32>
    %109 = tpu.matmul %106, %107, %cst_36 {dimension_numbers = #tpu.dot_dimension_numbers<[1], [1], [0], [0], [0, 0, 1, 0], [], []>} : vector<8x32xbf16>, vector<8x32xbf16>, vector<8x8xf32> -> vector<8x8xf32>
    %cst_37 = arith.constant 0.176776692 : f32
    %110 = vector.broadcast %cst_37 : f32 to vector<8x8xf32>
    %111 = arith.mulf %109, %110 : vector<8x8xf32>
    %cst_38 = arith.constant dense<0xFF800000> : vector<8xf32>
    %112 = vector.multi_reduction <maximumf>, %111, %cst_38 [1] : vector<8x8xf32> to vector<8xf32>
    %113 = vector.shape_cast %112 : vector<8xf32> to vector<8x1xf32>
    %114 = vector.broadcast %113 : vector<8x1xf32> to vector<8x8xf32>
    %115 = arith.subf %111, %114 : vector<8x8xf32>
    %116 = math.exp %115 : vector<8x8xf32>
    %cst_39 = arith.constant dense<0.000000e+00> : vector<8xf32>
    %117 = vector.multi_reduction <add>, %116, %cst_39 [1] : vector<8x8xf32> to vector<8xf32>
    %118 = vector.shape_cast %117 : vector<8xf32> to vector<8x1xf32>
    %119 = tpu.reciprocal %118 {approx = true} : vector<8x1xf32> -> vector<8x1xf32>
    %120 = vector.broadcast %119 : vector<8x1xf32> to vector<8x8xf32>
    %121 = arith.mulf %116, %120 : vector<8x8xf32>
    %122 = arith.truncf %121 : vector<8x8xf32> to vector<8x8xbf16>
    %cst_40 = arith.constant dense<0.000000e+00> : vector<8x32xf32>
    %123 = tpu.matmul %122, %108, %cst_40 {dimension_numbers = #tpu.dot_dimension_numbers<[1], [0], [0], [1], [0, 0, 1, 1], [], []>} : vector<8x8xbf16>, vector<8x32xbf16>, vector<8x32xf32> -> vector<8x32xf32>
    %c0_41 = arith.constant 0 : index
    %c160 = arith.constant 160 : index
    %124 = vector.load %arg15[%c0_41, %c160] : memref<16x256xf32, #tpu.memory_space<vmem>>, vector<8x32xf32>
    tpu.vector_store %arg15[%c0_41, %c160], %123 {strides = array<i32>} : memref<16x256xf32, #tpu.memory_space<vmem>>, vector<8x32xf32>,
    %125 = vector.extract_strided_slice %8 {offsets = [0, 192], sizes = [8, 32], strides = [1, 1]} : vector<8x256xbf16> to vector<8x32xbf16>
    %126 = vector.extract_strided_slice %9 {offsets = [0, 192], sizes = [8, 32], strides = [1, 1]} : vector<8x256xbf16> to vector<8x32xbf16>
    %127 = vector.extract_strided_slice %10 {offsets = [0, 192], sizes = [8, 32], strides = [1, 1]} : vector<8x256xbf16> to vector<8x32xbf16>
    %cst_42 = arith.constant dense<0.000000e+00> : vector<8x8xf32>
    %128 = tpu.matmul %125, %126, %cst_42 {dimension_numbers = #tpu.dot_dimension_numbers<[1], [1], [0], [0], [0, 0, 1, 0], [], []>} : vector<8x32xbf16>, vector<8x32xbf16>, vector<8x8xf32> -> vector<8x8xf32>
    %cst_43 = arith.constant 0.176776692 : f32
    %129 = vector.broadcast %cst_43 : f32 to vector<8x8xf32>
    %130 = arith.mulf %128, %129 : vector<8x8xf32>
    %cst_44 = arith.constant dense<0xFF800000> : vector<8xf32>
    %131 = vector.multi_reduction <maximumf>, %130, %cst_44 [1] : vector<8x8xf32> to vector<8xf32>
    %132 = vector.shape_cast %131 : vector<8xf32> to vector<8x1xf32>
    %133 = vector.broadcast %132 : vector<8x1xf32> to vector<8x8xf32>
    %134 = arith.subf %130, %133 : vector<8x8xf32>
    %135 = math.exp %134 : vector<8x8xf32>
    %cst_45 = arith.constant dense<0.000000e+00> : vector<8xf32>
    %136 = vector.multi_reduction <add>, %135, %cst_45 [1] : vector<8x8xf32> to vector<8xf32>
    %137 = vector.shape_cast %136 : vector<8xf32> to vector<8x1xf32>
    %138 = tpu.reciprocal %137 {approx = true} : vector<8x1xf32> -> vector<8x1xf32>
    %139 = vector.broadcast %138 : vector<8x1xf32> to vector<8x8xf32>
    %140 = arith.mulf %135, %139 : vector<8x8xf32>
    %141 = arith.truncf %140 : vector<8x8xf32> to vector<8x8xbf16>
    %cst_46 = arith.constant dense<0.000000e+00> : vector<8x32xf32>
    %142 = tpu.matmul %141, %127, %cst_46 {dimension_numbers = #tpu.dot_dimension_numbers<[1], [0], [0], [1], [0, 0, 1, 1], [], []>} : vector<8x8xbf16>, vector<8x32xbf16>, vector<8x32xf32> -> vector<8x32xf32>
    %c0_47 = arith.constant 0 : index
    %c192 = arith.constant 192 : index
    %143 = vector.load %arg15[%c0_47, %c192] : memref<16x256xf32, #tpu.memory_space<vmem>>, vector<8x32xf32>
    tpu.vector_store %arg15[%c0_47, %c192], %142 {strides = array<i32>} : memref<16x256xf32, #tpu.memory_space<vmem>>, vector<8x32xf32>,
    %144 = vector.extract_strided_slice %8 {offsets = [0, 224], sizes = [8, 32], strides = [1, 1]} : vector<8x256xbf16> to vector<8x32xbf16>
    %145 = vector.extract_strided_slice %9 {offsets = [0, 224], sizes = [8, 32], strides = [1, 1]} : vector<8x256xbf16> to vector<8x32xbf16>
    %146 = vector.extract_strided_slice %10 {offsets = [0, 224], sizes = [8, 32], strides = [1, 1]} : vector<8x256xbf16> to vector<8x32xbf16>
    %cst_48 = arith.constant dense<0.000000e+00> : vector<8x8xf32>
    %147 = tpu.matmul %144, %145, %cst_48 {dimension_numbers = #tpu.dot_dimension_numbers<[1], [1], [0], [0], [0, 0, 1, 0], [], []>} : vector<8x32xbf16>, vector<8x32xbf16>, vector<8x8xf32> -> vector<8x8xf32>
    %cst_49 = arith.constant 0.176776692 : f32
    %148 = vector.broadcast %cst_49 : f32 to vector<8x8xf32>
    %149 = arith.mulf %147, %148 : vector<8x8xf32>
    %cst_50 = arith.constant dense<0xFF800000> : vector<8xf32>
    %150 = vector.multi_reduction <maximumf>, %149, %cst_50 [1] : vector<8x8xf32> to vector<8xf32>
    %151 = vector.shape_cast %150 : vector<8xf32> to vector<8x1xf32>
    %152 = vector.broadcast %151 : vector<8x1xf32> to vector<8x8xf32>
    %153 = arith.subf %149, %152 : vector<8x8xf32>
    %154 = math.exp %153 : vector<8x8xf32>
    %cst_51 = arith.constant dense<0.000000e+00> : vector<8xf32>
    %155 = vector.multi_reduction <add>, %154, %cst_51 [1] : vector<8x8xf32> to vector<8xf32>
    %156 = vector.shape_cast %155 : vector<8xf32> to vector<8x1xf32>
    %157 = tpu.reciprocal %156 {approx = true} : vector<8x1xf32> -> vector<8x1xf32>
    %158 = vector.broadcast %157 : vector<8x1xf32> to vector<8x8xf32>
    %159 = arith.mulf %154, %158 : vector<8x8xf32>
    %160 = arith.truncf %159 : vector<8x8xf32> to vector<8x8xbf16>
    %cst_52 = arith.constant dense<0.000000e+00> : vector<8x32xf32>
    %161 = tpu.matmul %160, %146, %cst_52 {dimension_numbers = #tpu.dot_dimension_numbers<[1], [0], [0], [1], [0, 0, 1, 1], [], []>} : vector<8x8xbf16>, vector<8x32xbf16>, vector<8x32xf32> -> vector<8x32xf32>
    %c0_53 = arith.constant 0 : index
    %c224 = arith.constant 224 : index
    %162 = vector.load %arg15[%c0_53, %c224] : memref<16x256xf32, #tpu.memory_space<vmem>>, vector<8x32xf32>
    tpu.vector_store %arg15[%c0_53, %c224], %161 {strides = array<i32>} : memref<16x256xf32, #tpu.memory_space<vmem>>, vector<8x32xf32>,
    %163 = vector.extract_strided_slice %7 {offsets = [8, 0], sizes = [8, 256], strides = [1, 1]} : vector<16x768xbf16> to vector<8x256xbf16>
    %164 = vector.extract_strided_slice %7 {offsets = [8, 256], sizes = [8, 256], strides = [1, 1]} : vector<16x768xbf16> to vector<8x256xbf16>
    %165 = vector.extract_strided_slice %7 {offsets = [8, 512], sizes = [8, 256], strides = [1, 1]} : vector<16x768xbf16> to vector<8x256xbf16>
    %166 = vector.extract_strided_slice %163 {offsets = [0, 0], sizes = [8, 32], strides = [1, 1]} : vector<8x256xbf16> to vector<8x32xbf16>
    %167 = vector.extract_strided_slice %164 {offsets = [0, 0], sizes = [8, 32], strides = [1, 1]} : vector<8x256xbf16> to vector<8x32xbf16>
    %168 = vector.extract_strided_slice %165 {offsets = [0, 0], sizes = [8, 32], strides = [1, 1]} : vector<8x256xbf16> to vector<8x32xbf16>
    %cst_54 = arith.constant dense<0.000000e+00> : vector<8x8xf32>
    %169 = tpu.matmul %166, %167, %cst_54 {dimension_numbers = #tpu.dot_dimension_numbers<[1], [1], [0], [0], [0, 0, 1, 0], [], []>} : vector<8x32xbf16>, vector<8x32xbf16>, vector<8x8xf32> -> vector<8x8xf32>
    %cst_55 = arith.constant 0.176776692 : f32
    %170 = vector.broadcast %cst_55 : f32 to vector<8x8xf32>
    %171 = arith.mulf %169, %170 : vector<8x8xf32>
    %cst_56 = arith.constant dense<0xFF800000> : vector<8xf32>
    %172 = vector.multi_reduction <maximumf>, %171, %cst_56 [1] : vector<8x8xf32> to vector<8xf32>
    %173 = vector.shape_cast %172 : vector<8xf32> to vector<8x1xf32>
    %174 = vector.broadcast %173 : vector<8x1xf32> to vector<8x8xf32>
    %175 = arith.subf %171, %174 : vector<8x8xf32>
    %176 = math.exp %175 : vector<8x8xf32>
    %cst_57 = arith.constant dense<0.000000e+00> : vector<8xf32>
    %177 = vector.multi_reduction <add>, %176, %cst_57 [1] : vector<8x8xf32> to vector<8xf32>
    %178 = vector.shape_cast %177 : vector<8xf32> to vector<8x1xf32>
    %179 = tpu.reciprocal %178 {approx = true} : vector<8x1xf32> -> vector<8x1xf32>
    %180 = vector.broadcast %179 : vector<8x1xf32> to vector<8x8xf32>
    %181 = arith.mulf %176, %180 : vector<8x8xf32>
    %182 = arith.truncf %181 : vector<8x8xf32> to vector<8x8xbf16>
    %cst_58 = arith.constant dense<0.000000e+00> : vector<8x32xf32>
    %183 = tpu.matmul %182, %168, %cst_58 {dimension_numbers = #tpu.dot_dimension_numbers<[1], [0], [0], [1], [0, 0, 1, 1], [], []>} : vector<8x8xbf16>, vector<8x32xbf16>, vector<8x32xf32> -> vector<8x32xf32>
    %c8 = arith.constant 8 : index
    %c0_59 = arith.constant 0 : index
    %184 = vector.load %arg15[%c8, %c0_59] : memref<16x256xf32, #tpu.memory_space<vmem>>, vector<8x32xf32>
    tpu.vector_store %arg15[%c8, %c0_59], %183 {strides = array<i32>} : memref<16x256xf32, #tpu.memory_space<vmem>>, vector<8x32xf32>,
    %185 = vector.extract_strided_slice %163 {offsets = [0, 32], sizes = [8, 32], strides = [1, 1]} : vector<8x256xbf16> to vector<8x32xbf16>
    %186 = vector.extract_strided_slice %164 {offsets = [0, 32], sizes = [8, 32], strides = [1, 1]} : vector<8x256xbf16> to vector<8x32xbf16>
    %187 = vector.extract_strided_slice %165 {offsets = [0, 32], sizes = [8, 32], strides = [1, 1]} : vector<8x256xbf16> to vector<8x32xbf16>
    %cst_60 = arith.constant dense<0.000000e+00> : vector<8x8xf32>
    %188 = tpu.matmul %185, %186, %cst_60 {dimension_numbers = #tpu.dot_dimension_numbers<[1], [1], [0], [0], [0, 0, 1, 0], [], []>} : vector<8x32xbf16>, vector<8x32xbf16>, vector<8x8xf32> -> vector<8x8xf32>
    %cst_61 = arith.constant 0.176776692 : f32
    %189 = vector.broadcast %cst_61 : f32 to vector<8x8xf32>
    %190 = arith.mulf %188, %189 : vector<8x8xf32>
    %cst_62 = arith.constant dense<0xFF800000> : vector<8xf32>
    %191 = vector.multi_reduction <maximumf>, %190, %cst_62 [1] : vector<8x8xf32> to vector<8xf32>
    %192 = vector.shape_cast %191 : vector<8xf32> to vector<8x1xf32>
    %193 = vector.broadcast %192 : vector<8x1xf32> to vector<8x8xf32>
    %194 = arith.subf %190, %193 : vector<8x8xf32>
    %195 = math.exp %194 : vector<8x8xf32>
    %cst_63 = arith.constant dense<0.000000e+00> : vector<8xf32>
    %196 = vector.multi_reduction <add>, %195, %cst_63 [1] : vector<8x8xf32> to vector<8xf32>
    %197 = vector.shape_cast %196 : vector<8xf32> to vector<8x1xf32>
    %198 = tpu.reciprocal %197 {approx = true} : vector<8x1xf32> -> vector<8x1xf32>
    %199 = vector.broadcast %198 : vector<8x1xf32> to vector<8x8xf32>
    %200 = arith.mulf %195, %199 : vector<8x8xf32>
    %201 = arith.truncf %200 : vector<8x8xf32> to vector<8x8xbf16>
    %cst_64 = arith.constant dense<0.000000e+00> : vector<8x32xf32>
    %202 = tpu.matmul %201, %187, %cst_64 {dimension_numbers = #tpu.dot_dimension_numbers<[1], [0], [0], [1], [0, 0, 1, 1], [], []>} : vector<8x8xbf16>, vector<8x32xbf16>, vector<8x32xf32> -> vector<8x32xf32>
    %c8_65 = arith.constant 8 : index
    %c32_66 = arith.constant 32 : index
    %203 = vector.load %arg15[%c8_65, %c32_66] : memref<16x256xf32, #tpu.memory_space<vmem>>, vector<8x32xf32>
    tpu.vector_store %arg15[%c8_65, %c32_66], %202 {strides = array<i32>} : memref<16x256xf32, #tpu.memory_space<vmem>>, vector<8x32xf32>,
    %204 = vector.extract_strided_slice %163 {offsets = [0, 64], sizes = [8, 32], strides = [1, 1]} : vector<8x256xbf16> to vector<8x32xbf16>
    %205 = vector.extract_strided_slice %164 {offsets = [0, 64], sizes = [8, 32], strides = [1, 1]} : vector<8x256xbf16> to vector<8x32xbf16>
    %206 = vector.extract_strided_slice %165 {offsets = [0, 64], sizes = [8, 32], strides = [1, 1]} : vector<8x256xbf16> to vector<8x32xbf16>
    %cst_67 = arith.constant dense<0.000000e+00> : vector<8x8xf32>
    %207 = tpu.matmul %204, %205, %cst_67 {dimension_numbers = #tpu.dot_dimension_numbers<[1], [1], [0], [0], [0, 0, 1, 0], [], []>} : vector<8x32xbf16>, vector<8x32xbf16>, vector<8x8xf32> -> vector<8x8xf32>
    %cst_68 = arith.constant 0.176776692 : f32
    %208 = vector.broadcast %cst_68 : f32 to vector<8x8xf32>
    %209 = arith.mulf %207, %208 : vector<8x8xf32>
    %cst_69 = arith.constant dense<0xFF800000> : vector<8xf32>
    %210 = vector.multi_reduction <maximumf>, %209, %cst_69 [1] : vector<8x8xf32> to vector<8xf32>
    %211 = vector.shape_cast %210 : vector<8xf32> to vector<8x1xf32>
    %212 = vector.broadcast %211 : vector<8x1xf32> to vector<8x8xf32>
    %213 = arith.subf %209, %212 : vector<8x8xf32>
    %214 = math.exp %213 : vector<8x8xf32>
    %cst_70 = arith.constant dense<0.000000e+00> : vector<8xf32>
    %215 = vector.multi_reduction <add>, %214, %cst_70 [1] : vector<8x8xf32> to vector<8xf32>
    %216 = vector.shape_cast %215 : vector<8xf32> to vector<8x1xf32>
    %217 = tpu.reciprocal %216 {approx = true} : vector<8x1xf32> -> vector<8x1xf32>
    %218 = vector.broadcast %217 : vector<8x1xf32> to vector<8x8xf32>
    %219 = arith.mulf %214, %218 : vector<8x8xf32>
    %220 = arith.truncf %219 : vector<8x8xf32> to vector<8x8xbf16>
    %cst_71 = arith.constant dense<0.000000e+00> : vector<8x32xf32>
    %221 = tpu.matmul %220, %206, %cst_71 {dimension_numbers = #tpu.dot_dimension_numbers<[1], [0], [0], [1], [0, 0, 1, 1], [], []>} : vector<8x8xbf16>, vector<8x32xbf16>, vector<8x32xf32> -> vector<8x32xf32>
    %c8_72 = arith.constant 8 : index
    %c64_73 = arith.constant 64 : index
    %222 = vector.load %arg15[%c8_72, %c64_73] : memref<16x256xf32, #tpu.memory_space<vmem>>, vector<8x32xf32>
    tpu.vector_store %arg15[%c8_72, %c64_73], %221 {strides = array<i32>} : memref<16x256xf32, #tpu.memory_space<vmem>>, vector<8x32xf32>,
    %223 = vector.extract_strided_slice %163 {offsets = [0, 96], sizes = [8, 32], strides = [1, 1]} : vector<8x256xbf16> to vector<8x32xbf16>
    %224 = vector.extract_strided_slice %164 {offsets = [0, 96], sizes = [8, 32], strides = [1, 1]} : vector<8x256xbf16> to vector<8x32xbf16>
    %225 = vector.extract_strided_slice %165 {offsets = [0, 96], sizes = [8, 32], strides = [1, 1]} : vector<8x256xbf16> to vector<8x32xbf16>
    %cst_74 = arith.constant dense<0.000000e+00> : vector<8x8xf32>
    %226 = tpu.matmul %223, %224, %cst_74 {dimension_numbers = #tpu.dot_dimension_numbers<[1], [1], [0], [0], [0, 0, 1, 0], [], []>} : vector<8x32xbf16>, vector<8x32xbf16>, vector<8x8xf32> -> vector<8x8xf32>
    %cst_75 = arith.constant 0.176776692 : f32
    %227 = vector.broadcast %cst_75 : f32 to vector<8x8xf32>
    %228 = arith.mulf %226, %227 : vector<8x8xf32>
    %cst_76 = arith.constant dense<0xFF800000> : vector<8xf32>
    %229 = vector.multi_reduction <maximumf>, %228, %cst_76 [1] : vector<8x8xf32> to vector<8xf32>
    %230 = vector.shape_cast %229 : vector<8xf32> to vector<8x1xf32>
    %231 = vector.broadcast %230 : vector<8x1xf32> to vector<8x8xf32>
    %232 = arith.subf %228, %231 : vector<8x8xf32>
    %233 = math.exp %232 : vector<8x8xf32>
    %cst_77 = arith.constant dense<0.000000e+00> : vector<8xf32>
    %234 = vector.multi_reduction <add>, %233, %cst_77 [1] : vector<8x8xf32> to vector<8xf32>
    %235 = vector.shape_cast %234 : vector<8xf32> to vector<8x1xf32>
    %236 = tpu.reciprocal %235 {approx = true} : vector<8x1xf32> -> vector<8x1xf32>
    %237 = vector.broadcast %236 : vector<8x1xf32> to vector<8x8xf32>
    %238 = arith.mulf %233, %237 : vector<8x8xf32>
    %239 = arith.truncf %238 : vector<8x8xf32> to vector<8x8xbf16>
    %cst_78 = arith.constant dense<0.000000e+00> : vector<8x32xf32>
    %240 = tpu.matmul %239, %225, %cst_78 {dimension_numbers = #tpu.dot_dimension_numbers<[1], [0], [0], [1], [0, 0, 1, 1], [], []>} : vector<8x8xbf16>, vector<8x32xbf16>, vector<8x32xf32> -> vector<8x32xf32>
    %c8_79 = arith.constant 8 : index
    %c96_80 = arith.constant 96 : index
    %241 = vector.load %arg15[%c8_79, %c96_80] : memref<16x256xf32, #tpu.memory_space<vmem>>, vector<8x32xf32>
    tpu.vector_store %arg15[%c8_79, %c96_80], %240 {strides = array<i32>} : memref<16x256xf32, #tpu.memory_space<vmem>>, vector<8x32xf32>,
    %242 = vector.extract_strided_slice %163 {offsets = [0, 128], sizes = [8, 32], strides = [1, 1]} : vector<8x256xbf16> to vector<8x32xbf16>
    %243 = vector.extract_strided_slice %164 {offsets = [0, 128], sizes = [8, 32], strides = [1, 1]} : vector<8x256xbf16> to vector<8x32xbf16>
    %244 = vector.extract_strided_slice %165 {offsets = [0, 128], sizes = [8, 32], strides = [1, 1]} : vector<8x256xbf16> to vector<8x32xbf16>
    %cst_81 = arith.constant dense<0.000000e+00> : vector<8x8xf32>
    %245 = tpu.matmul %242, %243, %cst_81 {dimension_numbers = #tpu.dot_dimension_numbers<[1], [1], [0], [0], [0, 0, 1, 0], [], []>} : vector<8x32xbf16>, vector<8x32xbf16>, vector<8x8xf32> -> vector<8x8xf32>
    %cst_82 = arith.constant 0.176776692 : f32
    %246 = vector.broadcast %cst_82 : f32 to vector<8x8xf32>
    %247 = arith.mulf %245, %246 : vector<8x8xf32>
    %cst_83 = arith.constant dense<0xFF800000> : vector<8xf32>
    %248 = vector.multi_reduction <maximumf>, %247, %cst_83 [1] : vector<8x8xf32> to vector<8xf32>
    %249 = vector.shape_cast %248 : vector<8xf32> to vector<8x1xf32>
    %250 = vector.broadcast %249 : vector<8x1xf32> to vector<8x8xf32>
    %251 = arith.subf %247, %250 : vector<8x8xf32>
    %252 = math.exp %251 : vector<8x8xf32>
    %cst_84 = arith.constant dense<0.000000e+00> : vector<8xf32>
    %253 = vector.multi_reduction <add>, %252, %cst_84 [1] : vector<8x8xf32> to vector<8xf32>
    %254 = vector.shape_cast %253 : vector<8xf32> to vector<8x1xf32>
    %255 = tpu.reciprocal %254 {approx = true} : vector<8x1xf32> -> vector<8x1xf32>
    %256 = vector.broadcast %255 : vector<8x1xf32> to vector<8x8xf32>
    %257 = arith.mulf %252, %256 : vector<8x8xf32>
    %258 = arith.truncf %257 : vector<8x8xf32> to vector<8x8xbf16>
    %cst_85 = arith.constant dense<0.000000e+00> : vector<8x32xf32>
    %259 = tpu.matmul %258, %244, %cst_85 {dimension_numbers = #tpu.dot_dimension_numbers<[1], [0], [0], [1], [0, 0, 1, 1], [], []>} : vector<8x8xbf16>, vector<8x32xbf16>, vector<8x32xf32> -> vector<8x32xf32>
    %c8_86 = arith.constant 8 : index
    %c128_87 = arith.constant 128 : index
    %260 = vector.load %arg15[%c8_86, %c128_87] : memref<16x256xf32, #tpu.memory_space<vmem>>, vector<8x32xf32>
    tpu.vector_store %arg15[%c8_86, %c128_87], %259 {strides = array<i32>} : memref<16x256xf32, #tpu.memory_space<vmem>>, vector<8x32xf32>,
    %261 = vector.extract_strided_slice %163 {offsets = [0, 160], sizes = [8, 32], strides = [1, 1]} : vector<8x256xbf16> to vector<8x32xbf16>
    %262 = vector.extract_strided_slice %164 {offsets = [0, 160], sizes = [8, 32], strides = [1, 1]} : vector<8x256xbf16> to vector<8x32xbf16>
    %263 = vector.extract_strided_slice %165 {offsets = [0, 160], sizes = [8, 32], strides = [1, 1]} : vector<8x256xbf16> to vector<8x32xbf16>
    %cst_88 = arith.constant dense<0.000000e+00> : vector<8x8xf32>
    %264 = tpu.matmul %261, %262, %cst_88 {dimension_numbers = #tpu.dot_dimension_numbers<[1], [1], [0], [0], [0, 0, 1, 0], [], []>} : vector<8x32xbf16>, vector<8x32xbf16>, vector<8x8xf32> -> vector<8x8xf32>
    %cst_89 = arith.constant 0.176776692 : f32
    %265 = vector.broadcast %cst_89 : f32 to vector<8x8xf32>
    %266 = arith.mulf %264, %265 : vector<8x8xf32>
    %cst_90 = arith.constant dense<0xFF800000> : vector<8xf32>
    %267 = vector.multi_reduction <maximumf>, %266, %cst_90 [1] : vector<8x8xf32> to vector<8xf32>
    %268 = vector.shape_cast %267 : vector<8xf32> to vector<8x1xf32>
    %269 = vector.broadcast %268 : vector<8x1xf32> to vector<8x8xf32>
    %270 = arith.subf %266, %269 : vector<8x8xf32>
    %271 = math.exp %270 : vector<8x8xf32>
    %cst_91 = arith.constant dense<0.000000e+00> : vector<8xf32>
    %272 = vector.multi_reduction <add>, %271, %cst_91 [1] : vector<8x8xf32> to vector<8xf32>
    %273 = vector.shape_cast %272 : vector<8xf32> to vector<8x1xf32>
    %274 = tpu.reciprocal %273 {approx = true} : vector<8x1xf32> -> vector<8x1xf32>
    %275 = vector.broadcast %274 : vector<8x1xf32> to vector<8x8xf32>
    %276 = arith.mulf %271, %275 : vector<8x8xf32>
    %277 = arith.truncf %276 : vector<8x8xf32> to vector<8x8xbf16>
    %cst_92 = arith.constant dense<0.000000e+00> : vector<8x32xf32>
    %278 = tpu.matmul %277, %263, %cst_92 {dimension_numbers = #tpu.dot_dimension_numbers<[1], [0], [0], [1], [0, 0, 1, 1], [], []>} : vector<8x8xbf16>, vector<8x32xbf16>, vector<8x32xf32> -> vector<8x32xf32>
    %c8_93 = arith.constant 8 : index
    %c160_94 = arith.constant 160 : index
    %279 = vector.load %arg15[%c8_93, %c160_94] : memref<16x256xf32, #tpu.memory_space<vmem>>, vector<8x32xf32>
    tpu.vector_store %arg15[%c8_93, %c160_94], %278 {strides = array<i32>} : memref<16x256xf32, #tpu.memory_space<vmem>>, vector<8x32xf32>,
    %280 = vector.extract_strided_slice %163 {offsets = [0, 192], sizes = [8, 32], strides = [1, 1]} : vector<8x256xbf16> to vector<8x32xbf16>
    %281 = vector.extract_strided_slice %164 {offsets = [0, 192], sizes = [8, 32], strides = [1, 1]} : vector<8x256xbf16> to vector<8x32xbf16>
    %282 = vector.extract_strided_slice %165 {offsets = [0, 192], sizes = [8, 32], strides = [1, 1]} : vector<8x256xbf16> to vector<8x32xbf16>
    %cst_95 = arith.constant dense<0.000000e+00> : vector<8x8xf32>
    %283 = tpu.matmul %280, %281, %cst_95 {dimension_numbers = #tpu.dot_dimension_numbers<[1], [1], [0], [0], [0, 0, 1, 0], [], []>} : vector<8x32xbf16>, vector<8x32xbf16>, vector<8x8xf32> -> vector<8x8xf32>
    %cst_96 = arith.constant 0.176776692 : f32
    %284 = vector.broadcast %cst_96 : f32 to vector<8x8xf32>
    %285 = arith.mulf %283, %284 : vector<8x8xf32>
    %cst_97 = arith.constant dense<0xFF800000> : vector<8xf32>
    %286 = vector.multi_reduction <maximumf>, %285, %cst_97 [1] : vector<8x8xf32> to vector<8xf32>
    %287 = vector.shape_cast %286 : vector<8xf32> to vector<8x1xf32>
    %288 = vector.broadcast %287 : vector<8x1xf32> to vector<8x8xf32>
    %289 = arith.subf %285, %288 : vector<8x8xf32>
    %290 = math.exp %289 : vector<8x8xf32>
    %cst_98 = arith.constant dense<0.000000e+00> : vector<8xf32>
    %291 = vector.multi_reduction <add>, %290, %cst_98 [1] : vector<8x8xf32> to vector<8xf32>
    %292 = vector.shape_cast %291 : vector<8xf32> to vector<8x1xf32>
    %293 = tpu.reciprocal %292 {approx = true} : vector<8x1xf32> -> vector<8x1xf32>
    %294 = vector.broadcast %293 : vector<8x1xf32> to vector<8x8xf32>
    %295 = arith.mulf %290, %294 : vector<8x8xf32>
    %296 = arith.truncf %295 : vector<8x8xf32> to vector<8x8xbf16>
    %cst_99 = arith.constant dense<0.000000e+00> : vector<8x32xf32>
    %297 = tpu.matmul %296, %282, %cst_99 {dimension_numbers = #tpu.dot_dimension_numbers<[1], [0], [0], [1], [0, 0, 1, 1], [], []>} : vector<8x8xbf16>, vector<8x32xbf16>, vector<8x32xf32> -> vector<8x32xf32>
    %c8_100 = arith.constant 8 : index
    %c192_101 = arith.constant 192 : index
    %298 = vector.load %arg15[%c8_100, %c192_101] : memref<16x256xf32, #tpu.memory_space<vmem>>, vector<8x32xf32>
    tpu.vector_store %arg15[%c8_100, %c192_101], %297 {strides = array<i32>} : memref<16x256xf32, #tpu.memory_space<vmem>>, vector<8x32xf32>,
    %299 = vector.extract_strided_slice %163 {offsets = [0, 224], sizes = [8, 32], strides = [1, 1]} : vector<8x256xbf16> to vector<8x32xbf16>
    %300 = vector.extract_strided_slice %164 {offsets = [0, 224], sizes = [8, 32], strides = [1, 1]} : vector<8x256xbf16> to vector<8x32xbf16>
    %301 = vector.extract_strided_slice %165 {offsets = [0, 224], sizes = [8, 32], strides = [1, 1]} : vector<8x256xbf16> to vector<8x32xbf16>
    %cst_102 = arith.constant dense<0.000000e+00> : vector<8x8xf32>
    %302 = tpu.matmul %299, %300, %cst_102 {dimension_numbers = #tpu.dot_dimension_numbers<[1], [1], [0], [0], [0, 0, 1, 0], [], []>} : vector<8x32xbf16>, vector<8x32xbf16>, vector<8x8xf32> -> vector<8x8xf32>
    %cst_103 = arith.constant 0.176776692 : f32
    %303 = vector.broadcast %cst_103 : f32 to vector<8x8xf32>
    %304 = arith.mulf %302, %303 : vector<8x8xf32>
    %cst_104 = arith.constant dense<0xFF800000> : vector<8xf32>
    %305 = vector.multi_reduction <maximumf>, %304, %cst_104 [1] : vector<8x8xf32> to vector<8xf32>
    %306 = vector.shape_cast %305 : vector<8xf32> to vector<8x1xf32>
    %307 = vector.broadcast %306 : vector<8x1xf32> to vector<8x8xf32>
    %308 = arith.subf %304, %307 : vector<8x8xf32>
    %309 = math.exp %308 : vector<8x8xf32>
    %cst_105 = arith.constant dense<0.000000e+00> : vector<8xf32>
    %310 = vector.multi_reduction <add>, %309, %cst_105 [1] : vector<8x8xf32> to vector<8xf32>
    %311 = vector.shape_cast %310 : vector<8xf32> to vector<8x1xf32>
    %312 = tpu.reciprocal %311 {approx = true} : vector<8x1xf32> -> vector<8x1xf32>
    %313 = vector.broadcast %312 : vector<8x1xf32> to vector<8x8xf32>
    %314 = arith.mulf %309, %313 : vector<8x8xf32>
    %315 = arith.truncf %314 : vector<8x8xf32> to vector<8x8xbf16>
    %cst_106 = arith.constant dense<0.000000e+00> : vector<8x32xf32>
    %316 = tpu.matmul %315, %301, %cst_106 {dimension_numbers = #tpu.dot_dimension_numbers<[1], [0], [0], [1], [0, 0, 1, 1], [], []>} : vector<8x8xbf16>, vector<8x32xbf16>, vector<8x32xf32> -> vector<8x32xf32>
    %c8_107 = arith.constant 8 : index
    %c224_108 = arith.constant 224 : index
    %317 = vector.load %arg15[%c8_107, %c224_108] : memref<16x256xf32, #tpu.memory_space<vmem>>, vector<8x32xf32>
    tpu.vector_store %arg15[%c8_107, %c224_108], %316 {strides = array<i32>} : memref<16x256xf32, #tpu.memory_space<vmem>>, vector<8x32xf32>,
    %c0_109 = arith.constant 0 : index
    %c0_110 = arith.constant 0 : index
    %318 = vector.load %arg15[%c0_109, %c0_110] : memref<16x256xf32, #tpu.memory_space<vmem>>, vector<16x256xf32>
    %319 = arith.truncf %318 : vector<16x256xf32> to vector<16x256xbf16>
    %c0_111 = arith.constant 0 : index
    %c0_112 = arith.constant 0 : index
    %320 = vector.load %arg4[%c0_111, %c0_112] : memref<256x256xbf16, #tpu.memory_space<vmem>>, vector<256x256xbf16>
    %cst_113 = arith.constant dense<0.000000e+00> : vector<16x256xf32>
    %321 = tpu.matmul %319, %320, %cst_113 {dimension_numbers = #tpu.dot_dimension_numbers<[1], [0], [0], [1], [0, 0, 1, 1], [], []>} : vector<16x256xbf16>, vector<256x256xbf16>, vector<16x256xf32> -> vector<16x256xf32>
    %c0_114 = arith.constant 0 : index
    %c0_115 = arith.constant 0 : index
    %322 = vector.load %arg5[%c0_114, %c0_115] : memref<1x256xf32, #tpu.memory_space<vmem>>, vector<1x256xf32>
    %323 = vector.broadcast %322 : vector<1x256xf32> to vector<16x256xf32>
    %324 = arith.addf %321, %323 : vector<16x256xf32>
    %325 = arith.addf %324, %0 : vector<16x256xf32>
    %c0_116 = arith.constant 0 : index
    %c0_117 = arith.constant 0 : index
    %326 = vector.load %arg6[%c0_116, %c0_117] : memref<1x256xf32, #tpu.memory_space<vmem>>, vector<1x256xf32>
    %c0_118 = arith.constant 0 : index
    %c0_119 = arith.constant 0 : index
    %327 = vector.load %arg7[%c0_118, %c0_119] : memref<1x256xf32, #tpu.memory_space<vmem>>, vector<1x256xf32>
    %cst_120 = arith.constant dense<0.000000e+00> : vector<16xf32>
    %328 = vector.multi_reduction <add>, %325, %cst_120 [1] : vector<16x256xf32> to vector<16xf32>
    %329 = vector.shape_cast %328 : vector<16xf32> to vector<16x1xf32>
    %cst_121 = arith.constant 2.560000e+02 : f32
    %330 = vector.broadcast %cst_121 : f32 to vector<16x1xf32>
    %331 = arith.divf %329, %330 : vector<16x1xf32>
    %332 = vector.broadcast %331 : vector<16x1xf32> to vector<16x256xf32>
    %333 = arith.subf %325, %332 : vector<16x256xf32>
    %334 = arith.mulf %333, %333 : vector<16x256xf32>
    %cst_122 = arith.constant dense<0.000000e+00> : vector<16xf32>
    %335 = vector.multi_reduction <add>, %334, %cst_122 [1] : vector<16x256xf32> to vector<16xf32>
    %336 = vector.shape_cast %335 : vector<16xf32> to vector<16x1xf32>
    %cst_123 = arith.constant 2.560000e+02 : f32
    %337 = vector.broadcast %cst_123 : f32 to vector<16x1xf32>
    %338 = arith.divf %336, %337 : vector<16x1xf32>
    %339 = vector.broadcast %331 : vector<16x1xf32> to vector<16x256xf32>
    %340 = arith.subf %325, %339 : vector<16x256xf32>
    %cst_124 = arith.constant 9.99999974E-6 : f32
    %341 = vector.broadcast %cst_124 : f32 to vector<16x1xf32>
    %342 = arith.addf %338, %341 : vector<16x1xf32>
    %343 = math.rsqrt %342 : vector<16x1xf32>
    %344 = vector.broadcast %343 : vector<16x1xf32> to vector<16x256xf32>
    %345 = arith.mulf %340, %344 : vector<16x256xf32>
    %346 = vector.broadcast %326 : vector<1x256xf32> to vector<16x256xf32>
    %347 = arith.mulf %345, %346 : vector<16x256xf32>
    %348 = vector.broadcast %327 : vector<1x256xf32> to vector<16x256xf32>
    %349 = arith.addf %347, %348 : vector<16x256xf32>
    %350 = arith.truncf %349 : vector<16x256xf32> to vector<16x256xbf16>
    %c0_125 = arith.constant 0 : index
    %c0_126 = arith.constant 0 : index
    %351 = vector.load %arg8[%c0_125, %c0_126] : memref<256x1024xbf16, #tpu.memory_space<vmem>>, vector<256x1024xbf16>
    %cst_127 = arith.constant dense<0.000000e+00> : vector<16x1024xf32>
    %352 = tpu.matmul %350, %351, %cst_127 {dimension_numbers = #tpu.dot_dimension_numbers<[1], [0], [0], [1], [0, 0, 1, 1], [], []>} : vector<16x256xbf16>, vector<256x1024xbf16>, vector<16x1024xf32> -> vector<16x1024xf32>
    %c0_128 = arith.constant 0 : index
    %c0_129 = arith.constant 0 : index
    %353 = vector.load %arg9[%c0_128, %c0_129] : memref<1x1024xf32, #tpu.memory_space<vmem>>, vector<1x1024xf32>
    %354 = vector.broadcast %353 : vector<1x1024xf32> to vector<16x1024xf32>
    %355 = arith.addf %352, %354 : vector<16x1024xf32>
    %cst_130 = arith.constant 5.000000e-01 : f32
    %356 = vector.broadcast %cst_130 : f32 to vector<16x1024xf32>
    %357 = arith.mulf %356, %355 : vector<16x1024xf32>
    %cst_131 = arith.constant 4.471500e-02 : f32
    %358 = vector.broadcast %cst_131 : f32 to vector<16x1024xf32>
    %359 = arith.mulf %358, %355 : vector<16x1024xf32>
    %360 = arith.mulf %359, %355 : vector<16x1024xf32>
    %361 = arith.mulf %360, %355 : vector<16x1024xf32>
    %362 = arith.addf %355, %361 : vector<16x1024xf32>
    %cst_132 = arith.constant 0.797884583 : f32
    %363 = vector.broadcast %cst_132 : f32 to vector<16x1024xf32>
    %364 = arith.mulf %363, %362 : vector<16x1024xf32>
    %365 = math.tanh %364 : vector<16x1024xf32>
    %cst_133 = arith.constant 1.000000e+00 : f32
    %366 = vector.broadcast %cst_133 : f32 to vector<16x1024xf32>
    %367 = arith.addf %366, %365 : vector<16x1024xf32>
    %368 = arith.mulf %357, %367 : vector<16x1024xf32>
    %369 = arith.truncf %368 : vector<16x1024xf32> to vector<16x1024xbf16>
    %c0_134 = arith.constant 0 : index
    %c0_135 = arith.constant 0 : index
    %370 = vector.load %arg10[%c0_134, %c0_135] : memref<1024x256xbf16, #tpu.memory_space<vmem>>, vector<1024x256xbf16>
    %cst_136 = arith.constant dense<0.000000e+00> : vector<16x256xf32>
    %371 = tpu.matmul %369, %370, %cst_136 {dimension_numbers = #tpu.dot_dimension_numbers<[1], [0], [0], [1], [0, 0, 1, 1], [], []>} : vector<16x1024xbf16>, vector<1024x256xbf16>, vector<16x256xf32> -> vector<16x256xf32>
    %c0_137 = arith.constant 0 : index
    %c0_138 = arith.constant 0 : index
    %372 = vector.load %arg11[%c0_137, %c0_138] : memref<1x256xf32, #tpu.memory_space<vmem>>, vector<1x256xf32>
    %373 = vector.broadcast %372 : vector<1x256xf32> to vector<16x256xf32>
    %374 = arith.addf %371, %373 : vector<16x256xf32>
    %375 = arith.addf %374, %349 : vector<16x256xf32>
    %c0_139 = arith.constant 0 : index
    %c0_140 = arith.constant 0 : index
    %376 = vector.load %arg12[%c0_139, %c0_140] : memref<1x256xf32, #tpu.memory_space<vmem>>, vector<1x256xf32>
    %c0_141 = arith.constant 0 : index
    %c0_142 = arith.constant 0 : index
    %377 = vector.load %arg13[%c0_141, %c0_142] : memref<1x256xf32, #tpu.memory_space<vmem>>, vector<1x256xf32>
    %cst_143 = arith.constant dense<0.000000e+00> : vector<16xf32>
    %378 = vector.multi_reduction <add>, %375, %cst_143 [1] : vector<16x256xf32> to vector<16xf32>
    %379 = vector.shape_cast %378 : vector<16xf32> to vector<16x1xf32>
    %cst_144 = arith.constant 2.560000e+02 : f32
    %380 = vector.broadcast %cst_144 : f32 to vector<16x1xf32>
    %381 = arith.divf %379, %380 : vector<16x1xf32>
    %382 = vector.broadcast %381 : vector<16x1xf32> to vector<16x256xf32>
    %383 = arith.subf %375, %382 : vector<16x256xf32>
    %384 = arith.mulf %383, %383 : vector<16x256xf32>
    %cst_145 = arith.constant dense<0.000000e+00> : vector<16xf32>
    %385 = vector.multi_reduction <add>, %384, %cst_145 [1] : vector<16x256xf32> to vector<16xf32>
    %386 = vector.shape_cast %385 : vector<16xf32> to vector<16x1xf32>
    %cst_146 = arith.constant 2.560000e+02 : f32
    %387 = vector.broadcast %cst_146 : f32 to vector<16x1xf32>
    %388 = arith.divf %386, %387 : vector<16x1xf32>
    %389 = vector.broadcast %381 : vector<16x1xf32> to vector<16x256xf32>
    %390 = arith.subf %375, %389 : vector<16x256xf32>
    %cst_147 = arith.constant 9.99999974E-6 : f32
    %391 = vector.broadcast %cst_147 : f32 to vector<16x1xf32>
    %392 = arith.addf %388, %391 : vector<16x1xf32>
    %393 = math.rsqrt %392 : vector<16x1xf32>
    %394 = vector.broadcast %393 : vector<16x1xf32> to vector<16x256xf32>
    %395 = arith.mulf %390, %394 : vector<16x256xf32>
    %396 = vector.broadcast %376 : vector<1x256xf32> to vector<16x256xf32>
    %397 = arith.mulf %395, %396 : vector<16x256xf32>
    %398 = vector.broadcast %377 : vector<1x256xf32> to vector<16x256xf32>
    %399 = arith.addf %397, %398 : vector<16x256xf32>
    %c0_148 = arith.constant 0 : index
    %c0_149 = arith.constant 0 : index
    %400 = vector.load %arg14[%c0_148, %c0_149] : memref<16x256xf32, #tpu.memory_space<vmem>>, vector<16x256xf32>
    tpu.vector_store %arg14[%c0_148, %c0_149], %399 {strides = array<i32>} : memref<16x256xf32, #tpu.memory_space<vmem>>, vector<16x256xf32>,
    return
  }
  func.func @transform_0(%arg0: i32) -> (i32, i32) {
    %c0_i32 = arith.constant 0 : i32
    %c0_i32_0 = arith.constant 0 : i32
    return %arg0, %c0_i32 : i32, i32
  }
  func.func @transform_1(%arg0: i32) -> (i32, i32) {
    %c0_i32 = arith.constant 0 : i32
    %c0_i32_0 = arith.constant 0 : i32
    %c0_i32_1 = arith.constant 0 : i32
    return %c0_i32, %c0_i32_0 : i32, i32
  }
  func.func @transform_2(%arg0: i32) -> (i32, i32) {
    %c0_i32 = arith.constant 0 : i32
    %c0_i32_0 = arith.constant 0 : i32
    %c0_i32_1 = arith.constant 0 : i32
    return %c0_i32, %c0_i32_0 : i32, i32
  }
  func.func @transform_3(%arg0: i32) -> (i32, i32) {
    %c0_i32 = arith.constant 0 : i32
    %c0_i32_0 = arith.constant 0 : i32
    %c0_i32_1 = arith.constant 0 : i32
    return %c0_i32, %c0_i32_0 : i32, i32
  }
  func.func @transform_4(%arg0: i32) -> (i32, i32) {
    %c0_i32 = arith.constant 0 : i32
    %c0_i32_0 = arith.constant 0 : i32
    %c0_i32_1 = arith.constant 0 : i32
    return %c0_i32, %c0_i32_0 : i32, i32
  }
  func.func @transform_5(%arg0: i32) -> (i32, i32) {
    %c0_i32 = arith.constant 0 : i32
    %c0_i32_0 = arith.constant 0 : i32
    %c0_i32_1 = arith.constant 0 : i32
    return %c0_i32, %c0_i32_0 : i32, i32
  }
  func.func @transform_6(%arg0: i32) -> (i32, i32) {
    %c0_i32 = arith.constant 0 : i32
    %c0_i32_0 = arith.constant 0 : i32
    %c0_i32_1 = arith.constant 0 : i32
    return %c0_i32, %c0_i32_0 : i32, i32
  }
  func.func @transform_7(%arg0: i32) -> (i32, i32) {
    %c0_i32 = arith.constant 0 : i32
    %c0_i32_0 = arith.constant 0 : i32
    %c0_i32_1 = arith.constant 0 : i32
    return %c0_i32, %c0_i32_0 : i32, i32
  }
  func.func @transform_8(%arg0: i32) -> (i32, i32) {
    %c0_i32 = arith.constant 0 : i32
    %c0_i32_0 = arith.constant 0 : i32
    %c0_i32_1 = arith.constant 0 : i32
    return %c0_i32, %c0_i32_0 : i32, i32
  }
  func.func @transform_9(%arg0: i32) -> (i32, i32) {
    %c0_i32 = arith.constant 0 : i32
    %c0_i32_0 = arith.constant 0 : i32
    %c0_i32_1 = arith.constant 0 : i32
    return %c0_i32, %c0_i32_0 : i32, i32
  }
  func.func @transform_10(%arg0: i32) -> (i32, i32) {
    %c0_i32 = arith.constant 0 : i32
    %c0_i32_0 = arith.constant 0 : i32
    %c0_i32_1 = arith.constant 0 : i32
    return %c0_i32, %c0_i32_0 : i32, i32
  }
  func.func @transform_11(%arg0: i32) -> (i32, i32) {
    %c0_i32 = arith.constant 0 : i32
    %c0_i32_0 = arith.constant 0 : i32
    %c0_i32_1 = arith.constant 0 : i32
    return %c0_i32, %c0_i32_0 : i32, i32
  }
  func.func @transform_12(%arg0: i32) -> (i32, i32) {
    %c0_i32 = arith.constant 0 : i32
    %c0_i32_0 = arith.constant 0 : i32
    %c0_i32_1 = arith.constant 0 : i32
    return %c0_i32, %c0_i32_0 : i32, i32
  }
  func.func @transform_13(%arg0: i32) -> (i32, i32) {
    %c0_i32 = arith.constant 0 : i32
    %c0_i32_0 = arith.constant 0 : i32
    return %arg0, %c0_i32 : i32, i32
  }
}

</mosaic_0001>

<llo_original>
// kernel: tpu_custom_call.1
$region0: #{tpu_custom_call.1}
  #allocation0 [shape = 'u32[]', space=smem, size = 0x4, offset = 0x4, fixed_abs, tag = 'smem constant byte address 0x4 - core index']
  #allocation1 [shape = 'u32[144,128]{1,0:T(1,128)}', space=vmem, size = 0x12000, scoped, tag = 'internal scratch']
  #allocation2 [shape = 'f32[16,256]{1,0:T(8,128)}', space=vmem, size = 0x4000, scoped, tag = 'scratch operand']
  %s0 = inlined_call_operand.hbm [shape: f32[16,256], index: 0, kind: input, shape index: {}]
  %s1 = inlined_call_operand.hbm [shape: bf16[256,768], index: 1, kind: input, shape index: {}]
  %s2 = inlined_call_operand.hbm [shape: f32[1,768], index: 2, kind: input, shape index: {}]
  %s3 = inlined_call_operand.hbm [shape: bf16[256,256], index: 3, kind: input, shape index: {}]
  %s4 = inlined_call_operand.hbm [shape: f32[1,256], index: 4, kind: input, shape index: {}]
  %s5 = inlined_call_operand.hbm [shape: f32[1,256], index: 5, kind: input, shape index: {}]
  %s6 = inlined_call_operand.hbm [shape: f32[1,256], index: 6, kind: input, shape index: {}]
  %s7 = inlined_call_operand.hbm [shape: bf16[256,1024], index: 7, kind: input, shape index: {}]
  %s8 = inlined_call_operand.hbm [shape: f32[1,1024], index: 8, kind: input, shape index: {}]
  %s9 = inlined_call_operand.hbm [shape: bf16[1024,256], index: 9, kind: input, shape index: {}]
  %s10 = inlined_call_operand.hbm [shape: f32[1,256], index: 10, kind: input, shape index: {}]
  %s11 = inlined_call_operand.hbm [shape: f32[1,256], index: 11, kind: input, shape index: {}]
  %s12 = inlined_call_operand.hbm [shape: f32[1,256], index: 12, kind: input, shape index: {}]
  %s13 = inlined_call_operand.hbm [shape: f32[16,256], index: 13, kind: output, shape index: {}]
  %s14 = sld [smem:[#allocation0]]
  $region114: #{tpu_custom_call.1} parent=0
    _
  %s16 = ssub.s32 1, %s14
  %s17 = scalar_select 0, %s16, %s14
  $region1: #{tpu_custom_call.1} parent=0
    #allocation3 [shape = 'u8[16384]{0}', space=vmem, size = 0x4000, scoped, tag = 'input window, operand 0, single buffered']
    #allocation4 [shape = 's32[1]{0}', space=sflag, size = 0x4, scoped, tag = 'scoped memory for tpu_custom_call.1']
    #allocation5 [shape = 's32[1]{0}', space=sflag, size = 0x4, scoped, tag = 'scoped memory for tpu_custom_call.1']
    #allocation6 [shape = 'u8[393216]{0}', space=vmem, size = 0x60000, scoped, tag = 'input window, operand 1, single buffered']
    #allocation7 [shape = 's32[1]{0}', space=sflag, size = 0x4, scoped, tag = 'scoped memory for tpu_custom_call.1']
    #allocation8 [shape = 'u8[3072]{0}', space=vmem, size = 0xc00, scoped, tag = 'input window, operand 2, single buffered']
    #allocation9 [shape = 'u8[131072]{0}', space=vmem, size = 0x20000, scoped, tag = 'input window, operand 3, single buffered']
    #allocation10 [shape = 's32[1]{0}', space=sflag, size = 0x4, scoped, tag = 'scoped memory for tpu_custom_call.1']
    #allocation11 [shape = 'u8[1024]{0}', space=vmem, size = 0x400, scoped, tag = 'input window, operand 4, single buffered']
    #allocation12 [shape = 'u8[1024]{0}', space=vmem, size = 0x400, scoped, tag = 'input window, operand 5, single buffered']
    #allocation13 [shape = 's32[1]{0}', space=sflag, size = 0x4, scoped, tag = 'scoped memory for tpu_custom_call.1']
    #allocation14 [shape = 'u8[1024]{0}', space=vmem, size = 0x400, scoped, tag = 'input window, operand 6, single buffered']
    #allocation15 [shape = 'u8[524288]{0}', space=vmem, size = 0x80000, scoped, tag = 'input window, operand 7, single buffered']
    #allocation16 [shape = 's32[1]{0}', space=sflag, size = 0x4, scoped, tag = 'scoped memory for tpu_custom_call.1']
    #allocation17 [shape = 'u8[4096]{0}', space=vmem, size = 0x1000, scoped, tag = 'input window, operand 8, single buffered']
    #allocation18 [shape = 'u8[524288]{0}', space=vmem, size = 0x80000, scoped, tag = 'input window, operand 9, single buffered']
    #allocation19 [shape = 's32[1]{0}', space=sflag, size = 0x4, scoped, tag = 'scoped memory for tpu_custom_call.1']
    #allocation20 [shape = 'u8[1024]{0}', space=vmem, size = 0x400, scoped, tag = 'input window, operand 10, single buffered']
    #allocation21 [shape = 'u8[1024]{0}', space=vmem, size = 0x400, scoped, tag = 'input window, operand 11, single buffered']
    #allocation22 [shape = 's32[1]{0}', space=sflag, size = 0x4, scoped, tag = 'scoped memory for tpu_custom_call.1']
    #allocation23 [shape = 'u8[1024]{0}', space=vmem, size = 0x400, scoped, tag = 'input window, operand 12, single buffered']
    #allocation24 [shape = 'u8[16384]{0}', space=vmem, size = 0x4000, scoped, tag = 'output window, operand 0, single buffered']
    %18 = vsyncpa [#allocation4], 0
    %19 = vsyncpa [#allocation7], 0
    %20 = vsyncpa [#allocation10], 0
    %21 = vsyncpa [#allocation13], 0
    %22 = vsyncpa [#allocation16], 0
    %23 = vsyncpa [#allocation19], 0
    %24 = vsyncpa [#allocation22], 0
    %25 = vsyncpa [#allocation5], 0
    // Predicated region
    $region2: #{tpu_custom_call.1} parent=1 // pred_check
      _
    $region3: #{tpu_custom_call.1} parent=1 // pred_check_branch
      %27 = sbr.rel (0) target = $region5
    $region4: #{tpu_custom_call.1} parent=1 // pred_region
      %s29 = ssub.s32 512, 512
      %30 = vsyncadd [#allocation4], %s29
      %s31 = sshll.u32 [#allocation3], 4
      %s32 = int_to_ptr.vmem [resolvable:$true] %s31
      %37 = dma.hbm_to_vmem [thread:$0]  %s0, 512, %s32, [#allocation4], 256, 256, 16
    $region5: #{tpu_custom_call.1} parent=1 // pred_fallthru
      _
    // Predicated region
    $region6: #{tpu_custom_call.1} parent=1 // pred_check
      _
    $region7: #{tpu_custom_call.1} parent=1 // pred_check_branch
      %39 = sbr.rel (0) target = $region9
    $region8: #{tpu_custom_call.1} parent=1 // pred_region
      %s41 = ssub.s32 12288, 12288
      %42 = vsyncadd [#allocation7], %s41
      %s43 = sshll.u32 [#allocation6], 4
      %s44 = int_to_ptr.vmem [resolvable:$true] %s43
      %49 = dma.hbm_to_vmem [thread:$0]  %s1, 12288, %s44, [#allocation7], 384, 384, 24
    $region9: #{tpu_custom_call.1} parent=1 // pred_fallthru
      _
    // Predicated region
    $region10: #{tpu_custom_call.1} parent=1 // pred_check
      _
    $region11: #{tpu_custom_call.1} parent=1 // pred_check_branch
      %51 = sbr.rel (0) target = $region13
    $region12: #{tpu_custom_call.1} parent=1 // pred_region
      %s53 = ssub.s32 96, 96
      %54 = vsyncadd [#allocation7], %s53
      %s56 = sshll.u32 [#allocation8], 4
      %s57 = int_to_ptr.vmem [resolvable:$true] %s56
      %59 = dma.hbm_to_vmem [thread:$0]  %s2, 96, %s57, [#allocation7]
    $region13: #{tpu_custom_call.1} parent=1 // pred_fallthru
      _
    // Predicated region
    $region14: #{tpu_custom_call.1} parent=1 // pred_check
      _
    $region15: #{tpu_custom_call.1} parent=1 // pred_check_branch
      %61 = sbr.rel (0) target = $region17
    $region16: #{tpu_custom_call.1} parent=1 // pred_region
      %s63 = ssub.s32 4096, 4096
      %64 = vsyncadd [#allocation10], %s63
      %s65 = sshll.u32 [#allocation9], 4
      %s66 = int_to_ptr.vmem [resolvable:$true] %s65
      %71 = dma.hbm_to_vmem [thread:$0]  %s3, 4096, %s66, [#allocation10], 128, 128, 8
    $region17: #{tpu_custom_call.1} parent=1 // pred_fallthru
      _
    // Predicated region
    $region18: #{tpu_custom_call.1} parent=1 // pred_check
      _
    $region19: #{tpu_custom_call.1} parent=1 // pred_check_branch
      %73 = sbr.rel (0) target = $region21
    $region20: #{tpu_custom_call.1} parent=1 // pred_region
      %s75 = ssub.s32 32, 32
      %76 = vsyncadd [#allocation10], %s75
      %s78 = sshll.u32 [#allocation11], 4
      %s79 = int_to_ptr.vmem [resolvable:$true] %s78
      %81 = dma.hbm_to_vmem [thread:$0]  %s4, 32, %s79, [#allocation10]
    $region21: #{tpu_custom_call.1} parent=1 // pred_fallthru
      _
    // Predicated region
    $region22: #{tpu_custom_call.1} parent=1 // pred_check
      _
    $region23: #{tpu_custom_call.1} parent=1 // pred_check_branch
      %83 = sbr.rel (0) target = $region25
    $region24: #{tpu_custom_call.1} parent=1 // pred_region
      %s85 = ssub.s32 32, 32
      %86 = vsyncadd [#allocation13], %s85
      %s88 = sshll.u32 [#allocation12], 4
      %s89 = int_to_ptr.vmem [resolvable:$true] %s88
      %91 = dma.hbm_to_vmem [thread:$0]  %s5, 32, %s89, [#allocation13]
    $region25: #{tpu_custom_call.1} parent=1 // pred_fallthru
      _
    // Predicated region
    $region26: #{tpu_custom_call.1} parent=1 // pred_check
      _
    $region27: #{tpu_custom_call.1} parent=1 // pred_check_branch
      %93 = sbr.rel (0) target = $region29
    $region28: #{tpu_custom_call.1} parent=1 // pred_region
      %s95 = ssub.s32 32, 32
      %96 = vsyncadd [#allocation13], %s95
      %s98 = sshll.u32 [#allocation14], 4
      %s99 = int_to_ptr.vmem [resolvable:$true] %s98
      %101 = dma.hbm_to_vmem [thread:$0]  %s6, 32, %s99, [#allocation13]
    $region29: #{tpu_custom_call.1} parent=1 // pred_fallthru
      _
    // Predicated region
    $region30: #{tpu_custom_call.1} parent=1 // pred_check
      _
    $region31: #{tpu_custom_call.1} parent=1 // pred_check_branch
      %103 = sbr.rel (0) target = $region33
    $region32: #{tpu_custom_call.1} parent=1 // pred_region
      %s105 = ssub.s32 16384, 16384
      %106 = vsyncadd [#allocation16], %s105
      %s107 = sshll.u32 [#allocation15], 4
      %s108 = int_to_ptr.vmem [resolvable:$true] %s107
      %113 = dma.hbm_to_vmem [thread:$0]  %s7, 16384, %s108, [#allocation16], 512, 512, 32
    $region33: #{tpu_custom_call.1} parent=1 // pred_fallthru
      _
    // Predicated region
    $region34: #{tpu_custom_call.1} parent=1 // pred_check
      _
    $region35: #{tpu_custom_call.1} parent=1 // pred_check_branch
      %115 = sbr.rel (0) target = $region37
    $region36: #{tpu_custom_call.1} parent=1 // pred_region
      %s117 = ssub.s32 128, 128
      %118 = vsyncadd [#allocation16], %s117
      %s120 = sshll.u32 [#allocation17], 4
      %s121 = int_to_ptr.vmem [resolvable:$true] %s120
      %123 = dma.hbm_to_vmem [thread:$0]  %s8, 128, %s121, [#allocation16]
    $region37: #{tpu_custom_call.1} parent=1 // pred_fallthru
      _
    // Predicated region
    $region38: #{tpu_custom_call.1} parent=1 // pred_check
      _
    $region39: #{tpu_custom_call.1} parent=1 // pred_check_branch
      %125 = sbr.rel (0) target = $region41
    $region40: #{tpu_custom_call.1} parent=1 // pred_region
      %s127 = ssub.s32 16384, 16384
      %128 = vsyncadd [#allocation19], %s127
      %s129 = sshll.u32 [#allocation18], 4
      %s130 = int_to_ptr.vmem [resolvable:$true] %s129
      %135 = dma.hbm_to_vmem [thread:$0]  %s9, 16384, %s130, [#allocation19], 128, 128, 8
    $region41: #{tpu_custom_call.1} parent=1 // pred_fallthru
      _
    // Predicated region
    $region42: #{tpu_custom_call.1} parent=1 // pred_check
      _
    $region43: #{tpu_custom_call.1} parent=1 // pred_check_branch
      %137 = sbr.rel (0) target = $region45
    $region44: #{tpu_custom_call.1} parent=1 // pred_region
      %s139 = ssub.s32 32, 32
      %140 = vsyncadd [#allocation19], %s139
      %s142 = sshll.u32 [#allocation20], 4
      %s143 = int_to_ptr.vmem [resolvable:$true] %s142
      %145 = dma.hbm_to_vmem [thread:$0]  %s10, 32, %s143, [#allocation19]
    $region45: #{tpu_custom_call.1} parent=1 // pred_fallthru
      _
    // Predicated region
    $region46: #{tpu_custom_call.1} parent=1 // pred_check
      _
    $region47: #{tpu_custom_call.1} parent=1 // pred_check_branch
      %147 = sbr.rel (0) target = $region49
    $region48: #{tpu_custom_call.1} parent=1 // pred_region
      %s149 = ssub.s32 32, 32
      %150 = vsyncadd [#allocation22], %s149
      %s152 = sshll.u32 [#allocation21], 4
      %s153 = int_to_ptr.vmem [resolvable:$true] %s152
      %155 = dma.hbm_to_vmem [thread:$0]  %s11, 32, %s153, [#allocation22]
    $region49: #{tpu_custom_call.1} parent=1 // pred_fallthru
      _
    // Predicated region
    $region50: #{tpu_custom_call.1} parent=1 // pred_check
      _
    $region51: #{tpu_custom_call.1} parent=1 // pred_check_branch
      %157 = sbr.rel (0) target = $region53
    $region52: #{tpu_custom_call.1} parent=1 // pred_region
      %s159 = ssub.s32 32, 32
      %160 = vsyncadd [#allocation22], %s159
      %s162 = sshll.u32 [#allocation23], 4
      %s163 = int_to_ptr.vmem [resolvable:$true] %s162
      %165 = dma.hbm_to_vmem [thread:$0]  %s12, 32, %s163, [#allocation22]
    $region53: #{tpu_custom_call.1} parent=1 // pred_fallthru
      _
    // Predicated region
    $region54: #{tpu_custom_call.1} parent=1 // pred_check
      _
    $region55: #{tpu_custom_call.1} parent=1 // pred_check_branch
      %167 = sbr.rel (0) target = $region57
    $region56: #{tpu_custom_call.1} parent=1 // pred_region
      %168 = dma.done [#allocation4], 512
    $region57: #{tpu_custom_call.1} parent=1 // pred_fallthru
      _
    // Predicated region
    $region58: #{tpu_custom_call.1} parent=1 // pred_check
      _
    $region59: #{tpu_custom_call.1} parent=1 // pred_check_branch
      %170 = sbr.rel (0) target = $region61
    $region60: #{tpu_custom_call.1} parent=1 // pred_region
      %171 = dma.done [#allocation7], 12288
    $region61: #{tpu_custom_call.1} parent=1 // pred_fallthru
      _
    // Predicated region
    $region62: #{tpu_custom_call.1} parent=1 // pred_check
      _
    $region63: #{tpu_custom_call.1} parent=1 // pred_check_branch
      %173 = sbr.rel (0) target = $region65
    $region64: #{tpu_custom_call.1} parent=1 // pred_region
      %174 = dma.done [#allocation7], 96
    $region65: #{tpu_custom_call.1} parent=1 // pred_fallthru
      _
    // Predicated region
    $region66: #{tpu_custom_call.1} parent=1 // pred_check
      _
    $region67: #{tpu_custom_call.1} parent=1 // pred_check_branch
      %176 = sbr.rel (0) target = $region69
    $region68: #{tpu_custom_call.1} parent=1 // pred_region
      %177 = dma.done [#allocation10], 4096
    $region69: #{tpu_custom_call.1} parent=1 // pred_fallthru
      _
    // Predicated region
    $region70: #{tpu_custom_call.1} parent=1 // pred_check
      _
    $region71: #{tpu_custom_call.1} parent=1 // pred_check_branch
      %179 = sbr.rel (0) target = $region73
    $region72: #{tpu_custom_call.1} parent=1 // pred_region
      %180 = dma.done [#allocation10], 32
    $region73: #{tpu_custom_call.1} parent=1 // pred_fallthru
      _
    // Predicated region
    $region74: #{tpu_custom_call.1} parent=1 // pred_check
      _
    $region75: #{tpu_custom_call.1} parent=1 // pred_check_branch
      %182 = sbr.rel (0) target = $region77
    $region76: #{tpu_custom_call.1} parent=1 // pred_region
      %183 = dma.done [#allocation13], 32
    $region77: #{tpu_custom_call.1} parent=1 // pred_fallthru
      _
    // Predicated region
    $region78: #{tpu_custom_call.1} parent=1 // pred_check
      _
    $region79: #{tpu_custom_call.1} parent=1 // pred_check_branch
      %185 = sbr.rel (0) target = $region81
    $region80: #{tpu_custom_call.1} parent=1 // pred_region
      %186 = dma.done [#allocation13], 32
    $region81: #{tpu_custom_call.1} parent=1 // pred_fallthru
      _
    // Predicated region
    $region82: #{tpu_custom_call.1} parent=1 // pred_check
      _
    $region83: #{tpu_custom_call.1} parent=1 // pred_check_branch
      %188 = sbr.rel (0) target = $region85
    $region84: #{tpu_custom_call.1} parent=1 // pred_region
      %189 = dma.done [#allocation16], 16384
    $region85: #{tpu_custom_call.1} parent=1 // pred_fallthru
      _
    // Predicated region
    $region86: #{tpu_custom_call.1} parent=1 // pred_check
      _
    $region87: #{tpu_custom_call.1} parent=1 // pred_check_branch
      %191 = sbr.rel (0) target = $region89
    $region88: #{tpu_custom_call.1} parent=1 // pred_region
      %192 = dma.done [#allocation16], 128
    $region89: #{tpu_custom_call.1} parent=1 // pred_fallthru
      _
    // Predicated region
    $region90: #{tpu_custom_call.1} parent=1 // pred_check
      _
    $region91: #{tpu_custom_call.1} parent=1 // pred_check_branch
      %194 = sbr.rel (0) target = $region93
    $region92: #{tpu_custom_call.1} parent=1 // pred_region
      %195 = dma.done [#allocation19], 16384
    $region93: #{tpu_custom_call.1} parent=1 // pred_fallthru
      _
    // Predicated region
    $region94: #{tpu_custom_call.1} parent=1 // pred_check
      _
    $region95: #{tpu_custom_call.1} parent=1 // pred_check_branch
      %197 = sbr.rel (0) target = $region97
    $region96: #{tpu_custom_call.1} parent=1 // pred_region
      %198 = dma.done [#allocation19], 32
    $region97: #{tpu_custom_call.1} parent=1 // pred_fallthru
      _
    // Predicated region
    $region98: #{tpu_custom_call.1} parent=1 // pred_check
      _
    $region99: #{tpu_custom_call.1} parent=1 // pred_check_branch
      %200 = sbr.rel (0) target = $region101
    $region100: #{tpu_custom_call.1} parent=1 // pred_region
      %201 = dma.done [#allocation22], 32
    $region101: #{tpu_custom_call.1} parent=1 // pred_fallthru
      _
    // Predicated region
    $region102: #{tpu_custom_call.1} parent=1 // pred_check
      _
    $region103: #{tpu_custom_call.1} parent=1 // pred_check_branch
      %203 = sbr.rel (0) target = $region105
    $region104: #{tpu_custom_call.1} parent=1 // pred_region
      %204 = dma.done [#allocation22], 32
    $region105: #{tpu_custom_call.1} parent=1 // pred_fallthru
      _
    %v206 = vld [vmem:[#allocation3] sm:$0xff]
    %v207 = vld [vmem:[#allocation3 + $0x8] sm:$0xff]
    %v208 = vld [vmem:[#allocation3 + $0x10] sm:$0xff]
    %v209 = vld [vmem:[#allocation3 + $0x18] sm:$0xff]
    %v210 = vpack.c.bf16 %v208, %v206
    %v211 = vpack.c.bf16 %v209, %v207
    %v212 = vld [vmem:[#allocation6] sm:$0xff]
    %v213 = vld [vmem:[#allocation6 + $0x8] sm:$0xff]
    %v214 = vld [vmem:[#allocation6 + $0x10] sm:$0xff]
    %v215 = vld [vmem:[#allocation6 + $0x18] sm:$0xff]
    %v216 = vld [vmem:[#allocation6 + $0x20] sm:$0xff]
    %v217 = vld [vmem:[#allocation6 + $0x28] sm:$0xff]
    %v218 = vld [vmem:[#allocation6 + $0x30] sm:$0xff]
    %v219 = vld [vmem:[#allocation6 + $0x38] sm:$0xff]
    %v220 = vld [vmem:[#allocation6 + $0x40] sm:$0xff]
    %v221 = vld [vmem:[#allocation6 + $0x48] sm:$0xff]
    %v222 = vld [vmem:[#allocation6 + $0x50] sm:$0xff]
    %v223 = vld [vmem:[#allocation6 + $0x58] sm:$0xff]
    %v224 = vld [vmem:[#allocation6 + $0x60] sm:$0xff]
    %v225 = vld [vmem:[#allocation6 + $0x68] sm:$0xff]
    %v226 = vld [vmem:[#allocation6 + $0x70] sm:$0xff]
    %v227 = vld [vmem:[#allocation6 + $0x78] sm:$0xff]
    %v228 = vld [vmem:[#allocation6 + $0x80] sm:$0xff]
    %v229 = vld [vmem:[#allocation6 + $0x88] sm:$0xff]
    %v230 = vld [vmem:[#allocation6 + $0x90] sm:$0xff]
    %v231 = vld [vmem:[#allocation6 + $0x98] sm:$0xff]
    %v232 = vld [vmem:[#allocation6 + $0xa0] sm:$0xff]
    %v233 = vld [vmem:[#allocation6 + $0xa8] sm:$0xff]
    %v234 = vld [vmem:[#allocation6 + $0xb0] sm:$0xff]
    %v235 = vld [vmem:[#allocation6 + $0xb8] sm:$0xff]
    %v236 = vld [vmem:[#allocation6 + $0xc0] sm:$0xff]
    %v237 = vld [vmem:[#allocation6 + $0xc8] sm:$0xff]
    %v238 = vld [vmem:[#allocation6 + $0xd0] sm:$0xff]
    %v239 = vld [vmem:[#allocation6 + $0xd8] sm:$0xff]
    %v240 = vld [vmem:[#allocation6 + $0xe0] sm:$0xff]
    %v241 = vld [vmem:[#allocation6 + $0xe8] sm:$0xff]
    %v242 = vld [vmem:[#allocation6 + $0xf0] sm:$0xff]
    %v243 = vld [vmem:[#allocation6 + $0xf8] sm:$0xff]
    %v244 = vld [vmem:[#allocation6 + $0x100] sm:$0xff]
    %v245 = vld [vmem:[#allocation6 + $0x108] sm:$0xff]
    %v246 = vld [vmem:[#allocation6 + $0x110] sm:$0xff]
    %v247 = vld [vmem:[#allocation6 + $0x118] sm:$0xff]
    %v248 = vld [vmem:[#allocation6 + $0x120] sm:$0xff]
    %v249 = vld [vmem:[#allocation6 + $0x128] sm:$0xff]
    %v250 = vld [vmem:[#allocation6 + $0x130] sm:$0xff]
    %v251 = vld [vmem:[#allocation6 + $0x138] sm:$0xff]
    %v252 = vld [vmem:[#allocation6 + $0x140] sm:$0xff]
    %v253 = vld [vmem:[#allocation6 + $0x148] sm:$0xff]
    %v254 = vld [vmem:[#allocation6 + $0x150] sm:$0xff]
    %v255 = vld [vmem:[#allocation6 + $0x158] sm:$0xff]
    %v256 = vld [vmem:[#allocation6 + $0x160] sm:$0xff]
    %v257 = vld [vmem:[#allocation6 + $0x168] sm:$0xff]
    %v258 = vld [vmem:[#allocation6 + $0x170] sm:$0xff]
    %v259 = vld [vmem:[#allocation6 + $0x178] sm:$0xff]
    %v260 = vld [vmem:[#allocation6 + $0x180] sm:$0xff]
    %v261 = vld [vmem:[#allocation6 + $0x188] sm:$0xff]
    %v262 = vld [vmem:[#allocation6 + $0x190] sm:$0xff]
    %v263 = vld [vmem:[#allocation6 + $0x198] sm:$0xff]
    %v264 = vld [vmem:[#allocation6 + $0x1a0] sm:$0xff]
    %v265 = vld [vmem:[#allocation6 + $0x1a8] sm:$0xff]
    %v266 = vld [vmem:[#allocation6 + $0x1b0] sm:$0xff]
    %v267 = vld [vmem:[#allocation6 + $0x1b8] sm:$0xff]
    %v268 = vld [vmem:[#allocation6 + $0x1c0] sm:$0xff]
    %v269 = vld [vmem:[#allocation6 + $0x1c8] sm:$0xff]
    %v270 = vld [vmem:[#allocation6 + $0x1d0] sm:$0xff]
    %v271 = vld [vmem:[#allocation6 + $0x1d8] sm:$0xff]
    %v272 = vld [vmem:[#allocation6 + $0x1e0] sm:$0xff]
    %v273 = vld [vmem:[#allocation6 + $0x1e8] sm:$0xff]
    %v274 = vld [vmem:[#allocation6 + $0x1f0] sm:$0xff]
    %v275 = vld [vmem:[#allocation6 + $0x1f8] sm:$0xff]
    %v276 = vld [vmem:[#allocation6 + $0x200] sm:$0xff]
    %v277 = vld [vmem:[#allocation6 + $0x208] sm:$0xff]
    %v278 = vld [vmem:[#allocation6 + $0x210] sm:$0xff]
    %v279 = vld [vmem:[#allocation6 + $0x218] sm:$0xff]
    %v280 = vld [vmem:[#allocation6 + $0x220] sm:$0xff]
    %v281 = vld [vmem:[#allocation6 + $0x228] sm:$0xff]
    %v282 = vld [vmem:[#allocation6 + $0x230] sm:$0xff]
    %v283 = vld [vmem:[#allocation6 + $0x238] sm:$0xff]
    %v284 = vld [vmem:[#allocation6 + $0x240] sm:$0xff]
    %v285 = vld [vmem:[#allocation6 + $0x248] sm:$0xff]
    %v286 = vld [vmem:[#allocation6 + $0x250] sm:$0xff]
    %v287 = vld [vmem:[#allocation6 + $0x258] sm:$0xff]
    %v288 = vld [vmem:[#allocation6 + $0x260] sm:$0xff]
    %v289 = vld [vmem:[#allocation6 + $0x268] sm:$0xff]
    %v290 = vld [vmem:[#allocation6 + $0x270] sm:$0xff]
    %v291 = vld [vmem:[#allocation6 + $0x278] sm:$0xff]
    %v292 = vld [vmem:[#allocation6 + $0x280] sm:$0xff]
    %v293 = vld [vmem:[#allocation6 + $0x288] sm:$0xff]
    %v294 = vld [vmem:[#allocation6 + $0x290] sm:$0xff]
    %v295 = vld [vmem:[#allocation6 + $0x298] sm:$0xff]
    %v296 = vld [vmem:[#allocation6 + $0x2a0] sm:$0xff]
    %v297 = vld [vmem:[#allocation6 + $0x2a8] sm:$0xff]
    %v298 = vld [vmem:[#allocation6 + $0x2b0] sm:$0xff]
    %v299 = vld [vmem:[#allocation6 + $0x2b8] sm:$0xff]
    %v300 = vld [vmem:[#allocation6 + $0x2c0] sm:$0xff]
    %v301 = vld [vmem:[#allocation6 + $0x2c8] sm:$0xff]
    %v302 = vld [vmem:[#allocation6 + $0x2d0] sm:$0xff]
    %v303 = vld [vmem:[#allocation6 + $0x2d8] sm:$0xff]
    %v304 = vld [vmem:[#allocation6 + $0x2e0] sm:$0xff]
    %v305 = vld [vmem:[#allocation6 + $0x2e8] sm:$0xff]
    %v306 = vld [vmem:[#allocation6 + $0x2f0] sm:$0xff]
    %v307 = vld [vmem:[#allocation6 + $0x2f8] sm:$0xff]
    %v308 = vld [vmem:[#allocation8] sm:$0x3f]
    %v310 = vlaneseq
    %v311 = vshrl.u32 %v310, 7
    %v312 = vsub.s32 0, %v311
    %v313 = vrot.slane %v308, %v312
    %v314 = vlaneseq
    %v315 = vshrl.u32 %v314, 7
    %v316 = vsub.s32 1, %v315
    %v317 = vrot.slane %v308, %v316
    %v318 = vlaneseq
    %v319 = vshrl.u32 %v318, 7
    %v320 = vsub.s32 2, %v319
    %v321 = vrot.slane %v308, %v320
    %v322 = vlaneseq
    %v323 = vshrl.u32 %v322, 7
    %v324 = vsub.s32 3, %v323
    %v325 = vrot.slane %v308, %v324
    %v326 = vlaneseq
    %v327 = vshrl.u32 %v326, 7
    %v328 = vsub.s32 4, %v327
    %v329 = vrot.slane %v308, %v328
    %v330 = vlaneseq
    %v331 = vshrl.u32 %v330, 7
    %v332 = vsub.s32 5, %v331
    %v333 = vrot.slane %v308, %v332
    %v436 = vunpack.c.l.b16 %v212
    %v437 = vunpack.c.h.b16 %v212
    %v438 = vunpack.c.l.b16 %v213
    %v439 = vunpack.c.h.b16 %v213
    %v440 = vunpack.c.l.b16 %v214
    %v441 = vunpack.c.h.b16 %v214
    %v442 = vunpack.c.l.b16 %v215
    %v443 = vunpack.c.h.b16 %v215
    %v444 = vunpack.c.l.b16 %v216
    %v445 = vunpack.c.h.b16 %v216
    %v446 = vunpack.c.l.b16 %v217
    %v447 = vunpack.c.h.b16 %v217
    %v448 = vunpack.c.l.b16 %v218
    %v449 = vunpack.c.h.b16 %v218
    %v450 = vunpack.c.l.b16 %v219
    %v451 = vunpack.c.h.b16 %v219
    %v452 = vunpack.c.l.b16 %v220
    %v453 = vunpack.c.h.b16 %v220
    %v454 = vunpack.c.l.b16 %v221
    %v455 = vunpack.c.h.b16 %v221
    %v456 = vunpack.c.l.b16 %v222
    %v457 = vunpack.c.h.b16 %v222
    %v458 = vunpack.c.l.b16 %v223
    %v459 = vunpack.c.h.b16 %v223
    %v460 = vunpack.c.l.b16 %v224
    %v461 = vunpack.c.h.b16 %v224
    %v462 = vunpack.c.l.b16 %v225
    %v463 = vunpack.c.h.b16 %v225
    %v464 = vunpack.c.l.b16 %v226
    %v465 = vunpack.c.h.b16 %v226
    %v466 = vunpack.c.l.b16 %v227
    %v467 = vunpack.c.h.b16 %v227
    %v468 = vunpack.c.l.b16 %v228
    %v469 = vunpack.c.h.b16 %v228
    %v470 = vunpack.c.l.b16 %v229
    %v471 = vunpack.c.h.b16 %v229
    %v472 = vunpack.c.l.b16 %v230
    %v473 = vunpack.c.h.b16 %v230
    %v474 = vunpack.c.l.b16 %v231
    %v475 = vunpack.c.h.b16 %v231
    %v476 = vunpack.c.l.b16 %v232
    %v477 = vunpack.c.h.b16 %v232
    %v478 = vunpack.c.l.b16 %v233
    %v479 = vunpack.c.h.b16 %v233
    %v480 = vunpack.c.l.b16 %v234
    %v481 = vunpack.c.h.b16 %v234
    %v482 = vunpack.c.l.b16 %v235
    %v483 = vunpack.c.h.b16 %v235
    %v484 = vunpack.c.l.b16 %v236
    %v485 = vunpack.c.h.b16 %v236
    %v486 = vunpack.c.l.b16 %v237
    %v487 = vunpack.c.h.b16 %v237
    %v488 = vunpack.c.l.b16 %v238
    %v489 = vunpack.c.h.b16 %v238
    %v490 = vunpack.c.l.b16 %v239
    %v491 = vunpack.c.h.b16 %v239
    %v492 = vunpack.c.l.b16 %v240
    %v493 = vunpack.c.h.b16 %v240
    %v494 = vunpack.c.l.b16 %v241
    %v495 = vunpack.c.h.b16 %v241
    %v496 = vunpack.c.l.b16 %v242
    %v497 = vunpack.c.h.b16 %v242
    %v498 = vunpack.c.l.b16 %v243
    %v499 = vunpack.c.h.b16 %v243
    %v500 = vunpack.c.l.b16 %v244
    %v501 = vunpack.c.h.b16 %v244
    %v502 = vunpack.c.l.b16 %v245
    %v503 = vunpack.c.h.b16 %v245
    %v504 = vunpack.c.l.b16 %v246
    %v505 = vunpack.c.h.b16 %v246
    %v506 = vunpack.c.l.b16 %v247
    %v507 = vunpack.c.h.b16 %v247
    %v508 = vunpack.c.l.b16 %v248
    %v509 = vunpack.c.h.b16 %v248
    %v510 = vunpack.c.l.b16 %v249
    %v511 = vunpack.c.h.b16 %v249
    %v512 = vunpack.c.l.b16 %v250
    %v513 = vunpack.c.h.b16 %v250
    %v514 = vunpack.c.l.b16 %v251
    %v515 = vunpack.c.h.b16 %v251
    %v516 = vunpack.c.l.b16 %v252
    %v517 = vunpack.c.h.b16 %v252
    %v518 = vunpack.c.l.b16 %v253
    %v519 = vunpack.c.h.b16 %v253
    %v520 = vunpack.c.l.b16 %v254
    %v521 = vunpack.c.h.b16 %v254
    %v522 = vunpack.c.l.b16 %v255
    %v523 = vunpack.c.h.b16 %v255
    %v524 = vunpack.c.l.b16 %v256
    %v525 = vunpack.c.h.b16 %v256
    %v526 = vunpack.c.l.b16 %v257
    %v527 = vunpack.c.h.b16 %v257
    %v528 = vunpack.c.l.b16 %v258
    %v529 = vunpack.c.h.b16 %v258
    %v530 = vunpack.c.l.b16 %v259
    %v531 = vunpack.c.h.b16 %v259
    %v532 = vunpack.c.l.b16 %v260
    %v533 = vunpack.c.h.b16 %v260
    %v534 = vunpack.c.l.b16 %v261
    %v535 = vunpack.c.h.b16 %v261
    %v536 = vunpack.c.l.b16 %v262
    %v537 = vunpack.c.h.b16 %v262
    %v538 = vunpack.c.l.b16 %v263
    %v539 = vunpack.c.h.b16 %v263
    %v540 = vunpack.c.l.b16 %v264
    %v541 = vunpack.c.h.b16 %v264
    %v542 = vunpack.c.l.b16 %v265
    %v543 = vunpack.c.h.b16 %v265
    %v544 = vunpack.c.l.b16 %v266
    %v545 = vunpack.c.h.b16 %v266
    %v546 = vunpack.c.l.b16 %v267
    %v547 = vunpack.c.h.b16 %v267
    %v548 = vunpack.c.l.b16 %v268
    %v549 = vunpack.c.h.b16 %v268
    %v550 = vunpack.c.l.b16 %v269
    %v551 = vunpack.c.h.b16 %v269
    %v552 = vunpack.c.l.b16 %v270
    %v553 = vunpack.c.h.b16 %v270
    %v554 = vunpack.c.l.b16 %v271
    %v555 = vunpack.c.h.b16 %v271
    %v556 = vunpack.c.l.b16 %v272
    %v557 = vunpack.c.h.b16 %v272
    %v558 = vunpack.c.l.b16 %v273
    %v559 = vunpack.c.h.b16 %v273
    %v560 = vunpack.c.l.b16 %v274
    %v561 = vunpack.c.h.b16 %v274
    %v562 = vunpack.c.l.b16 %v275
    %v563 = vunpack.c.h.b16 %v275
    %v564 = vunpack.c.l.b16 %v276
    %v565 = vunpack.c.h.b16 %v276
    %v566 = vunpack.c.l.b16 %v277
    %v567 = vunpack.c.h.b16 %v277
    %v568 = vunpack.c.l.b16 %v278
    %v569 = vunpack.c.h.b16 %v278
    %v570 = vunpack.c.l.b16 %v279
    %v571 = vunpack.c.h.b16 %v279
    %v572 = vunpack.c.l.b16 %v280
    %v573 = vunpack.c.h.b16 %v280
    %v574 = vunpack.c.l.b16 %v281
    %v575 = vunpack.c.h.b16 %v281
    %v576 = vunpack.c.l.b16 %v282
    %v577 = vunpack.c.h.b16 %v282
    %v578 = vunpack.c.l.b16 %v283
    %v579 = vunpack.c.h.b16 %v283
    %v580 = vunpack.c.l.b16 %v284
    %v581 = vunpack.c.h.b16 %v284
    %v582 = vunpack.c.l.b16 %v285
    %v583 = vunpack.c.h.b16 %v285
    %v584 = vunpack.c.l.b16 %v286
    %v585 = vunpack.c.h.b16 %v286
    %v586 = vunpack.c.l.b16 %v287
    %v587 = vunpack.c.h.b16 %v287
    %v588 = vunpack.c.l.b16 %v288
    %v589 = vunpack.c.h.b16 %v288
    %v590 = vunpack.c.l.b16 %v289
    %v591 = vunpack.c.h.b16 %v289
    %v592 = vunpack.c.l.b16 %v290
    %v593 = vunpack.c.h.b16 %v290
    %v594 = vunpack.c.l.b16 %v291
    %v595 = vunpack.c.h.b16 %v291
    %v596 = vunpack.c.l.b16 %v292
    %v597 = vunpack.c.h.b16 %v292
    %v598 = vunpack.c.l.b16 %v293
    %v599 = vunpack.c.h.b16 %v293
    %v600 = vunpack.c.l.b16 %v294
    %v601 = vunpack.c.h.b16 %v294
    %v602 = vunpack.c.l.b16 %v295
    %v603 = vunpack.c.h.b16 %v295
    %v604 = vunpack.c.l.b16 %v296
    %v605 = vunpack.c.h.b16 %v296
    %v606 = vunpack.c.l.b16 %v297
    %v607 = vunpack.c.h.b16 %v297
    %v608 = vunpack.c.l.b16 %v298
    %v609 = vunpack.c.h.b16 %v298
    %v610 = vunpack.c.l.b16 %v299
    %v611 = vunpack.c.h.b16 %v299
    %v612 = vunpack.c.l.b16 %v300
    %v613 = vunpack.c.h.b16 %v300
    %v614 = vunpack.c.l.b16 %v301
    %v615 = vunpack.c.h.b16 %v301
    %v616 = vunpack.c.l.b16 %v302
    %v617 = vunpack.c.h.b16 %v302
    %v618 = vunpack.c.l.b16 %v303
    %v619 = vunpack.c.h.b16 %v303
    %v620 = vunpack.c.l.b16 %v304
    %v621 = vunpack.c.h.b16 %v304
    %v622 = vunpack.c.l.b16 %v305
    %v623 = vunpack.c.h.b16 %v305
    %v624 = vunpack.c.l.b16 %v306
    %v625 = vunpack.c.h.b16 %v306
    %v626 = vunpack.c.l.b16 %v307
    %v627 = vunpack.c.h.b16 %v307
    %v628 = vpack.c.b16 %v442, %v436
    %v629 = vpack.c.b16 %v443, %v437
    %v630 = vpack.c.b16 %v444, %v438
    %v631 = vpack.c.b16 %v445, %v439
    %v632 = vpack.c.b16 %v446, %v440
    %v633 = vpack.c.b16 %v447, %v441
    %v634 = vpack.c.b16 %v454, %v448
    %v635 = vpack.c.b16 %v455, %v449
    %v636 = vpack.c.b16 %v456, %v450
    %v637 = vpack.c.b16 %v457, %v451
    %v638 = vpack.c.b16 %v458, %v452
    %v639 = vpack.c.b16 %v459, %v453
    %v640 = vpack.c.b16 %v466, %v460
    %v641 = vpack.c.b16 %v467, %v461
    %v642 = vpack.c.b16 %v468, %v462
    %v643 = vpack.c.b16 %v469, %v463
    %v644 = vpack.c.b16 %v470, %v464
    %v645 = vpack.c.b16 %v471, %v465
    %v646 = vpack.c.b16 %v478, %v472
    %v647 = vpack.c.b16 %v479, %v473
    %v648 = vpack.c.b16 %v480, %v474
    %v649 = vpack.c.b16 %v481, %v475
    %v650 = vpack.c.b16 %v482, %v476
    %v651 = vpack.c.b16 %v483, %v477
    %v652 = vpack.c.b16 %v490, %v484
    %v653 = vpack.c.b16 %v491, %v485
    %v654 = vpack.c.b16 %v492, %v486
    %v655 = vpack.c.b16 %v493, %v487
    %v656 = vpack.c.b16 %v494, %v488
    %v657 = vpack.c.b16 %v495, %v489
    %v658 = vpack.c.b16 %v502, %v496
    %v659 = vpack.c.b16 %v503, %v497
    %v660 = vpack.c.b16 %v504, %v498
    %v661 = vpack.c.b16 %v505, %v499
    %v662 = vpack.c.b16 %v506, %v500
    %v663 = vpack.c.b16 %v507, %v501
    %v664 = vpack.c.b16 %v514, %v508
    %v665 = vpack.c.b16 %v515, %v509
    %v666 = vpack.c.b16 %v516, %v510
    %v667 = vpack.c.b16 %v517, %v511
    %v668 = vpack.c.b16 %v518, %v512
    %v669 = vpack.c.b16 %v519, %v513
    %v670 = vpack.c.b16 %v526, %v520
    %v671 = vpack.c.b16 %v527, %v521
    %v672 = vpack.c.b16 %v528, %v522
    %v673 = vpack.c.b16 %v529, %v523
    %v674 = vpack.c.b16 %v530, %v524
    %v675 = vpack.c.b16 %v531, %v525
    %v676 = vpack.c.b16 %v538, %v532
    %v677 = vpack.c.b16 %v539, %v533
    %v678 = vpack.c.b16 %v540, %v534
    %v679 = vpack.c.b16 %v541, %v535
    %v680 = vpack.c.b16 %v542, %v536
    %v681 = vpack.c.b16 %v543, %v537
    %v682 = vpack.c.b16 %v550, %v544
    %v683 = vpack.c.b16 %v551, %v545
    %v684 = vpack.c.b16 %v552, %v546
    %v685 = vpack.c.b16 %v553, %v547
    %v686 = vpack.c.b16 %v554, %v548
    %v687 = vpack.c.b16 %v555, %v549
    %v688 = vpack.c.b16 %v562, %v556
    %v689 = vpack.c.b16 %v563, %v557
    %v690 = vpack.c.b16 %v564, %v558
    %v691 = vpack.c.b16 %v565, %v559
    %v692 = vpack.c.b16 %v566, %v560
    %v693 = vpack.c.b16 %v567, %v561
    %v694 = vpack.c.b16 %v574, %v568
    %v695 = vpack.c.b16 %v575, %v569
    %v696 = vpack.c.b16 %v576, %v570
    %v697 = vpack.c.b16 %v577, %v571
    %v698 = vpack.c.b16 %v578, %v572
    %v699 = vpack.c.b16 %v579, %v573
    %v700 = vpack.c.b16 %v586, %v580
    %v701 = vpack.c.b16 %v587, %v581
    %v702 = vpack.c.b16 %v588, %v582
    %v703 = vpack.c.b16 %v589, %v583
    %v704 = vpack.c.b16 %v590, %v584
    %v705 = vpack.c.b16 %v591, %v585
    %v706 = vpack.c.b16 %v598, %v592
    %v707 = vpack.c.b16 %v599, %v593
    %v708 = vpack.c.b16 %v600, %v594
    %v709 = vpack.c.b16 %v601, %v595
    %v710 = vpack.c.b16 %v602, %v596
    %v711 = vpack.c.b16 %v603, %v597
    %v712 = vpack.c.b16 %v610, %v604
    %v713 = vpack.c.b16 %v611, %v605
    %v714 = vpack.c.b16 %v612, %v606
    %v715 = vpack.c.b16 %v613, %v607
    %v716 = vpack.c.b16 %v614, %v608
    %v717 = vpack.c.b16 %v615, %v609
    %v718 = vpack.c.b16 %v622, %v616
    %v719 = vpack.c.b16 %v623, %v617
    %v720 = vpack.c.b16 %v624, %v618
    %v721 = vpack.c.b16 %v625, %v619
    %v722 = vpack.c.b16 %v626, %v620
    %v723 = vpack.c.b16 %v627, %v621
    %820 = vmatprep.subr.bf16.mxu0 %v629
    %821 = vmatpush1.bf16.msra.mxu0 %v628
    %822 = vmatprep.subr.bf16.mxu0 %v635
    %823 = vmatpush1.bf16.msra.mxu0 %v634
    %824 = vmatprep.subr.bf16.mxu0 %v641
    %825 = vmatpush1.bf16.msra.mxu0 %v640
    %826 = vmatprep.subr.bf16.mxu0 %v647
    %827 = vmatpush1.bf16.msra.mxu0 %v646
    %828 = vmatprep.subr.bf16.mxu0 %v653
    %829 = vmatpush1.bf16.msra.mxu0 %v652
    %830 = vmatprep.subr.bf16.mxu0 %v659
    %831 = vmatpush1.bf16.msra.mxu0 %v658
    %832 = vmatprep.subr.bf16.mxu0 %v665
    %833 = vmatpush1.bf16.msra.mxu0 %v664
    %834 = vmatprep.subr.bf16.mxu0 %v671
    %835 = vmatpush1.bf16.msra.mxu0 %v670
    %836 = vmatprep.subr.bf16.mxu0 %v677
    %837 = vmatpush1.bf16.msra.mxu0 %v676
    %838 = vmatprep.subr.bf16.mxu0 %v683
    %839 = vmatpush1.bf16.msra.mxu0 %v682
    %840 = vmatprep.subr.bf16.mxu0 %v689
    %841 = vmatpush1.bf16.msra.mxu0 %v688
    %842 = vmatprep.subr.bf16.mxu0 %v695
    %843 = vmatpush1.bf16.msra.mxu0 %v694
    %844 = vmatprep.subr.bf16.mxu0 %v701
    %845 = vmatpush1.bf16.msra.mxu0 %v700
    %846 = vmatprep.subr.bf16.mxu0 %v707
    %847 = vmatpush1.bf16.msra.mxu0 %v706
    %848 = vmatprep.subr.bf16.mxu0 %v713
    %849 = vmatpush1.bf16.msra.mxu0 %v712
    %850 = vmatprep.subr.bf16.mxu0 %v719
    %851 = vmatpush1.bf16.msra.mxu0 %v718
    %852 = vmatprep.mubr.bf16.mxu0 %v211
    %853 = vmatmul.mubr.bf16.gmra.mrb[0].mxu0 %v210
    %v854 = vpop.f32.mrb[0].mxu0
    %v855 = vadd.f32 %v313, %v854
    %v856 = vpop.f32.mrb[0].mxu0
    %v857 = vadd.f32 %v317, %v856
    %v858 = vpop.f32.mrb[0].mxu0
    %v859 = vadd.f32 %v313, %v858
    %v860 = vpop.f32.mrb[0].mxu0
    %v861 = vadd.f32 %v317, %v860
    %862 = vdwg.mxu0
    %863 = vmatprep.subr.bf16.mxu0 %v631
    %864 = vmatpush1.bf16.msra.mxu0 %v630
    %865 = vmatprep.subr.bf16.mxu0 %v637
    %866 = vmatpush1.bf16.msra.mxu0 %v636
    %867 = vmatprep.subr.bf16.mxu0 %v643
    %868 = vmatpush1.bf16.msra.mxu0 %v642
    %869 = vmatprep.subr.bf16.mxu0 %v649
    %870 = vmatpush1.bf16.msra.mxu0 %v648
    %871 = vmatprep.subr.bf16.mxu0 %v655
    %872 = vmatpush1.bf16.msra.mxu0 %v654
    %873 = vmatprep.subr.bf16.mxu0 %v661
    %874 = vmatpush1.bf16.msra.mxu0 %v660
    %875 = vmatprep.subr.bf16.mxu0 %v667
    %876 = vmatpush1.bf16.msra.mxu0 %v666
    %877 = vmatprep.subr.bf16.mxu0 %v673
    %878 = vmatpush1.bf16.msra.mxu0 %v672
    %879 = vmatprep.subr.bf16.mxu0 %v679
    %880 = vmatpush1.bf16.msra.mxu0 %v678
    %881 = vmatprep.subr.bf16.mxu0 %v685
    %882 = vmatpush1.bf16.msra.mxu0 %v684
    %883 = vmatprep.subr.bf16.mxu0 %v691
    %884 = vmatpush1.bf16.msra.mxu0 %v690
    %885 = vmatprep.subr.bf16.mxu0 %v697
    %886 = vmatpush1.bf16.msra.mxu0 %v696
    %887 = vmatprep.subr.bf16.mxu0 %v703
    %888 = vmatpush1.bf16.msra.mxu0 %v702
    %889 = vmatprep.subr.bf16.mxu0 %v709
    %890 = vmatpush1.bf16.msra.mxu0 %v708
    %891 = vmatprep.subr.bf16.mxu0 %v715
    %892 = vmatpush1.bf16.msra.mxu0 %v714
    %893 = vmatprep.subr.bf16.mxu0 %v721
    %894 = vmatpush1.bf16.msra.mxu0 %v720
    %895 = vmatprep.mubr.bf16.mxu0 %v211
    %896 = vmatmul.mubr.bf16.gmra.mrb[0].mxu0 %v210
    %v897 = vpop.f32.mrb[0].mxu0
    %v898 = vadd.f32 %v321, %v897
    %v899 = vpop.f32.mrb[0].mxu0
    %v900 = vadd.f32 %v325, %v899
    %v901 = vpop.f32.mrb[0].mxu0
    %v902 = vadd.f32 %v321, %v901
    %v903 = vpop.f32.mrb[0].mxu0
    %v904 = vadd.f32 %v325, %v903
    %905 = vdwg.mxu0
    %906 = vmatprep.subr.bf16.mxu0 %v633
    %907 = vmatpush1.bf16.msra.mxu0 %v632
    %908 = vmatprep.subr.bf16.mxu0 %v639
    %909 = vmatpush1.bf16.msra.mxu0 %v638
    %910 = vmatprep.subr.bf16.mxu0 %v645
    %911 = vmatpush1.bf16.msra.mxu0 %v644
    %912 = vmatprep.subr.bf16.mxu0 %v651
    %913 = vmatpush1.bf16.msra.mxu0 %v650
    %914 = vmatprep.subr.bf16.mxu0 %v657
    %915 = vmatpush1.bf16.msra.mxu0 %v656
    %916 = vmatprep.subr.bf16.mxu0 %v663
    %917 = vmatpush1.bf16.msra.mxu0 %v662
    %918 = vmatprep.subr.bf16.mxu0 %v669
    %919 = vmatpush1.bf16.msra.mxu0 %v668
    %920 = vmatprep.subr.bf16.mxu0 %v675
    %921 = vmatpush1.bf16.msra.mxu0 %v674
    %922 = vmatprep.subr.bf16.mxu0 %v681
    %923 = vmatpush1.bf16.msra.mxu0 %v680
    %924 = vmatprep.subr.bf16.mxu0 %v687
    %925 = vmatpush1.bf16.msra.mxu0 %v686
    %926 = vmatprep.subr.bf16.mxu0 %v693
    %927 = vmatpush1.bf16.msra.mxu0 %v692
    %928 = vmatprep.subr.bf16.mxu0 %v699
    %929 = vmatpush1.bf16.msra.mxu0 %v698
    %930 = vmatprep.subr.bf16.mxu0 %v705
    %931 = vmatpush1.bf16.msra.mxu0 %v704
    %932 = vmatprep.subr.bf16.mxu0 %v711
    %933 = vmatpush1.bf16.msra.mxu0 %v710
    %934 = vmatprep.subr.bf16.mxu0 %v717
    %935 = vmatpush1.bf16.msra.mxu0 %v716
    %936 = vmatprep.subr.bf16.mxu0 %v723
    %937 = vmatpush1.bf16.msra.mxu0 %v722
    %938 = vmatprep.mubr.bf16.mxu0 %v211
    %939 = vmatmul.mubr.bf16.gmra.mrb[0].mxu0 %v210
    %v940 = vpop.f32.mrb[0].mxu0
    %v941 = vadd.f32 %v329, %v940
    %v942 = vpop.f32.mrb[0].mxu0
    %v943 = vadd.f32 %v333, %v942
    %v944 = vpop.f32.mrb[0].mxu0
    %v945 = vadd.f32 %v329, %v944
    %v946 = vpop.f32.mrb[0].mxu0
    %v947 = vadd.f32 %v333, %v946
    %948 = vdwg.mxu0
    %v949 = vpack.c.bf16 %v859, %v855
    %v950 = vpack.c.bf16 %v861, %v857
    %v951 = vpack.c.bf16 %v902, %v898
    %v952 = vpack.c.bf16 %v904, %v900
    %v953 = vpack.c.bf16 %v945, %v941
    %v954 = vpack.c.bf16 %v947, %v943
    %vm955 = vcmask 261120
    %v957 = vsel %vm955, %v949, 0
    %v960 = vsel %vm955, %v951, 0
    %962 = vmatprep.subr.bf16.mxu0 0
    %963 = vmatpush1.bf16.xpose.msra.mxu0 %v960
    %964 = vmatprep.subr.bf16.mxu0 0
    %965 = vmatpush1.bf16.xpose.msra.mxu0 0
    %966 = vmatprep.subr.bf16.mxu0 0
    %967 = vmatpush1.bf16.xpose.msra.mxu0 0
    %968 = vmatprep.subr.bf16.mxu0 0
    %969 = vmatpush1.bf16.xpose.msra.mxu0 0
    %970 = vmatprep.subr.bf16.mxu0 0
    %971 = vmatpush1.bf16.xpose.msra.mxu0 0
    %972 = vmatprep.subr.bf16.mxu0 0
    %973 = vmatpush1.bf16.xpose.msra.mxu0 0
    %974 = vmatprep.subr.bf16.mxu0 0
    %975 = vmatpush1.bf16.xpose.msra.mxu0 0
    %976 = vmatprep.subr.bf16.mxu0 0
    %977 = vmatpush1.bf16.xpose.msra.mxu0 0
    %978 = vmatprep.subr.bf16.mxu0 0
    %979 = vmatpush1.bf16.xpose.msra.mxu0 0
    %980 = vmatprep.subr.bf16.mxu0 0
    %981 = vmatpush1.bf16.xpose.msra.mxu0 0
    %982 = vmatprep.subr.bf16.mxu0 0
    %983 = vmatpush1.bf16.xpose.msra.mxu0 0
    %984 = vmatprep.subr.bf16.mxu0 0
    %985 = vmatpush1.bf16.xpose.msra.mxu0 0
    %986 = vmatprep.subr.bf16.mxu0 0
    %987 = vmatpush1.bf16.xpose.msra.mxu0 0
    %988 = vmatprep.subr.bf16.mxu0 0
    %989 = vmatpush1.bf16.xpose.msra.mxu0 0
    %990 = vmatprep.subr.bf16.mxu0 0
    %991 = vmatpush1.bf16.xpose.msra.mxu0 0
    %992 = vmatprep.subr.bf16.mxu0 0
    %993 = vmatpush1.bf16.xpose.msra.mxu0 0
    %994 = vmatprep.mubr.bf16.mxu0 0
    %995 = vmatmul.mubr.bf16.gmra.mrb[0].mxu0 %v957
    %v996 = vpop.f32.mrb[0].mxu0
    %v997 = vadd.f32 0.0, %v996
    %v998 = vpop.f32.mrb[0].mxu0
    %v999 = vpop.f32.mrb[0].mxu0
    %v1000 = vpop.f32.mrb[0].mxu0
    %1001 = vdwg.mxu0
    %v1002 = vmul.f32 %v997, 0.17677669
    %vm1003 = vcmask 64512
    %v1004 = vsel %vm1003, %v1002, -inf
    %1005 = vmax.xlane.f32.xlu0 %v1004
    %v1006 = vpop.xlane.xlu0 %1005
    %v1007 = vsub.f32 %v1002, %v1006
    %v1008 = vmul.f32 %v1007, 1.442695
    %v1009 = vpow.pop %v1008
    %v1010 = vsel %vm1003, %v1009, 0.0
    %1011 = vadd.xlane.f32.xlu0 %v1010
    %v1012 = vpop.xlane.xlu0 %1011
    %v1013 = vrcp.pop %v1012
    %v1014 = vmul.f32 %v1009, %v1013
    %v1015 = vpack.c.bf16 %v1014, %v1014
    %v1017 = vsel %vm1003, %v1015, 0
    %vm1019 = vcmask 1043456
    %v1021 = vsel %vm1019, %v953, 0
    %1023 = vmatprep.subr.bf16.mxu0 0
    %1024 = vmatpush1.bf16.msra.mxu0 %v1021
    %1025 = vmatprep.subr.bf16.mxu0 0
    %1026 = vmatpush1.bf16.msra.mxu0 0
    %1027 = vmatprep.subr.bf16.mxu0 0
    %1028 = vmatpush1.bf16.msra.mxu0 0
    %1029 = vmatprep.subr.bf16.mxu0 0
    %1030 = vmatpush1.bf16.msra.mxu0 0
    %1031 = vmatprep.subr.bf16.mxu0 0
    %1032 = vmatpush1.bf16.msra.mxu0 0
    %1033 = vmatprep.subr.bf16.mxu0 0
    %1034 = vmatpush1.bf16.msra.mxu0 0
    %1035 = vmatprep.subr.bf16.mxu0 0
    %1036 = vmatpush1.bf16.msra.mxu0 0
    %1037 = vmatprep.subr.bf16.mxu0 0
    %1038 = vmatpush1.bf16.msra.mxu0 0
    %1039 = vmatprep.subr.bf16.mxu0 0
    %1040 = vmatpush1.bf16.msra.mxu0 0
    %1041 = vmatprep.subr.bf16.mxu0 0
    %1042 = vmatpush1.bf16.msra.mxu0 0
    %1043 = vmatprep.subr.bf16.mxu0 0
    %1044 = vmatpush1.bf16.msra.mxu0 0
    %1045 = vmatprep.subr.bf16.mxu0 0
    %1046 = vmatpush1.bf16.msra.mxu0 0
    %1047 = vmatprep.subr.bf16.mxu0 0
    %1048 = vmatpush1.bf16.msra.mxu0 0
    %1049 = vmatprep.subr.bf16.mxu0 0
    %1050 = vmatpush1.bf16.msra.mxu0 0
    %1051 = vmatprep.subr.bf16.mxu0 0
    %1052 = vmatpush1.bf16.msra.mxu0 0
    %1053 = vmatprep.subr.bf16.mxu0 0
    %1054 = vmatpush1.bf16.msra.mxu0 0
    %1055 = vmatprep.mubr.bf16.mxu0 0
    %1056 = vmatmul.mubr.bf16.gmra.mrb[0].mxu0 %v1017
    %v1057 = vpop.f32.mrb[0].mxu0
    %v1058 = vadd.f32 0.0, %v1057
    %v1059 = vpop.f32.mrb[0].mxu0
    %v1060 = vpop.f32.mrb[0].mxu0
    %v1061 = vpop.f32.mrb[0].mxu0
    %1062 = vdwg.mxu0
    %1063 = vst.msk [vmem:[#allocation2] sm:$0xff] %vm955, %v1058
    %1065 = vrot.lane.b32.xlu0 %v949, 96
    %v1066 = vpop.permute.xlu0 %1065
    %1068 = vrot.lane.b32.xlu0 %v951, 96
    %v1069 = vpop.permute.xlu0 %1068
    %v1071 = vsel %vm955, %v1066, 0
    %v1074 = vsel %vm955, %v1069, 0
    %1076 = vmatprep.subr.bf16.mxu0 0
    %1077 = vmatpush1.bf16.xpose.msra.mxu0 %v1074
    %1078 = vmatprep.subr.bf16.mxu0 0
    %1079 = vmatpush1.bf16.xpose.msra.mxu0 0
    %1080 = vmatprep.subr.bf16.mxu0 0
    %1081 = vmatpush1.bf16.xpose.msra.mxu0 0
    %1082 = vmatprep.subr.bf16.mxu0 0
    %1083 = vmatpush1.bf16.xpose.msra.mxu0 0
    %1084 = vmatprep.subr.bf16.mxu0 0
    %1085 = vmatpush1.bf16.xpose.msra.mxu0 0
    %1086 = vmatprep.subr.bf16.mxu0 0
    %1087 = vmatpush1.bf16.xpose.msra.mxu0 0
    %1088 = vmatprep.subr.bf16.mxu0 0
    %1089 = vmatpush1.bf16.xpose.msra.mxu0 0
    %1090 = vmatprep.subr.bf16.mxu0 0
    %1091 = vmatpush1.bf16.xpose.msra.mxu0 0
    %1092 = vmatprep.subr.bf16.mxu0 0
    %1093 = vmatpush1.bf16.xpose.msra.mxu0 0
    %1094 = vmatprep.subr.bf16.mxu0 0
    %1095 = vmatpush1.bf16.xpose.msra.mxu0 0
    %1096 = vmatprep.subr.bf16.mxu0 0
    %1097 = vmatpush1.bf16.xpose.msra.mxu0 0
    %1098 = vmatprep.subr.bf16.mxu0 0
    %1099 = vmatpush1.bf16.xpose.msra.mxu0 0
    %1100 = vmatprep.subr.bf16.mxu0 0
    %1101 = vmatpush1.bf16.xpose.msra.mxu0 0
    %1102 = vmatprep.subr.bf16.mxu0 0
    %1103 = vmatpush1.bf16.xpose.msra.mxu0 0
    %1104 = vmatprep.subr.bf16.mxu0 0
    %1105 = vmatpush1.bf16.xpose.msra.mxu0 0
    %1106 = vmatprep.subr.bf16.mxu0 0
    %1107 = vmatpush1.bf16.xpose.msra.mxu0 0
    %1108 = vmatprep.mubr.bf16.mxu0 0
    %1109 = vmatmul.mubr.bf16.gmra.mrb[0].mxu0 %v1071
    %v1110 = vpop.f32.mrb[0].mxu0
    %v1111 = vadd.f32 0.0, %v1110
    %v1112 = vpop.f32.mrb[0].mxu0
    %v1113 = vpop.f32.mrb[0].mxu0
    %v1114 = vpop.f32.mrb[0].mxu0
    %1115 = vdwg.mxu0
    %v1116 = vmul.f32 %v1111, 0.17677669
    %v1117 = vsel %vm1003, %v1116, -inf
    %1118 = vmax.xlane.f32.xlu0 %v1117
    %v1119 = vpop.xlane.xlu0 %1118
    %v1120 = vsub.f32 %v1116, %v1119
    %v1121 = vmul.f32 %v1120, 1.442695
    %v1122 = vpow.pop %v1121
    %v1123 = vsel %vm1003, %v1122, 0.0
    %1124 = vadd.xlane.f32.xlu0 %v1123
    %v1125 = vpop.xlane.xlu0 %1124
    %v1126 = vrcp.pop %v1125
    %v1127 = vmul.f32 %v1122, %v1126
    %v1128 = vpack.c.bf16 %v1127, %v1127
    %1130 = vrot.lane.b32.xlu0 %v953, 96
    %v1131 = vpop.permute.xlu0 %1130
    %v1133 = vsel %vm1003, %v1128, 0
    %v1136 = vsel %vm1019, %v1131, 0
    %1138 = vmatprep.subr.bf16.mxu0 0
    %1139 = vmatpush1.bf16.msra.mxu0 %v1136
    %1140 = vmatprep.subr.bf16.mxu0 0
    %1141 = vmatpush1.bf16.msra.mxu0 0
    %1142 = vmatprep.subr.bf16.mxu0 0
    %1143 = vmatpush1.bf16.msra.mxu0 0
    %1144 = vmatprep.subr.bf16.mxu0 0
    %1145 = vmatpush1.bf16.msra.mxu0 0
    %1146 = vmatprep.subr.bf16.mxu0 0
    %1147 = vmatpush1.bf16.msra.mxu0 0
    %1148 = vmatprep.subr.bf16.mxu0 0
    %1149 = vmatpush1.bf16.msra.mxu0 0
    %1150 = vmatprep.subr.bf16.mxu0 0
    %1151 = vmatpush1.bf16.msra.mxu0 0
    %1152 = vmatprep.subr.bf16.mxu0 0
    %1153 = vmatpush1.bf16.msra.mxu0 0
    %1154 = vmatprep.subr.bf16.mxu0 0
    %1155 = vmatpush1.bf16.msra.mxu0 0
    %1156 = vmatprep.subr.bf16.mxu0 0
    %1157 = vmatpush1.bf16.msra.mxu0 0
    %1158 = vmatprep.subr.bf16.mxu0 0
    %1159 = vmatpush1.bf16.msra.mxu0 0
    %1160 = vmatprep.subr.bf16.mxu0 0
    %1161 = vmatpush1.bf16.msra.mxu0 0
    %1162 = vmatprep.subr.bf16.mxu0 0
    %1163 = vmatpush1.bf16.msra.mxu0 0
    %1164 = vmatprep.subr.bf16.mxu0 0
    %1165 = vmatpush1.bf16.msra.mxu0 0
    %1166 = vmatprep.subr.bf16.mxu0 0
    %1167 = vmatpush1.bf16.msra.mxu0 0
    %1168 = vmatprep.subr.bf16.mxu0 0
    %1169 = vmatpush1.bf16.msra.mxu0 0
    %1170 = vmatprep.mubr.bf16.mxu0 0
    %1171 = vmatmul.mubr.bf16.gmra.mrb[0].mxu0 %v1133
    %v1172 = vpop.f32.mrb[0].mxu0
    %v1173 = vadd.f32 0.0, %v1172
    %v1174 = vpop.f32.mrb[0].mxu0
    %v1175 = vpop.f32.mrb[0].mxu0
    %v1176 = vpop.f32.mrb[0].mxu0
    %1177 = vdwg.mxu0
    %1179 = vrot.lane.b32.xlu0 %v1173, 32
    %v1180 = vpop.permute.xlu0 %1179
    %vm1182 = vcmask 523520
    %1183 = vst.msk [vmem:[#allocation2] sm:$0xff] %vm1182, %v1180
    %1184 = vrot.lane.b32.xlu0 %v949, 64
    %v1185 = vpop.permute.xlu0 %1184
    %1186 = vrot.lane.b32.xlu0 %v951, 64
    %v1187 = vpop.permute.xlu0 %1186
    %v1189 = vsel %vm955, %v1185, 0
    %v1192 = vsel %vm955, %v1187, 0
    %1194 = vmatprep.subr.bf16.mxu0 0
    %1195 = vmatpush1.bf16.xpose.msra.mxu0 %v1192
    %1196 = vmatprep.subr.bf16.mxu0 0
    %1197 = vmatpush1.bf16.xpose.msra.mxu0 0
    %1198 = vmatprep.subr.bf16.mxu0 0
    %1199 = vmatpush1.bf16.xpose.msra.mxu0 0
    %1200 = vmatprep.subr.bf16.mxu0 0
    %1201 = vmatpush1.bf16.xpose.msra.mxu0 0
    %1202 = vmatprep.subr.bf16.mxu0 0
    %1203 = vmatpush1.bf16.xpose.msra.mxu0 0
    %1204 = vmatprep.subr.bf16.mxu0 0
    %1205 = vmatpush1.bf16.xpose.msra.mxu0 0
    %1206 = vmatprep.subr.bf16.mxu0 0
    %1207 = vmatpush1.bf16.xpose.msra.mxu0 0
    %1208 = vmatprep.subr.bf16.mxu0 0
    %1209 = vmatpush1.bf16.xpose.msra.mxu0 0
    %1210 = vmatprep.subr.bf16.mxu0 0
    %1211 = vmatpush1.bf16.xpose.msra.mxu0 0
    %1212 = vmatprep.subr.bf16.mxu0 0
    %1213 = vmatpush1.bf16.xpose.msra.mxu0 0
    %1214 = vmatprep.subr.bf16.mxu0 0
    %1215 = vmatpush1.bf16.xpose.msra.mxu0 0
    %1216 = vmatprep.subr.bf16.mxu0 0
    %1217 = vmatpush1.bf16.xpose.msra.mxu0 0
    %1218 = vmatprep.subr.bf16.mxu0 0
    %1219 = vmatpush1.bf16.xpose.msra.mxu0 0
    %1220 = vmatprep.subr.bf16.mxu0 0
    %1221 = vmatpush1.bf16.xpose.msra.mxu0 0
    %1222 = vmatprep.subr.bf16.mxu0 0
    %1223 = vmatpush1.bf16.xpose.msra.mxu0 0
    %1224 = vmatprep.subr.bf16.mxu0 0
    %1225 = vmatpush1.bf16.xpose.msra.mxu0 0
    %1226 = vmatprep.mubr.bf16.mxu0 0
    %1227 = vmatmul.mubr.bf16.gmra.mrb[0].mxu0 %v1189
    %v1228 = vpop.f32.mrb[0].mxu0
    %v1229 = vadd.f32 0.0, %v1228
    %v1230 = vpop.f32.mrb[0].mxu0
    %v1231 = vpop.f32.mrb[0].mxu0
    %v1232 = vpop.f32.mrb[0].mxu0
    %1233 = vdwg.mxu0
    %v1234 = vmul.f32 %v1229, 0.17677669
    %v1235 = vsel %vm1003, %v1234, -inf
    %1236 = vmax.xlane.f32.xlu0 %v1235
    %v1237 = vpop.xlane.xlu0 %1236
    %v1238 = vsub.f32 %v1234, %v1237
    %v1239 = vmul.f32 %v1238, 1.442695
    %v1240 = vpow.pop %v1239
    %v1241 = vsel %vm1003, %v1240, 0.0
    %1242 = vadd.xlane.f32.xlu0 %v1241
    %v1243 = vpop.xlane.xlu0 %1242
    %v1244 = vrcp.pop %v1243
    %v1245 = vmul.f32 %v1240, %v1244
    %v1246 = vpack.c.bf16 %v1245, %v1245
    %1247 = vrot.lane.b32.xlu0 %v953, 64
    %v1248 = vpop.permute.xlu0 %1247
    %v1250 = vsel %vm1003, %v1246, 0
    %v1253 = vsel %vm1019, %v1248, 0
    %1255 = vmatprep.subr.bf16.mxu0 0
    %1256 = vmatpush1.bf16.msra.mxu0 %v1253
    %1257 = vmatprep.subr.bf16.mxu0 0
    %1258 = vmatpush1.bf16.msra.mxu0 0
    %1259 = vmatprep.subr.bf16.mxu0 0
    %1260 = vmatpush1.bf16.msra.mxu0 0
    %1261 = vmatprep.subr.bf16.mxu0 0
    %1262 = vmatpush1.bf16.msra.mxu0 0
    %1263 = vmatprep.subr.bf16.mxu0 0
    %1264 = vmatpush1.bf16.msra.mxu0 0
    %1265 = vmatprep.subr.bf16.mxu0 0
    %1266 = vmatpush1.bf16.msra.mxu0 0
    %1267 = vmatprep.subr.bf16.mxu0 0
    %1268 = vmatpush1.bf16.msra.mxu0 0
    %1269 = vmatprep.subr.bf16.mxu0 0
    %1270 = vmatpush1.bf16.msra.mxu0 0
    %1271 = vmatprep.subr.bf16.mxu0 0
    %1272 = vmatpush1.bf16.msra.mxu0 0
    %1273 = vmatprep.subr.bf16.mxu0 0
    %1274 = vmatpush1.bf16.msra.mxu0 0
    %1275 = vmatprep.subr.bf16.mxu0 0
    %1276 = vmatpush1.bf16.msra.mxu0 0
    %1277 = vmatprep.subr.bf16.mxu0 0
    %1278 = vmatpush1.bf16.msra.mxu0 0
    %1279 = vmatprep.subr.bf16.mxu0 0
    %1280 = vmatpush1.bf16.msra.mxu0 0
    %1281 = vmatprep.subr.bf16.mxu0 0
    %1282 = vmatpush1.bf16.msra.mxu0 0
    %1283 = vmatprep.subr.bf16.mxu0 0
    %1284 = vmatpush1.bf16.msra.mxu0 0
    %1285 = vmatprep.subr.bf16.mxu0 0
    %1286 = vmatpush1.bf16.msra.mxu0 0
    %1287 = vmatprep.mubr.bf16.mxu0 0
    %1288 = vmatmul.mubr.bf16.gmra.mrb[0].mxu0 %v1250
    %v1289 = vpop.f32.mrb[0].mxu0
    %v1290 = vadd.f32 0.0, %v1289
    %v1291 = vpop.f32.mrb[0].mxu0
    %v1292 = vpop.f32.mrb[0].mxu0
    %v1293 = vpop.f32.mrb[0].mxu0
    %1294 = vdwg.mxu0
    %1296 = vrot.lane.b32.xlu0 %v1290, 64
    %v1297 = vpop.permute.xlu0 %1296
    %vm1299 = vcmask 785920
    %1300 = vst.msk [vmem:[#allocation2] sm:$0xff] %vm1299, %v1297
    %1301 = vrot.lane.b32.xlu0 %v949, 32
    %v1302 = vpop.permute.xlu0 %1301
    %1303 = vrot.lane.b32.xlu0 %v951, 32
    %v1304 = vpop.permute.xlu0 %1303
    %v1306 = vsel %vm955, %v1302, 0
    %v1309 = vsel %vm955, %v1304, 0
    %1311 = vmatprep.subr.bf16.mxu0 0
    %1312 = vmatpush1.bf16.xpose.msra.mxu0 %v1309
    %1313 = vmatprep.subr.bf16.mxu0 0
    %1314 = vmatpush1.bf16.xpose.msra.mxu0 0
    %1315 = vmatprep.subr.bf16.mxu0 0
    %1316 = vmatpush1.bf16.xpose.msra.mxu0 0
    %1317 = vmatprep.subr.bf16.mxu0 0
    %1318 = vmatpush1.bf16.xpose.msra.mxu0 0
    %1319 = vmatprep.subr.bf16.mxu0 0
    %1320 = vmatpush1.bf16.xpose.msra.mxu0 0
    %1321 = vmatprep.subr.bf16.mxu0 0
    %1322 = vmatpush1.bf16.xpose.msra.mxu0 0
    %1323 = vmatprep.subr.bf16.mxu0 0
    %1324 = vmatpush1.bf16.xpose.msra.mxu0 0
    %1325 = vmatprep.subr.bf16.mxu0 0
    %1326 = vmatpush1.bf16.xpose.msra.mxu0 0
    %1327 = vmatprep.subr.bf16.mxu0 0
    %1328 = vmatpush1.bf16.xpose.msra.mxu0 0
    %1329 = vmatprep.subr.bf16.mxu0 0
    %1330 = vmatpush1.bf16.xpose.msra.mxu0 0
    %1331 = vmatprep.subr.bf16.mxu0 0
    %1332 = vmatpush1.bf16.xpose.msra.mxu0 0
    %1333 = vmatprep.subr.bf16.mxu0 0
    %1334 = vmatpush1.bf16.xpose.msra.mxu0 0
    %1335 = vmatprep.subr.bf16.mxu0 0
    %1336 = vmatpush1.bf16.xpose.msra.mxu0 0
    %1337 = vmatprep.subr.bf16.mxu0 0
    %1338 = vmatpush1.bf16.xpose.msra.mxu0 0
    %1339 = vmatprep.subr.bf16.mxu0 0
    %1340 = vmatpush1.bf16.xpose.msra.mxu0 0
    %1341 = vmatprep.subr.bf16.mxu0 0
    %1342 = vmatpush1.bf16.xpose.msra.mxu0 0
    %1343 = vmatprep.mubr.bf16.mxu0 0
    %1344 = vmatmul.mubr.bf16.gmra.mrb[0].mxu0 %v1306
    %v1345 = vpop.f32.mrb[0].mxu0
    %v1346 = vadd.f32 0.0, %v1345
    %v1347 = vpop.f32.mrb[0].mxu0
    %v1348 = vpop.f32.mrb[0].mxu0
    %v1349 = vpop.f32.mrb[0].mxu0
    %1350 = vdwg.mxu0
    %v1351 = vmul.f32 %v1346, 0.17677669
    %v1352 = vsel %vm1003, %v1351, -inf
    %1353 = vmax.xlane.f32.xlu0 %v1352
    %v1354 = vpop.xlane.xlu0 %1353
    %v1355 = vsub.f32 %v1351, %v1354
    %v1356 = vmul.f32 %v1355, 1.442695
    %v1357 = vpow.pop %v1356
    %v1358 = vsel %vm1003, %v1357, 0.0
    %1359 = vadd.xlane.f32.xlu0 %v1358
    %v1360 = vpop.xlane.xlu0 %1359
    %v1361 = vrcp.pop %v1360
    %v1362 = vmul.f32 %v1357, %v1361
    %v1363 = vpack.c.bf16 %v1362, %v1362
    %1364 = vrot.lane.b32.xlu0 %v953, 32
    %v1365 = vpop.permute.xlu0 %1364
    %v1367 = vsel %vm1003, %v1363, 0
    %v1370 = vsel %vm1019, %v1365, 0
    %1372 = vmatprep.subr.bf16.mxu0 0
    %1373 = vmatpush1.bf16.msra.mxu0 %v1370
    %1374 = vmatprep.subr.bf16.mxu0 0
    %1375 = vmatpush1.bf16.msra.mxu0 0
    %1376 = vmatprep.subr.bf16.mxu0 0
    %1377 = vmatpush1.bf16.msra.mxu0 0
    %1378 = vmatprep.subr.bf16.mxu0 0
    %1379 = vmatpush1.bf16.msra.mxu0 0
    %1380 = vmatprep.subr.bf16.mxu0 0
    %1381 = vmatpush1.bf16.msra.mxu0 0
    %1382 = vmatprep.subr.bf16.mxu0 0
    %1383 = vmatpush1.bf16.msra.mxu0 0
    %1384 = vmatprep.subr.bf16.mxu0 0
    %1385 = vmatpush1.bf16.msra.mxu0 0
    %1386 = vmatprep.subr.bf16.mxu0 0
    %1387 = vmatpush1.bf16.msra.mxu0 0
    %1388 = vmatprep.subr.bf16.mxu0 0
    %1389 = vmatpush1.bf16.msra.mxu0 0
    %1390 = vmatprep.subr.bf16.mxu0 0
    %1391 = vmatpush1.bf16.msra.mxu0 0
    %1392 = vmatprep.subr.bf16.mxu0 0
    %1393 = vmatpush1.bf16.msra.mxu0 0
    %1394 = vmatprep.subr.bf16.mxu0 0
    %1395 = vmatpush1.bf16.msra.mxu0 0
    %1396 = vmatprep.subr.bf16.mxu0 0
    %1397 = vmatpush1.bf16.msra.mxu0 0
    %1398 = vmatprep.subr.bf16.mxu0 0
    %1399 = vmatpush1.bf16.msra.mxu0 0
    %1400 = vmatprep.subr.bf16.mxu0 0
    %1401 = vmatpush1.bf16.msra.mxu0 0
    %1402 = vmatprep.subr.bf16.mxu0 0
    %1403 = vmatpush1.bf16.msra.mxu0 0
    %1404 = vmatprep.mubr.bf16.mxu0 0
    %1405 = vmatmul.mubr.bf16.gmra.mrb[0].mxu0 %v1367
    %v1406 = vpop.f32.mrb[0].mxu0
    %v1407 = vadd.f32 0.0, %v1406
    %v1408 = vpop.f32.mrb[0].mxu0
    %v1409 = vpop.f32.mrb[0].mxu0
    %v1410 = vpop.f32.mrb[0].mxu0
    %1411 = vdwg.mxu0
    %1413 = vrot.lane.b32.xlu0 %v1407, 96
    %v1414 = vpop.permute.xlu0 %1413
    %vm1416 = vcmask 1048320
    %1417 = vst.msk [vmem:[#allocation2] sm:$0xff] %vm1416, %v1414
    %v1419 = vsel %vm955, %v950, 0
    %v1422 = vsel %vm955, %v952, 0
    %1424 = vmatprep.subr.bf16.mxu0 0
    %1425 = vmatpush1.bf16.xpose.msra.mxu0 %v1422
    %1426 = vmatprep.subr.bf16.mxu0 0
    %1427 = vmatpush1.bf16.xpose.msra.mxu0 0
    %1428 = vmatprep.subr.bf16.mxu0 0
    %1429 = vmatpush1.bf16.xpose.msra.mxu0 0
    %1430 = vmatprep.subr.bf16.mxu0 0
    %1431 = vmatpush1.bf16.xpose.msra.mxu0 0
    %1432 = vmatprep.subr.bf16.mxu0 0
    %1433 = vmatpush1.bf16.xpose.msra.mxu0 0
    %1434 = vmatprep.subr.bf16.mxu0 0
    %1435 = vmatpush1.bf16.xpose.msra.mxu0 0
    %1436 = vmatprep.subr.bf16.mxu0 0
    %1437 = vmatpush1.bf16.xpose.msra.mxu0 0
    %1438 = vmatprep.subr.bf16.mxu0 0
    %1439 = vmatpush1.bf16.xpose.msra.mxu0 0
    %1440 = vmatprep.subr.bf16.mxu0 0
    %1441 = vmatpush1.bf16.xpose.msra.mxu0 0
    %1442 = vmatprep.subr.bf16.mxu0 0
    %1443 = vmatpush1.bf16.xpose.msra.mxu0 0
    %1444 = vmatprep.subr.bf16.mxu0 0
    %1445 = vmatpush1.bf16.xpose.msra.mxu0 0
    %1446 = vmatprep.subr.bf16.mxu0 0
    %1447 = vmatpush1.bf16.xpose.msra.mxu0 0
    %1448 = vmatprep.subr.bf16.mxu0 0
    %1449 = vmatpush1.bf16.xpose.msra.mxu0 0
    %1450 = vmatprep.subr.bf16.mxu0 0
    %1451 = vmatpush1.bf16.xpose.msra.mxu0 0
    %1452 = vmatprep.subr.bf16.mxu0 0
    %1453 = vmatpush1.bf16.xpose.msra.mxu0 0
    %1454 = vmatprep.subr.bf16.mxu0 0
    %1455 = vmatpush1.bf16.xpose.msra.mxu0 0
    %1456 = vmatprep.mubr.bf16.mxu0 0
    %1457 = vmatmul.mubr.bf16.gmra.mrb[0].mxu0 %v1419
    %v1458 = vpop.f32.mrb[0].mxu0
    %v1459 = vadd.f32 0.0, %v1458
    %v1460 = vpop.f32.mrb[0].mxu0
    %v1461 = vpop.f32.mrb[0].mxu0
    %v1462 = vpop.f32.mrb[0].mxu0
    %1463 = vdwg.mxu0
    %v1464 = vmul.f32 %v1459, 0.17677669
    %v1465 = vsel %vm1003, %v1464, -inf
    %1466 = vmax.xlane.f32.xlu0 %v1465
    %v1467 = vpop.xlane.xlu0 %1466
    %v1468 = vsub.f32 %v1464, %v1467
    %v1469 = vmul.f32 %v1468, 1.442695
    %v1470 = vpow.pop %v1469
    %v1471 = vsel %vm1003, %v1470, 0.0
    %1472 = vadd.xlane.f32.xlu0 %v1471
    %v1473 = vpop.xlane.xlu0 %1472
    %v1474 = vrcp.pop %v1473
    %v1475 = vmul.f32 %v1470, %v1474
    %v1476 = vpack.c.bf16 %v1475, %v1475
    %v1478 = vsel %vm1003, %v1476, 0
    %v1481 = vsel %vm1019, %v954, 0
    %1483 = vmatprep.subr.bf16.mxu0 0
    %1484 = vmatpush1.bf16.msra.mxu0 %v1481
    %1485 = vmatprep.subr.bf16.mxu0 0
    %1486 = vmatpush1.bf16.msra.mxu0 0
    %1487 = vmatprep.subr.bf16.mxu0 0
    %1488 = vmatpush1.bf16.msra.mxu0 0
    %1489 = vmatprep.subr.bf16.mxu0 0
    %1490 = vmatpush1.bf16.msra.mxu0 0
    %1491 = vmatprep.subr.bf16.mxu0 0
    %1492 = vmatpush1.bf16.msra.mxu0 0
    %1493 = vmatprep.subr.bf16.mxu0 0
    %1494 = vmatpush1.bf16.msra.mxu0 0
    %1495 = vmatprep.subr.bf16.mxu0 0
    %1496 = vmatpush1.bf16.msra.mxu0 0
    %1497 = vmatprep.subr.bf16.mxu0 0
    %1498 = vmatpush1.bf16.msra.mxu0 0
    %1499 = vmatprep.subr.bf16.mxu0 0
    %1500 = vmatpush1.bf16.msra.mxu0 0
    %1501 = vmatprep.subr.bf16.mxu0 0
    %1502 = vmatpush1.bf16.msra.mxu0 0
    %1503 = vmatprep.subr.bf16.mxu0 0
    %1504 = vmatpush1.bf16.msra.mxu0 0
    %1505 = vmatprep.subr.bf16.mxu0 0
    %1506 = vmatpush1.bf16.msra.mxu0 0
    %1507 = vmatprep.subr.bf16.mxu0 0
    %1508 = vmatpush1.bf16.msra.mxu0 0
    %1509 = vmatprep.subr.bf16.mxu0 0
    %1510 = vmatpush1.bf16.msra.mxu0 0
    %1511 = vmatprep.subr.bf16.mxu0 0
    %1512 = vmatpush1.bf16.msra.mxu0 0
    %1513 = vmatprep.subr.bf16.mxu0 0
    %1514 = vmatpush1.bf16.msra.mxu0 0
    %1515 = vmatprep.mubr.bf16.mxu0 0
    %1516 = vmatmul.mubr.bf16.gmra.mrb[0].mxu0 %v1478
    %v1517 = vpop.f32.mrb[0].mxu0
    %v1518 = vadd.f32 0.0, %v1517
    %v1519 = vpop.f32.mrb[0].mxu0
    %v1520 = vpop.f32.mrb[0].mxu0
    %v1521 = vpop.f32.mrb[0].mxu0
    %1522 = vdwg.mxu0
    %1523 = vst.msk [vmem:[#allocation2 + $0x8] sm:$0xff] %vm955, %v1518
    %1525 = vrot.lane.b32.xlu0 %v950, 96
    %v1526 = vpop.permute.xlu0 %1525
    %1528 = vrot.lane.b32.xlu0 %v952, 96
    %v1529 = vpop.permute.xlu0 %1528
    %v1531 = vsel %vm955, %v1526, 0
    %v1534 = vsel %vm955, %v1529, 0
    %1536 = vmatprep.subr.bf16.mxu0 0
    %1537 = vmatpush1.bf16.xpose.msra.mxu0 %v1534
    %1538 = vmatprep.subr.bf16.mxu0 0
    %1539 = vmatpush1.bf16.xpose.msra.mxu0 0
    %1540 = vmatprep.subr.bf16.mxu0 0
    %1541 = vmatpush1.bf16.xpose.msra.mxu0 0
    %1542 = vmatprep.subr.bf16.mxu0 0
    %1543 = vmatpush1.bf16.xpose.msra.mxu0 0
    %1544 = vmatprep.subr.bf16.mxu0 0
    %1545 = vmatpush1.bf16.xpose.msra.mxu0 0
    %1546 = vmatprep.subr.bf16.mxu0 0
    %1547 = vmatpush1.bf16.xpose.msra.mxu0 0
    %1548 = vmatprep.subr.bf16.mxu0 0
    %1549 = vmatpush1.bf16.xpose.msra.mxu0 0
    %1550 = vmatprep.subr.bf16.mxu0 0
    %1551 = vmatpush1.bf16.xpose.msra.mxu0 0
    %1552 = vmatprep.subr.bf16.mxu0 0
    %1553 = vmatpush1.bf16.xpose.msra.mxu0 0
    %1554 = vmatprep.subr.bf16.mxu0 0
    %1555 = vmatpush1.bf16.xpose.msra.mxu0 0
    %1556 = vmatprep.subr.bf16.mxu0 0
    %1557 = vmatpush1.bf16.xpose.msra.mxu0 0
    %1558 = vmatprep.subr.bf16.mxu0 0
    %1559 = vmatpush1.bf16.xpose.msra.mxu0 0
    %1560 = vmatprep.subr.bf16.mxu0 0
    %1561 = vmatpush1.bf16.xpose.msra.mxu0 0
    %1562 = vmatprep.subr.bf16.mxu0 0
    %1563 = vmatpush1.bf16.xpose.msra.mxu0 0
    %1564 = vmatprep.subr.bf16.mxu0 0
    %1565 = vmatpush1.bf16.xpose.msra.mxu0 0
    %1566 = vmatprep.subr.bf16.mxu0 0
    %1567 = vmatpush1.bf16.xpose.msra.mxu0 0
    %1568 = vmatprep.mubr.bf16.mxu0 0
    %1569 = vmatmul.mubr.bf16.gmra.mrb[0].mxu0 %v1531
    %v1570 = vpop.f32.mrb[0].mxu0
    %v1571 = vadd.f32 0.0, %v1570
    %v1572 = vpop.f32.mrb[0].mxu0
    %v1573 = vpop.f32.mrb[0].mxu0
    %v1574 = vpop.f32.mrb[0].mxu0
    %1575 = vdwg.mxu0
    %v1576 = vmul.f32 %v1571, 0.17677669
    %v1577 = vsel %vm1003, %v1576, -inf
    %1578 = vmax.xlane.f32.xlu0 %v1577
    %v1579 = vpop.xlane.xlu0 %1578
    %v1580 = vsub.f32 %v1576, %v1579
    %v1581 = vmul.f32 %v1580, 1.442695
    %v1582 = vpow.pop %v1581
    %v1583 = vsel %vm1003, %v1582, 0.0
    %1584 = vadd.xlane.f32.xlu0 %v1583
    %v1585 = vpop.xlane.xlu0 %1584
    %v1586 = vrcp.pop %v1585
    %v1587 = vmul.f32 %v1582, %v1586
    %v1588 = vpack.c.bf16 %v1587, %v1587
    %1590 = vrot.lane.b32.xlu0 %v954, 96
    %v1591 = vpop.permute.xlu0 %1590
    %v1593 = vsel %vm1003, %v1588, 0
    %v1596 = vsel %vm1019, %v1591, 0
    %1598 = vmatprep.subr.bf16.mxu0 0
    %1599 = vmatpush1.bf16.msra.mxu0 %v1596
    %1600 = vmatprep.subr.bf16.mxu0 0
    %1601 = vmatpush1.bf16.msra.mxu0 0
    %1602 = vmatprep.subr.bf16.mxu0 0
    %1603 = vmatpush1.bf16.msra.mxu0 0
    %1604 = vmatprep.subr.bf16.mxu0 0
    %1605 = vmatpush1.bf16.msra.mxu0 0
    %1606 = vmatprep.subr.bf16.mxu0 0
    %1607 = vmatpush1.bf16.msra.mxu0 0
    %1608 = vmatprep.subr.bf16.mxu0 0
    %1609 = vmatpush1.bf16.msra.mxu0 0
    %1610 = vmatprep.subr.bf16.mxu0 0
    %1611 = vmatpush1.bf16.msra.mxu0 0
    %1612 = vmatprep.subr.bf16.mxu0 0
    %1613 = vmatpush1.bf16.msra.mxu0 0
    %1614 = vmatprep.subr.bf16.mxu0 0
    %1615 = vmatpush1.bf16.msra.mxu0 0
    %1616 = vmatprep.subr.bf16.mxu0 0
    %1617 = vmatpush1.bf16.msra.mxu0 0
    %1618 = vmatprep.subr.bf16.mxu0 0
    %1619 = vmatpush1.bf16.msra.mxu0 0
    %1620 = vmatprep.subr.bf16.mxu0 0
    %1621 = vmatpush1.bf16.msra.mxu0 0
    %1622 = vmatprep.subr.bf16.mxu0 0
    %1623 = vmatpush1.bf16.msra.mxu0 0
    %1624 = vmatprep.subr.bf16.mxu0 0
    %1625 = vmatpush1.bf16.msra.mxu0 0
    %1626 = vmatprep.subr.bf16.mxu0 0
    %1627 = vmatpush1.bf16.msra.mxu0 0
    %1628 = vmatprep.subr.bf16.mxu0 0
    %1629 = vmatpush1.bf16.msra.mxu0 0
    %1630 = vmatprep.mubr.bf16.mxu0 0
    %1631 = vmatmul.mubr.bf16.gmra.mrb[0].mxu0 %v1593
    %v1632 = vpop.f32.mrb[0].mxu0
    %v1633 = vadd.f32 0.0, %v1632
    %v1634 = vpop.f32.mrb[0].mxu0
    %v1635 = vpop.f32.mrb[0].mxu0
    %v1636 = vpop.f32.mrb[0].mxu0
    %1637 = vdwg.mxu0
    %1639 = vrot.lane.b32.xlu0 %v1633, 32
    %v1640 = vpop.permute.xlu0 %1639
    %1642 = vst.msk [vmem:[#allocation2 + $0x8] sm:$0xff] %vm1182, %v1640
    %1643 = vrot.lane.b32.xlu0 %v950, 64
    %v1644 = vpop.permute.xlu0 %1643
    %1645 = vrot.lane.b32.xlu0 %v952, 64
    %v1646 = vpop.permute.xlu0 %1645
    %v1648 = vsel %vm955, %v1644, 0
    %v1651 = vsel %vm955, %v1646, 0
    %1653 = vmatprep.subr.bf16.mxu0 0
    %1654 = vmatpush1.bf16.xpose.msra.mxu0 %v1651
    %1655 = vmatprep.subr.bf16.mxu0 0
    %1656 = vmatpush1.bf16.xpose.msra.mxu0 0
    %1657 = vmatprep.subr.bf16.mxu0 0
    %1658 = vmatpush1.bf16.xpose.msra.mxu0 0
    %1659 = vmatprep.subr.bf16.mxu0 0
    %1660 = vmatpush1.bf16.xpose.msra.mxu0 0
    %1661 = vmatprep.subr.bf16.mxu0 0
    %1662 = vmatpush1.bf16.xpose.msra.mxu0 0
    %1663 = vmatprep.subr.bf16.mxu0 0
    %1664 = vmatpush1.bf16.xpose.msra.mxu0 0
    %1665 = vmatprep.subr.bf16.mxu0 0
    %1666 = vmatpush1.bf16.xpose.msra.mxu0 0
    %1667 = vmatprep.subr.bf16.mxu0 0
    %1668 = vmatpush1.bf16.xpose.msra.mxu0 0
    %1669 = vmatprep.subr.bf16.mxu0 0
    %1670 = vmatpush1.bf16.xpose.msra.mxu0 0
    %1671 = vmatprep.subr.bf16.mxu0 0
    %1672 = vmatpush1.bf16.xpose.msra.mxu0 0
    %1673 = vmatprep.subr.bf16.mxu0 0
    %1674 = vmatpush1.bf16.xpose.msra.mxu0 0
    %1675 = vmatprep.subr.bf16.mxu0 0
    %1676 = vmatpush1.bf16.xpose.msra.mxu0 0
    %1677 = vmatprep.subr.bf16.mxu0 0
    %1678 = vmatpush1.bf16.xpose.msra.mxu0 0
    %1679 = vmatprep.subr.bf16.mxu0 0
    %1680 = vmatpush1.bf16.xpose.msra.mxu0 0
    %1681 = vmatprep.subr.bf16.mxu0 0
    %1682 = vmatpush1.bf16.xpose.msra.mxu0 0
    %1683 = vmatprep.subr.bf16.mxu0 0
    %1684 = vmatpush1.bf16.xpose.msra.mxu0 0
    %1685 = vmatprep.mubr.bf16.mxu0 0
    %1686 = vmatmul.mubr.bf16.gmra.mrb[0].mxu0 %v1648
    %v1687 = vpop.f32.mrb[0].mxu0
    %v1688 = vadd.f32 0.0, %v1687
    %v1689 = vpop.f32.mrb[0].mxu0
    %v1690 = vpop.f32.mrb[0].mxu0
    %v1691 = vpop.f32.mrb[0].mxu0
    %1692 = vdwg.mxu0
    %v1693 = vmul.f32 %v1688, 0.17677669
    %v1694 = vsel %vm1003, %v1693, -inf
    %1695 = vmax.xlane.f32.xlu0 %v1694
    %v1696 = vpop.xlane.xlu0 %1695
    %v1697 = vsub.f32 %v1693, %v1696
    %v1698 = vmul.f32 %v1697, 1.442695
    %v1699 = vpow.pop %v1698
    %v1700 = vsel %vm1003, %v1699, 0.0
    %1701 = vadd.xlane.f32.xlu0 %v1700
    %v1702 = vpop.xlane.xlu0 %1701
    %v1703 = vrcp.pop %v1702
    %v1704 = vmul.f32 %v1699, %v1703
    %v1705 = vpack.c.bf16 %v1704, %v1704
    %1706 = vrot.lane.b32.xlu0 %v954, 64
    %v1707 = vpop.permute.xlu0 %1706
    %v1709 = vsel %vm1003, %v1705, 0
    %v1712 = vsel %vm1019, %v1707, 0
    %1714 = vmatprep.subr.bf16.mxu0 0
    %1715 = vmatpush1.bf16.msra.mxu0 %v1712
    %1716 = vmatprep.subr.bf16.mxu0 0
    %1717 = vmatpush1.bf16.msra.mxu0 0
    %1718 = vmatprep.subr.bf16.mxu0 0
    %1719 = vmatpush1.bf16.msra.mxu0 0
    %1720 = vmatprep.subr.bf16.mxu0 0
    %1721 = vmatpush1.bf16.msra.mxu0 0
    %1722 = vmatprep.subr.bf16.mxu0 0
    %1723 = vmatpush1.bf16.msra.mxu0 0
    %1724 = vmatprep.subr.bf16.mxu0 0
    %1725 = vmatpush1.bf16.msra.mxu0 0
    %1726 = vmatprep.subr.bf16.mxu0 0
    %1727 = vmatpush1.bf16.msra.mxu0 0
    %1728 = vmatprep.subr.bf16.mxu0 0
    %1729 = vmatpush1.bf16.msra.mxu0 0
    %1730 = vmatprep.subr.bf16.mxu0 0
    %1731 = vmatpush1.bf16.msra.mxu0 0
    %1732 = vmatprep.subr.bf16.mxu0 0
    %1733 = vmatpush1.bf16.msra.mxu0 0
    %1734 = vmatprep.subr.bf16.mxu0 0
    %1735 = vmatpush1.bf16.msra.mxu0 0
    %1736 = vmatprep.subr.bf16.mxu0 0
    %1737 = vmatpush1.bf16.msra.mxu0 0
    %1738 = vmatprep.subr.bf16.mxu0 0
    %1739 = vmatpush1.bf16.msra.mxu0 0
    %1740 = vmatprep.subr.bf16.mxu0 0
    %1741 = vmatpush1.bf16.msra.mxu0 0
    %1742 = vmatprep.subr.bf16.mxu0 0
    %1743 = vmatpush1.bf16.msra.mxu0 0
    %1744 = vmatprep.subr.bf16.mxu0 0
    %1745 = vmatpush1.bf16.msra.mxu0 0
    %1746 = vmatprep.mubr.bf16.mxu0 0
    %1747 = vmatmul.mubr.bf16.gmra.mrb[0].mxu0 %v1709
    %v1748 = vpop.f32.mrb[0].mxu0
    %v1749 = vadd.f32 0.0, %v1748
    %v1750 = vpop.f32.mrb[0].mxu0
    %v1751 = vpop.f32.mrb[0].mxu0
    %v1752 = vpop.f32.mrb[0].mxu0
    %1753 = vdwg.mxu0
    %1755 = vrot.lane.b32.xlu0 %v1749, 64
    %v1756 = vpop.permute.xlu0 %1755
    %1758 = vst.msk [vmem:[#allocation2 + $0x8] sm:$0xff] %vm1299, %v1756
    %1759 = vrot.lane.b32.xlu0 %v950, 32
    %v1760 = vpop.permute.xlu0 %1759
    %1761 = vrot.lane.b32.xlu0 %v952, 32
    %v1762 = vpop.permute.xlu0 %1761
    %v1764 = vsel %vm955, %v1760, 0
    %v1767 = vsel %vm955, %v1762, 0
    %1769 = vmatprep.subr.bf16.mxu0 0
    %1770 = vmatpush1.bf16.xpose.msra.mxu0 %v1767
    %1771 = vmatprep.subr.bf16.mxu0 0
    %1772 = vmatpush1.bf16.xpose.msra.mxu0 0
    %1773 = vmatprep.subr.bf16.mxu0 0
    %1774 = vmatpush1.bf16.xpose.msra.mxu0 0
    %1775 = vmatprep.subr.bf16.mxu0 0
    %1776 = vmatpush1.bf16.xpose.msra.mxu0 0
    %1777 = vmatprep.subr.bf16.mxu0 0
    %1778 = vmatpush1.bf16.xpose.msra.mxu0 0
    %1779 = vmatprep.subr.bf16.mxu0 0
    %1780 = vmatpush1.bf16.xpose.msra.mxu0 0
    %1781 = vmatprep.subr.bf16.mxu0 0
    %1782 = vmatpush1.bf16.xpose.msra.mxu0 0
    %1783 = vmatprep.subr.bf16.mxu0 0
    %1784 = vmatpush1.bf16.xpose.msra.mxu0 0
    %1785 = vmatprep.subr.bf16.mxu0 0
    %1786 = vmatpush1.bf16.xpose.msra.mxu0 0
    %1787 = vmatprep.subr.bf16.mxu0 0
    %1788 = vmatpush1.bf16.xpose.msra.mxu0 0
    %1789 = vmatprep.subr.bf16.mxu0 0
    %1790 = vmatpush1.bf16.xpose.msra.mxu0 0
    %1791 = vmatprep.subr.bf16.mxu0 0
    %1792 = vmatpush1.bf16.xpose.msra.mxu0 0
    %1793 = vmatprep.subr.bf16.mxu0 0
    %1794 = vmatpush1.bf16.xpose.msra.mxu0 0
    %1795 = vmatprep.subr.bf16.mxu0 0
    %1796 = vmatpush1.bf16.xpose.msra.mxu0 0
    %1797 = vmatprep.subr.bf16.mxu0 0
    %1798 = vmatpush1.bf16.xpose.msra.mxu0 0
    %1799 = vmatprep.subr.bf16.mxu0 0
    %1800 = vmatpush1.bf16.xpose.msra.mxu0 0
    %1801 = vmatprep.mubr.bf16.mxu0 0
    %1802 = vmatmul.mubr.bf16.gmra.mrb[0].mxu0 %v1764
    %v1803 = vpop.f32.mrb[0].mxu0
    %v1804 = vadd.f32 0.0, %v1803
    %v1805 = vpop.f32.mrb[0].mxu0
    %v1806 = vpop.f32.mrb[0].mxu0
    %v1807 = vpop.f32.mrb[0].mxu0
    %1808 = vdwg.mxu0
    %v1809 = vmul.f32 %v1804, 0.17677669
    %v1810 = vsel %vm1003, %v1809, -inf
    %1811 = vmax.xlane.f32.xlu0 %v1810
    %v1812 = vpop.xlane.xlu0 %1811
    %v1813 = vsub.f32 %v1809, %v1812
    %v1814 = vmul.f32 %v1813, 1.442695
    %v1815 = vpow.pop %v1814
    %v1816 = vsel %vm1003, %v1815, 0.0
    %1817 = vadd.xlane.f32.xlu0 %v1816
    %v1818 = vpop.xlane.xlu0 %1817
    %v1819 = vrcp.pop %v1818
    %v1820 = vmul.f32 %v1815, %v1819
    %v1821 = vpack.c.bf16 %v1820, %v1820
    %1822 = vrot.lane.b32.xlu0 %v954, 32
    %v1823 = vpop.permute.xlu0 %1822
    %v1825 = vsel %vm1003, %v1821, 0
    %v1828 = vsel %vm1019, %v1823, 0
    %1830 = vmatprep.subr.bf16.mxu0 0
    %1831 = vmatpush1.bf16.msra.mxu0 %v1828
    %1832 = vmatprep.subr.bf16.mxu0 0
    %1833 = vmatpush1.bf16.msra.mxu0 0
    %1834 = vmatprep.subr.bf16.mxu0 0
    %1835 = vmatpush1.bf16.msra.mxu0 0
    %1836 = vmatprep.subr.bf16.mxu0 0
    %1837 = vmatpush1.bf16.msra.mxu0 0
    %1838 = vmatprep.subr.bf16.mxu0 0
    %1839 = vmatpush1.bf16.msra.mxu0 0
    %1840 = vmatprep.subr.bf16.mxu0 0
    %1841 = vmatpush1.bf16.msra.mxu0 0
    %1842 = vmatprep.subr.bf16.mxu0 0
    %1843 = vmatpush1.bf16.msra.mxu0 0
    %1844 = vmatprep.subr.bf16.mxu0 0
    %1845 = vmatpush1.bf16.msra.mxu0 0
    %1846 = vmatprep.subr.bf16.mxu0 0
    %1847 = vmatpush1.bf16.msra.mxu0 0
    %1848 = vmatprep.subr.bf16.mxu0 0
    %1849 = vmatpush1.bf16.msra.mxu0 0
    %1850 = vmatprep.subr.bf16.mxu0 0
    %1851 = vmatpush1.bf16.msra.mxu0 0
    %1852 = vmatprep.subr.bf16.mxu0 0
    %1853 = vmatpush1.bf16.msra.mxu0 0
    %1854 = vmatprep.subr.bf16.mxu0 0
    %1855 = vmatpush1.bf16.msra.mxu0 0
    %1856 = vmatprep.subr.bf16.mxu0 0
    %1857 = vmatpush1.bf16.msra.mxu0 0
    %1858 = vmatprep.subr.bf16.mxu0 0
    %1859 = vmatpush1.bf16.msra.mxu0 0
    %1860 = vmatprep.subr.bf16.mxu0 0
    %1861 = vmatpush1.bf16.msra.mxu0 0
    %1862 = vmatprep.mubr.bf16.mxu0 0
    %1863 = vmatmul.mubr.bf16.gmra.mrb[0].mxu0 %v1825
    %v1864 = vpop.f32.mrb[0].mxu0
    %v1865 = vadd.f32 0.0, %v1864
    %v1866 = vpop.f32.mrb[0].mxu0
    %v1867 = vpop.f32.mrb[0].mxu0
    %v1868 = vpop.f32.mrb[0].mxu0
    %1869 = vdwg.mxu0
    %1871 = vrot.lane.b32.xlu0 %v1865, 96
    %v1872 = vpop.permute.xlu0 %1871
    %1874 = vst.msk [vmem:[#allocation2 + $0x8] sm:$0xff] %vm1416, %v1872
    %v1875 = vrot.slane %v949, 4
    %v1876 = vrot.slane %v951, 4
    %v1878 = vsel %vm955, %v1875, 0
    %v1881 = vsel %vm955, %v1876, 0
    %1883 = vmatprep.subr.bf16.mxu0 0
    %1884 = vmatpush1.bf16.xpose.msra.mxu0 %v1881
    %1885 = vmatprep.subr.bf16.mxu0 0
    %1886 = vmatpush1.bf16.xpose.msra.mxu0 0
    %1887 = vmatprep.subr.bf16.mxu0 0
    %1888 = vmatpush1.bf16.xpose.msra.mxu0 0
    %1889 = vmatprep.subr.bf16.mxu0 0
    %1890 = vmatpush1.bf16.xpose.msra.mxu0 0
    %1891 = vmatprep.subr.bf16.mxu0 0
    %1892 = vmatpush1.bf16.xpose.msra.mxu0 0
    %1893 = vmatprep.subr.bf16.mxu0 0
    %1894 = vmatpush1.bf16.xpose.msra.mxu0 0
    %1895 = vmatprep.subr.bf16.mxu0 0
    %1896 = vmatpush1.bf16.xpose.msra.mxu0 0
    %1897 = vmatprep.subr.bf16.mxu0 0
    %1898 = vmatpush1.bf16.xpose.msra.mxu0 0
    %1899 = vmatprep.subr.bf16.mxu0 0
    %1900 = vmatpush1.bf16.xpose.msra.mxu0 0
    %1901 = vmatprep.subr.bf16.mxu0 0
    %1902 = vmatpush1.bf16.xpose.msra.mxu0 0
    %1903 = vmatprep.subr.bf16.mxu0 0
    %1904 = vmatpush1.bf16.xpose.msra.mxu0 0
    %1905 = vmatprep.subr.bf16.mxu0 0
    %1906 = vmatpush1.bf16.xpose.msra.mxu0 0
    %1907 = vmatprep.subr.bf16.mxu0 0
    %1908 = vmatpush1.bf16.xpose.msra.mxu0 0
    %1909 = vmatprep.subr.bf16.mxu0 0
    %1910 = vmatpush1.bf16.xpose.msra.mxu0 0
    %1911 = vmatprep.subr.bf16.mxu0 0
    %1912 = vmatpush1.bf16.xpose.msra.mxu0 0
    %1913 = vmatprep.subr.bf16.mxu0 0
    %1914 = vmatpush1.bf16.xpose.msra.mxu0 0
    %1915 = vmatprep.mubr.bf16.mxu0 0
    %1916 = vmatmul.mubr.bf16.gmra.mrb[0].mxu0 %v1878
    %v1917 = vpop.f32.mrb[0].mxu0
    %v1918 = vadd.f32 0.0, %v1917
    %v1919 = vpop.f32.mrb[0].mxu0
    %v1920 = vpop.f32.mrb[0].mxu0
    %v1921 = vpop.f32.mrb[0].mxu0
    %1922 = vdwg.mxu0
    %v1923 = vmul.f32 %v1918, 0.17677669
    %v1924 = vsel %vm1003, %v1923, -inf
    %1925 = vmax.xlane.f32.xlu0 %v1924
    %v1926 = vpop.xlane.xlu0 %1925
    %v1927 = vsub.f32 %v1923, %v1926
    %v1928 = vmul.f32 %v1927, 1.442695
    %v1929 = vpow.pop %v1928
    %v1930 = vsel %vm1003, %v1929, 0.0
    %1931 = vadd.xlane.f32.xlu0 %v1930
    %v1932 = vpop.xlane.xlu0 %1931
    %v1933 = vrcp.pop %v1932
    %v1934 = vmul.f32 %v1929, %v1933
    %v1935 = vpack.c.bf16 %v1934, %v1934
    %v1936 = vrot.slane %v953, 4
    %v1938 = vsel %vm1003, %v1935, 0
    %v1941 = vsel %vm1019, %v1936, 0
    %1943 = vmatprep.subr.bf16.mxu0 0
    %1944 = vmatpush1.bf16.msra.mxu0 %v1941
    %1945 = vmatprep.subr.bf16.mxu0 0
    %1946 = vmatpush1.bf16.msra.mxu0 0
    %1947 = vmatprep.subr.bf16.mxu0 0
    %1948 = vmatpush1.bf16.msra.mxu0 0
    %1949 = vmatprep.subr.bf16.mxu0 0
    %1950 = vmatpush1.bf16.msra.mxu0 0
    %1951 = vmatprep.subr.bf16.mxu0 0
    %1952 = vmatpush1.bf16.msra.mxu0 0
    %1953 = vmatprep.subr.bf16.mxu0 0
    %1954 = vmatpush1.bf16.msra.mxu0 0
    %1955 = vmatprep.subr.bf16.mxu0 0
    %1956 = vmatpush1.bf16.msra.mxu0 0
    %1957 = vmatprep.subr.bf16.mxu0 0
    %1958 = vmatpush1.bf16.msra.mxu0 0
    %1959 = vmatprep.subr.bf16.mxu0 0
    %1960 = vmatpush1.bf16.msra.mxu0 0
    %1961 = vmatprep.subr.bf16.mxu0 0
    %1962 = vmatpush1.bf16.msra.mxu0 0
    %1963 = vmatprep.subr.bf16.mxu0 0
    %1964 = vmatpush1.bf16.msra.mxu0 0
    %1965 = vmatprep.subr.bf16.mxu0 0
    %1966 = vmatpush1.bf16.msra.mxu0 0
    %1967 = vmatprep.subr.bf16.mxu0 0
    %1968 = vmatpush1.bf16.msra.mxu0 0
    %1969 = vmatprep.subr.bf16.mxu0 0
    %1970 = vmatpush1.bf16.msra.mxu0 0
    %1971 = vmatprep.subr.bf16.mxu0 0
    %1972 = vmatpush1.bf16.msra.mxu0 0
    %1973 = vmatprep.subr.bf16.mxu0 0
    %1974 = vmatpush1.bf16.msra.mxu0 0
    %1975 = vmatprep.mubr.bf16.mxu0 0
    %1976 = vmatmul.mubr.bf16.gmra.mrb[0].mxu0 %v1938
    %v1977 = vpop.f32.mrb[0].mxu0
    %v1978 = vadd.f32 0.0, %v1977
    %v1979 = vpop.f32.mrb[0].mxu0
    %v1980 = vpop.f32.mrb[0].mxu0
    %v1981 = vpop.f32.mrb[0].mxu0
    %1982 = vdwg.mxu0
    %1983 = vst.msk [vmem:[#allocation2 + $0x10] sm:$0xff] %vm955, %v1978
    %1984 = vrot.lane.b32.xlu0 %v1875, 96
    %v1985 = vpop.permute.xlu0 %1984
    %1986 = vrot.lane.b32.xlu0 %v1876, 96
    %v1987 = vpop.permute.xlu0 %1986
    %v1989 = vsel %vm955, %v1985, 0
    %v1992 = vsel %vm955, %v1987, 0
    %1994 = vmatprep.subr.bf16.mxu0 0
    %1995 = vmatpush1.bf16.xpose.msra.mxu0 %v1992
    %1996 = vmatprep.subr.bf16.mxu0 0
    %1997 = vmatpush1.bf16.xpose.msra.mxu0 0
    %1998 = vmatprep.subr.bf16.mxu0 0
    %1999 = vmatpush1.bf16.xpose.msra.mxu0 0
    %2000 = vmatprep.subr.bf16.mxu0 0
    %2001 = vmatpush1.bf16.xpose.msra.mxu0 0
    %2002 = vmatprep.subr.bf16.mxu0 0
    %2003 = vmatpush1.bf16.xpose.msra.mxu0 0
    %2004 = vmatprep.subr.bf16.mxu0 0
    %2005 = vmatpush1.bf16.xpose.msra.mxu0 0
    %2006 = vmatprep.subr.bf16.mxu0 0
    %2007 = vmatpush1.bf16.xpose.msra.mxu0 0
    %2008 = vmatprep.subr.bf16.mxu0 0
    %2009 = vmatpush1.bf16.xpose.msra.mxu0 0
    %2010 = vmatprep.subr.bf16.mxu0 0
    %2011 = vmatpush1.bf16.xpose.msra.mxu0 0
    %2012 = vmatprep.subr.bf16.mxu0 0
    %2013 = vmatpush1.bf16.xpose.msra.mxu0 0
    %2014 = vmatprep.subr.bf16.mxu0 0
    %2015 = vmatpush1.bf16.xpose.msra.mxu0 0
    %2016 = vmatprep.subr.bf16.mxu0 0
    %2017 = vmatpush1.bf16.xpose.msra.mxu0 0
    %2018 = vmatprep.subr.bf16.mxu0 0
    %2019 = vmatpush1.bf16.xpose.msra.mxu0 0
    %2020 = vmatprep.subr.bf16.mxu0 0
    %2021 = vmatpush1.bf16.xpose.msra.mxu0 0
    %2022 = vmatprep.subr.bf16.mxu0 0
    %2023 = vmatpush1.bf16.xpose.msra.mxu0 0
    %2024 = vmatprep.subr.bf16.mxu0 0
    %2025 = vmatpush1.bf16.xpose.msra.mxu0 0
    %2026 = vmatprep.mubr.bf16.mxu0 0
    %2027 = vmatmul.mubr.bf16.gmra.mrb[0].mxu0 %v1989
    %v2028 = vpop.f32.mrb[0].mxu0
    %v2029 = vadd.f32 0.0, %v2028
    %v2030 = vpop.f32.mrb[0].mxu0
    %v2031 = vpop.f32.mrb[0].mxu0
    %v2032 = vpop.f32.mrb[0].mxu0
    %2033 = vdwg.mxu0
    %v2034 = vmul.f32 %v2029, 0.17677669
    %v2035 = vsel %vm1003, %v2034, -inf
    %2036 = vmax.xlane.f32.xlu0 %v2035
    %v2037 = vpop.xlane.xlu0 %2036
    %v2038 = vsub.f32 %v2034, %v2037
    %v2039 = vmul.f32 %v2038, 1.442695
    %v2040 = vpow.pop %v2039
    %v2041 = vsel %vm1003, %v2040, 0.0
    %2042 = vadd.xlane.f32.xlu0 %v2041
    %v2043 = vpop.xlane.xlu0 %2042
    %v2044 = vrcp.pop %v2043
    %v2045 = vmul.f32 %v2040, %v2044
    %v2046 = vpack.c.bf16 %v2045, %v2045
    %2047 = vrot.lane.b32.xlu0 %v1936, 96
    %v2048 = vpop.permute.xlu0 %2047
    %v2050 = vsel %vm1003, %v2046, 0
    %v2053 = vsel %vm1019, %v2048, 0
    %2055 = vmatprep.subr.bf16.mxu0 0
    %2056 = vmatpush1.bf16.msra.mxu0 %v2053
    %2057 = vmatprep.subr.bf16.mxu0 0
    %2058 = vmatpush1.bf16.msra.mxu0 0
    %2059 = vmatprep.subr.bf16.mxu0 0
    %2060 = vmatpush1.bf16.msra.mxu0 0
    %2061 = vmatprep.subr.bf16.mxu0 0
    %2062 = vmatpush1.bf16.msra.mxu0 0
    %2063 = vmatprep.subr.bf16.mxu0 0
    %2064 = vmatpush1.bf16.msra.mxu0 0
    %2065 = vmatprep.subr.bf16.mxu0 0
    %2066 = vmatpush1.bf16.msra.mxu0 0
    %2067 = vmatprep.subr.bf16.mxu0 0
    %2068 = vmatpush1.bf16.msra.mxu0 0
    %2069 = vmatprep.subr.bf16.mxu0 0
    %2070 = vmatpush1.bf16.msra.mxu0 0
    %2071 = vmatprep.subr.bf16.mxu0 0
    %2072 = vmatpush1.bf16.msra.mxu0 0
    %2073 = vmatprep.subr.bf16.mxu0 0
    %2074 = vmatpush1.bf16.msra.mxu0 0
    %2075 = vmatprep.subr.bf16.mxu0 0
    %2076 = vmatpush1.bf16.msra.mxu0 0
    %2077 = vmatprep.subr.bf16.mxu0 0
    %2078 = vmatpush1.bf16.msra.mxu0 0
    %2079 = vmatprep.subr.bf16.mxu0 0
    %2080 = vmatpush1.bf16.msra.mxu0 0
    %2081 = vmatprep.subr.bf16.mxu0 0
    %2082 = vmatpush1.bf16.msra.mxu0 0
    %2083 = vmatprep.subr.bf16.mxu0 0
    %2084 = vmatpush1.bf16.msra.mxu0 0
    %2085 = vmatprep.subr.bf16.mxu0 0
    %2086 = vmatpush1.bf16.msra.mxu0 0
    %2087 = vmatprep.mubr.bf16.mxu0 0
    %2088 = vmatmul.mubr.bf16.gmra.mrb[0].mxu0 %v2050
    %v2089 = vpop.f32.mrb[0].mxu0
    %v2090 = vadd.f32 0.0, %v2089
    %v2091 = vpop.f32.mrb[0].mxu0
    %v2092 = vpop.f32.mrb[0].mxu0
    %v2093 = vpop.f32.mrb[0].mxu0
    %2094 = vdwg.mxu0
    %2096 = vrot.lane.b32.xlu0 %v2090, 32
    %v2097 = vpop.permute.xlu0 %2096
    %2099 = vst.msk [vmem:[#allocation2 + $0x10] sm:$0xff] %vm1182, %v2097
    %2100 = vrot.lane.b32.xlu0 %v1875, 64
    %v2101 = vpop.permute.xlu0 %2100
    %2102 = vrot.lane.b32.xlu0 %v1876, 64
    %v2103 = vpop.permute.xlu0 %2102
    %v2105 = vsel %vm955, %v2101, 0
    %v2108 = vsel %vm955, %v2103, 0
    %2110 = vmatprep.subr.bf16.mxu0 0
    %2111 = vmatpush1.bf16.xpose.msra.mxu0 %v2108
    %2112 = vmatprep.subr.bf16.mxu0 0
    %2113 = vmatpush1.bf16.xpose.msra.mxu0 0
    %2114 = vmatprep.subr.bf16.mxu0 0
    %2115 = vmatpush1.bf16.xpose.msra.mxu0 0
    %2116 = vmatprep.subr.bf16.mxu0 0
    %2117 = vmatpush1.bf16.xpose.msra.mxu0 0
    %2118 = vmatprep.subr.bf16.mxu0 0
    %2119 = vmatpush1.bf16.xpose.msra.mxu0 0
    %2120 = vmatprep.subr.bf16.mxu0 0
    %2121 = vmatpush1.bf16.xpose.msra.mxu0 0
    %2122 = vmatprep.subr.bf16.mxu0 0
    %2123 = vmatpush1.bf16.xpose.msra.mxu0 0
    %2124 = vmatprep.subr.bf16.mxu0 0
    %2125 = vmatpush1.bf16.xpose.msra.mxu0 0
    %2126 = vmatprep.subr.bf16.mxu0 0
    %2127 = vmatpush1.bf16.xpose.msra.mxu0 0
    %2128 = vmatprep.subr.bf16.mxu0 0
    %2129 = vmatpush1.bf16.xpose.msra.mxu0 0
    %2130 = vmatprep.subr.bf16.mxu0 0
    %2131 = vmatpush1.bf16.xpose.msra.mxu0 0
    %2132 = vmatprep.subr.bf16.mxu0 0
    %2133 = vmatpush1.bf16.xpose.msra.mxu0 0
    %2134 = vmatprep.subr.bf16.mxu0 0
    %2135 = vmatpush1.bf16.xpose.msra.mxu0 0
    %2136 = vmatprep.subr.bf16.mxu0 0
    %2137 = vmatpush1.bf16.xpose.msra.mxu0 0
    %2138 = vmatprep.subr.bf16.mxu0 0
    %2139 = vmatpush1.bf16.xpose.msra.mxu0 0
    %2140 = vmatprep.subr.bf16.mxu0 0
    %2141 = vmatpush1.bf16.xpose.msra.mxu0 0
    %2142 = vmatprep.mubr.bf16.mxu0 0
    %2143 = vmatmul.mubr.bf16.gmra.mrb[0].mxu0 %v2105
    %v2144 = vpop.f32.mrb[0].mxu0
    %v2145 = vadd.f32 0.0, %v2144
    %v2146 = vpop.f32.mrb[0].mxu0
    %v2147 = vpop.f32.mrb[0].mxu0
    %v2148 = vpop.f32.mrb[0].mxu0
    %2149 = vdwg.mxu0
    %v2150 = vmul.f32 %v2145, 0.17677669
    %v2151 = vsel %vm1003, %v2150, -inf
    %2152 = vmax.xlane.f32.xlu0 %v2151
    %v2153 = vpop.xlane.xlu0 %2152
    %v2154 = vsub.f32 %v2150, %v2153
    %v2155 = vmul.f32 %v2154, 1.442695
    %v2156 = vpow.pop %v2155
    %v2157 = vsel %vm1003, %v2156, 0.0
    %2158 = vadd.xlane.f32.xlu0 %v2157
    %v2159 = vpop.xlane.xlu0 %2158
    %v2160 = vrcp.pop %v2159
    %v2161 = vmul.f32 %v2156, %v2160
    %v2162 = vpack.c.bf16 %v2161, %v2161
    %2163 = vrot.lane.b32.xlu0 %v1936, 64
    %v2164 = vpop.permute.xlu0 %2163
    %v2166 = vsel %vm1003, %v2162, 0
    %v2169 = vsel %vm1019, %v2164, 0
    %2171 = vmatprep.subr.bf16.mxu0 0
    %2172 = vmatpush1.bf16.msra.mxu0 %v2169
    %2173 = vmatprep.subr.bf16.mxu0 0
    %2174 = vmatpush1.bf16.msra.mxu0 0
    %2175 = vmatprep.subr.bf16.mxu0 0
    %2176 = vmatpush1.bf16.msra.mxu0 0
    %2177 = vmatprep.subr.bf16.mxu0 0
    %2178 = vmatpush1.bf16.msra.mxu0 0
    %2179 = vmatprep.subr.bf16.mxu0 0
    %2180 = vmatpush1.bf16.msra.mxu0 0
    %2181 = vmatprep.subr.bf16.mxu0 0
    %2182 = vmatpush1.bf16.msra.mxu0 0
    %2183 = vmatprep.subr.bf16.mxu0 0
    %2184 = vmatpush1.bf16.msra.mxu0 0
    %2185 = vmatprep.subr.bf16.mxu0 0
    %2186 = vmatpush1.bf16.msra.mxu0 0
    %2187 = vmatprep.subr.bf16.mxu0 0
    %2188 = vmatpush1.bf16.msra.mxu0 0
    %2189 = vmatprep.subr.bf16.mxu0 0
    %2190 = vmatpush1.bf16.msra.mxu0 0
    %2191 = vmatprep.subr.bf16.mxu0 0
    %2192 = vmatpush1.bf16.msra.mxu0 0
    %2193 = vmatprep.subr.bf16.mxu0 0
    %2194 = vmatpush1.bf16.msra.mxu0 0
    %2195 = vmatprep.subr.bf16.mxu0 0
    %2196 = vmatpush1.bf16.msra.mxu0 0
    %2197 = vmatprep.subr.bf16.mxu0 0
    %2198 = vmatpush1.bf16.msra.mxu0 0
    %2199 = vmatprep.subr.bf16.mxu0 0
    %2200 = vmatpush1.bf16.msra.mxu0 0
    %2201 = vmatprep.subr.bf16.mxu0 0
    %2202 = vmatpush1.bf16.msra.mxu0 0
    %2203 = vmatprep.mubr.bf16.mxu0 0
    %2204 = vmatmul.mubr.bf16.gmra.mrb[0].mxu0 %v2166
    %v2205 = vpop.f32.mrb[0].mxu0
    %v2206 = vadd.f32 0.0, %v2205
    %v2207 = vpop.f32.mrb[0].mxu0
    %v2208 = vpop.f32.mrb[0].mxu0
    %v2209 = vpop.f32.mrb[0].mxu0
    %2210 = vdwg.mxu0
    %2212 = vrot.lane.b32.xlu0 %v2206, 64
    %v2213 = vpop.permute.xlu0 %2212
    %2215 = vst.msk [vmem:[#allocation2 + $0x10] sm:$0xff] %vm1299, %v2213
    %2216 = vrot.lane.b32.xlu0 %v1875, 32
    %v2217 = vpop.permute.xlu0 %2216
    %2218 = vrot.lane.b32.xlu0 %v1876, 32
    %v2219 = vpop.permute.xlu0 %2218
    %v2221 = vsel %vm955, %v2217, 0
    %v2224 = vsel %vm955, %v2219, 0
    %2226 = vmatprep.subr.bf16.mxu0 0
    %2227 = vmatpush1.bf16.xpose.msra.mxu0 %v2224
    %2228 = vmatprep.subr.bf16.mxu0 0
    %2229 = vmatpush1.bf16.xpose.msra.mxu0 0
    %2230 = vmatprep.subr.bf16.mxu0 0
    %2231 = vmatpush1.bf16.xpose.msra.mxu0 0
    %2232 = vmatprep.subr.bf16.mxu0 0
    %2233 = vmatpush1.bf16.xpose.msra.mxu0 0
    %2234 = vmatprep.subr.bf16.mxu0 0
    %2235 = vmatpush1.bf16.xpose.msra.mxu0 0
    %2236 = vmatprep.subr.bf16.mxu0 0
    %2237 = vmatpush1.bf16.xpose.msra.mxu0 0
    %2238 = vmatprep.subr.bf16.mxu0 0
    %2239 = vmatpush1.bf16.xpose.msra.mxu0 0
    %2240 = vmatprep.subr.bf16.mxu0 0
    %2241 = vmatpush1.bf16.xpose.msra.mxu0 0
    %2242 = vmatprep.subr.bf16.mxu0 0
    %2243 = vmatpush1.bf16.xpose.msra.mxu0 0
    %2244 = vmatprep.subr.bf16.mxu0 0
    %2245 = vmatpush1.bf16.xpose.msra.mxu0 0
    %2246 = vmatprep.subr.bf16.mxu0 0
    %2247 = vmatpush1.bf16.xpose.msra.mxu0 0
    %2248 = vmatprep.subr.bf16.mxu0 0
    %2249 = vmatpush1.bf16.xpose.msra.mxu0 0
    %2250 = vmatprep.subr.bf16.mxu0 0
    %2251 = vmatpush1.bf16.xpose.msra.mxu0 0
    %2252 = vmatprep.subr.bf16.mxu0 0
    %2253 = vmatpush1.bf16.xpose.msra.mxu0 0
    %2254 = vmatprep.subr.bf16.mxu0 0
    %2255 = vmatpush1.bf16.xpose.msra.mxu0 0
    %2256 = vmatprep.subr.bf16.mxu0 0
    %2257 = vmatpush1.bf16.xpose.msra.mxu0 0
    %2258 = vmatprep.mubr.bf16.mxu0 0
    %2259 = vmatmul.mubr.bf16.gmra.mrb[0].mxu0 %v2221
    %v2260 = vpop.f32.mrb[0].mxu0
    %v2261 = vadd.f32 0.0, %v2260
    %v2262 = vpop.f32.mrb[0].mxu0
    %v2263 = vpop.f32.mrb[0].mxu0
    %v2264 = vpop.f32.mrb[0].mxu0
    %2265 = vdwg.mxu0
    %v2266 = vmul.f32 %v2261, 0.17677669
    %v2267 = vsel %vm1003, %v2266, -inf
    %2268 = vmax.xlane.f32.xlu0 %v2267
    %v2269 = vpop.xlane.xlu0 %2268
    %v2270 = vsub.f32 %v2266, %v2269
    %v2271 = vmul.f32 %v2270, 1.442695
    %v2272 = vpow.pop %v2271
    %v2273 = vsel %vm1003, %v2272, 0.0
    %2274 = vadd.xlane.f32.xlu0 %v2273
    %v2275 = vpop.xlane.xlu0 %2274
    %v2276 = vrcp.pop %v2275
    %v2277 = vmul.f32 %v2272, %v2276
    %v2278 = vpack.c.bf16 %v2277, %v2277
    %2279 = vrot.lane.b32.xlu0 %v1936, 32
    %v2280 = vpop.permute.xlu0 %2279
    %v2282 = vsel %vm1003, %v2278, 0
    %v2285 = vsel %vm1019, %v2280, 0
    %2287 = vmatprep.subr.bf16.mxu0 0
    %2288 = vmatpush1.bf16.msra.mxu0 %v2285
    %2289 = vmatprep.subr.bf16.mxu0 0
    %2290 = vmatpush1.bf16.msra.mxu0 0
    %2291 = vmatprep.subr.bf16.mxu0 0
    %2292 = vmatpush1.bf16.msra.mxu0 0
    %2293 = vmatprep.subr.bf16.mxu0 0
    %2294 = vmatpush1.bf16.msra.mxu0 0
    %2295 = vmatprep.subr.bf16.mxu0 0
    %2296 = vmatpush1.bf16.msra.mxu0 0
    %2297 = vmatprep.subr.bf16.mxu0 0
    %2298 = vmatpush1.bf16.msra.mxu0 0
    %2299 = vmatprep.subr.bf16.mxu0 0
    %2300 = vmatpush1.bf16.msra.mxu0 0
    %2301 = vmatprep.subr.bf16.mxu0 0
    %2302 = vmatpush1.bf16.msra.mxu0 0
    %2303 = vmatprep.subr.bf16.mxu0 0
    %2304 = vmatpush1.bf16.msra.mxu0 0
    %2305 = vmatprep.subr.bf16.mxu0 0
    %2306 = vmatpush1.bf16.msra.mxu0 0
    %2307 = vmatprep.subr.bf16.mxu0 0
    %2308 = vmatpush1.bf16.msra.mxu0 0
    %2309 = vmatprep.subr.bf16.mxu0 0
    %2310 = vmatpush1.bf16.msra.mxu0 0
    %2311 = vmatprep.subr.bf16.mxu0 0
    %2312 = vmatpush1.bf16.msra.mxu0 0
    %2313 = vmatprep.subr.bf16.mxu0 0
    %2314 = vmatpush1.bf16.msra.mxu0 0
    %2315 = vmatprep.subr.bf16.mxu0 0
    %2316 = vmatpush1.bf16.msra.mxu0 0
    %2317 = vmatprep.subr.bf16.mxu0 0
    %2318 = vmatpush1.bf16.msra.mxu0 0
    %2319 = vmatprep.mubr.bf16.mxu0 0
    %2320 = vmatmul.mubr.bf16.gmra.mrb[0].mxu0 %v2282
    %v2321 = vpop.f32.mrb[0].mxu0
    %v2322 = vadd.f32 0.0, %v2321
    %v2323 = vpop.f32.mrb[0].mxu0
    %v2324 = vpop.f32.mrb[0].mxu0
    %v2325 = vpop.f32.mrb[0].mxu0
    %2326 = vdwg.mxu0
    %2328 = vrot.lane.b32.xlu0 %v2322, 96
    %v2329 = vpop.permute.xlu0 %2328
    %2331 = vst.msk [vmem:[#allocation2 + $0x10] sm:$0xff] %vm1416, %v2329
    %v2332 = vrot.slane %v950, 4
    %v2333 = vrot.slane %v952, 4
    %v2335 = vsel %vm955, %v2332, 0
    %v2338 = vsel %vm955, %v2333, 0
    %2340 = vmatprep.subr.bf16.mxu0 0
    %2341 = vmatpush1.bf16.xpose.msra.mxu0 %v2338
    %2342 = vmatprep.subr.bf16.mxu0 0
    %2343 = vmatpush1.bf16.xpose.msra.mxu0 0
    %2344 = vmatprep.subr.bf16.mxu0 0
    %2345 = vmatpush1.bf16.xpose.msra.mxu0 0
    %2346 = vmatprep.subr.bf16.mxu0 0
    %2347 = vmatpush1.bf16.xpose.msra.mxu0 0
    %2348 = vmatprep.subr.bf16.mxu0 0
    %2349 = vmatpush1.bf16.xpose.msra.mxu0 0
    %2350 = vmatprep.subr.bf16.mxu0 0
    %2351 = vmatpush1.bf16.xpose.msra.mxu0 0
    %2352 = vmatprep.subr.bf16.mxu0 0
    %2353 = vmatpush1.bf16.xpose.msra.mxu0 0
    %2354 = vmatprep.subr.bf16.mxu0 0
    %2355 = vmatpush1.bf16.xpose.msra.mxu0 0
    %2356 = vmatprep.subr.bf16.mxu0 0
    %2357 = vmatpush1.bf16.xpose.msra.mxu0 0
    %2358 = vmatprep.subr.bf16.mxu0 0
    %2359 = vmatpush1.bf16.xpose.msra.mxu0 0
    %2360 = vmatprep.subr.bf16.mxu0 0
    %2361 = vmatpush1.bf16.xpose.msra.mxu0 0
    %2362 = vmatprep.subr.bf16.mxu0 0
    %2363 = vmatpush1.bf16.xpose.msra.mxu0 0
    %2364 = vmatprep.subr.bf16.mxu0 0
    %2365 = vmatpush1.bf16.xpose.msra.mxu0 0
    %2366 = vmatprep.subr.bf16.mxu0 0
    %2367 = vmatpush1.bf16.xpose.msra.mxu0 0
    %2368 = vmatprep.subr.bf16.mxu0 0
    %2369 = vmatpush1.bf16.xpose.msra.mxu0 0
    %2370 = vmatprep.subr.bf16.mxu0 0
    %2371 = vmatpush1.bf16.xpose.msra.mxu0 0
    %2372 = vmatprep.mubr.bf16.mxu0 0
    %2373 = vmatmul.mubr.bf16.gmra.mrb[0].mxu0 %v2335
    %v2374 = vpop.f32.mrb[0].mxu0
    %v2375 = vadd.f32 0.0, %v2374
    %v2376 = vpop.f32.mrb[0].mxu0
    %v2377 = vpop.f32.mrb[0].mxu0
    %v2378 = vpop.f32.mrb[0].mxu0
    %2379 = vdwg.mxu0
    %v2380 = vmul.f32 %v2375, 0.17677669
    %v2381 = vsel %vm1003, %v2380, -inf
    %2382 = vmax.xlane.f32.xlu0 %v2381
    %v2383 = vpop.xlane.xlu0 %2382
    %v2384 = vsub.f32 %v2380, %v2383
    %v2385 = vmul.f32 %v2384, 1.442695
    %v2386 = vpow.pop %v2385
    %v2387 = vsel %vm1003, %v2386, 0.0
    %2388 = vadd.xlane.f32.xlu0 %v2387
    %v2389 = vpop.xlane.xlu0 %2388
    %v2390 = vrcp.pop %v2389
    %v2391 = vmul.f32 %v2386, %v2390
    %v2392 = vpack.c.bf16 %v2391, %v2391
    %v2393 = vrot.slane %v954, 4
    %v2395 = vsel %vm1003, %v2392, 0
    %v2398 = vsel %vm1019, %v2393, 0
    %2400 = vmatprep.subr.bf16.mxu0 0
    %2401 = vmatpush1.bf16.msra.mxu0 %v2398
    %2402 = vmatprep.subr.bf16.mxu0 0
    %2403 = vmatpush1.bf16.msra.mxu0 0
    %2404 = vmatprep.subr.bf16.mxu0 0
    %2405 = vmatpush1.bf16.msra.mxu0 0
    %2406 = vmatprep.subr.bf16.mxu0 0
    %2407 = vmatpush1.bf16.msra.mxu0 0
    %2408 = vmatprep.subr.bf16.mxu0 0
    %2409 = vmatpush1.bf16.msra.mxu0 0
    %2410 = vmatprep.subr.bf16.mxu0 0
    %2411 = vmatpush1.bf16.msra.mxu0 0
    %2412 = vmatprep.subr.bf16.mxu0 0
    %2413 = vmatpush1.bf16.msra.mxu0 0
    %2414 = vmatprep.subr.bf16.mxu0 0
    %2415 = vmatpush1.bf16.msra.mxu0 0
    %2416 = vmatprep.subr.bf16.mxu0 0
    %2417 = vmatpush1.bf16.msra.mxu0 0
    %2418 = vmatprep.subr.bf16.mxu0 0
    %2419 = vmatpush1.bf16.msra.mxu0 0
    %2420 = vmatprep.subr.bf16.mxu0 0
    %2421 = vmatpush1.bf16.msra.mxu0 0
    %2422 = vmatprep.subr.bf16.mxu0 0
    %2423 = vmatpush1.bf16.msra.mxu0 0
    %2424 = vmatprep.subr.bf16.mxu0 0
    %2425 = vmatpush1.bf16.msra.mxu0 0
    %2426 = vmatprep.subr.bf16.mxu0 0
    %2427 = vmatpush1.bf16.msra.mxu0 0
    %2428 = vmatprep.subr.bf16.mxu0 0
    %2429 = vmatpush1.bf16.msra.mxu0 0
    %2430 = vmatprep.subr.bf16.mxu0 0
    %2431 = vmatpush1.bf16.msra.mxu0 0
    %2432 = vmatprep.mubr.bf16.mxu0 0
    %2433 = vmatmul.mubr.bf16.gmra.mrb[0].mxu0 %v2395
    %v2434 = vpop.f32.mrb[0].mxu0
    %v2435 = vadd.f32 0.0, %v2434
    %v2436 = vpop.f32.mrb[0].mxu0
    %v2437 = vpop.f32.mrb[0].mxu0
    %v2438 = vpop.f32.mrb[0].mxu0
    %2439 = vdwg.mxu0
    %2440 = vst.msk [vmem:[#allocation2 + $0x18] sm:$0xff] %vm955, %v2435
    %2441 = vrot.lane.b32.xlu0 %v2332, 96
    %v2442 = vpop.permute.xlu0 %2441
    %2443 = vrot.lane.b32.xlu0 %v2333, 96
    %v2444 = vpop.permute.xlu0 %2443
    %v2446 = vsel %vm955, %v2442, 0
    %v2449 = vsel %vm955, %v2444, 0
    %2451 = vmatprep.subr.bf16.mxu0 0
    %2452 = vmatpush1.bf16.xpose.msra.mxu0 %v2449
    %2453 = vmatprep.subr.bf16.mxu0 0
    %2454 = vmatpush1.bf16.xpose.msra.mxu0 0
    %2455 = vmatprep.subr.bf16.mxu0 0
    %2456 = vmatpush1.bf16.xpose.msra.mxu0 0
    %2457 = vmatprep.subr.bf16.mxu0 0
    %2458 = vmatpush1.bf16.xpose.msra.mxu0 0
    %2459 = vmatprep.subr.bf16.mxu0 0
    %2460 = vmatpush1.bf16.xpose.msra.mxu0 0
    %2461 = vmatprep.subr.bf16.mxu0 0
    %2462 = vmatpush1.bf16.xpose.msra.mxu0 0
    %2463 = vmatprep.subr.bf16.mxu0 0
    %2464 = vmatpush1.bf16.xpose.msra.mxu0 0
    %2465 = vmatprep.subr.bf16.mxu0 0
    %2466 = vmatpush1.bf16.xpose.msra.mxu0 0
    %2467 = vmatprep.subr.bf16.mxu0 0
    %2468 = vmatpush1.bf16.xpose.msra.mxu0 0
    %2469 = vmatprep.subr.bf16.mxu0 0
    %2470 = vmatpush1.bf16.xpose.msra.mxu0 0
    %2471 = vmatprep.subr.bf16.mxu0 0
    %2472 = vmatpush1.bf16.xpose.msra.mxu0 0
    %2473 = vmatprep.subr.bf16.mxu0 0
    %2474 = vmatpush1.bf16.xpose.msra.mxu0 0
    %2475 = vmatprep.subr.bf16.mxu0 0
    %2476 = vmatpush1.bf16.xpose.msra.mxu0 0
    %2477 = vmatprep.subr.bf16.mxu0 0
    %2478 = vmatpush1.bf16.xpose.msra.mxu0 0
    %2479 = vmatprep.subr.bf16.mxu0 0
    %2480 = vmatpush1.bf16.xpose.msra.mxu0 0
    %2481 = vmatprep.subr.bf16.mxu0 0
    %2482 = vmatpush1.bf16.xpose.msra.mxu0 0
    %2483 = vmatprep.mubr.bf16.mxu0 0
    %2484 = vmatmul.mubr.bf16.gmra.mrb[0].mxu0 %v2446
    %v2485 = vpop.f32.mrb[0].mxu0
    %v2486 = vadd.f32 0.0, %v2485
    %v2487 = vpop.f32.mrb[0].mxu0
    %v2488 = vpop.f32.mrb[0].mxu0
    %v2489 = vpop.f32.mrb[0].mxu0
    %2490 = vdwg.mxu0
    %v2491 = vmul.f32 %v2486, 0.17677669
    %v2492 = vsel %vm1003, %v2491, -inf
    %2493 = vmax.xlane.f32.xlu0 %v2492
    %v2494 = vpop.xlane.xlu0 %2493
    %v2495 = vsub.f32 %v2491, %v2494
    %v2496 = vmul.f32 %v2495, 1.442695
    %v2497 = vpow.pop %v2496
    %v2498 = vsel %vm1003, %v2497, 0.0
    %2499 = vadd.xlane.f32.xlu0 %v2498
    %v2500 = vpop.xlane.xlu0 %2499
    %v2501 = vrcp.pop %v2500
    %v2502 = vmul.f32 %v2497, %v2501
    %v2503 = vpack.c.bf16 %v2502, %v2502
    %2504 = vrot.lane.b32.xlu0 %v2393, 96
    %v2505 = vpop.permute.xlu0 %2504
    %v2507 = vsel %vm1003, %v2503, 0
    %v2510 = vsel %vm1019, %v2505, 0
    %2512 = vmatprep.subr.bf16.mxu0 0
    %2513 = vmatpush1.bf16.msra.mxu0 %v2510
    %2514 = vmatprep.subr.bf16.mxu0 0
    %2515 = vmatpush1.bf16.msra.mxu0 0
    %2516 = vmatprep.subr.bf16.mxu0 0
    %2517 = vmatpush1.bf16.msra.mxu0 0
    %2518 = vmatprep.subr.bf16.mxu0 0
    %2519 = vmatpush1.bf16.msra.mxu0 0
    %2520 = vmatprep.subr.bf16.mxu0 0
    %2521 = vmatpush1.bf16.msra.mxu0 0
    %2522 = vmatprep.subr.bf16.mxu0 0
    %2523 = vmatpush1.bf16.msra.mxu0 0
    %2524 = vmatprep.subr.bf16.mxu0 0
    %2525 = vmatpush1.bf16.msra.mxu0 0
    %2526 = vmatprep.subr.bf16.mxu0 0
    %2527 = vmatpush1.bf16.msra.mxu0 0
    %2528 = vmatprep.subr.bf16.mxu0 0
    %2529 = vmatpush1.bf16.msra.mxu0 0
    %2530 = vmatprep.subr.bf16.mxu0 0
    %2531 = vmatpush1.bf16.msra.mxu0 0
    %2532 = vmatprep.subr.bf16.mxu0 0
    %2533 = vmatpush1.bf16.msra.mxu0 0
    %2534 = vmatprep.subr.bf16.mxu0 0
    %2535 = vmatpush1.bf16.msra.mxu0 0
    %2536 = vmatprep.subr.bf16.mxu0 0
    %2537 = vmatpush1.bf16.msra.mxu0 0
    %2538 = vmatprep.subr.bf16.mxu0 0
    %2539 = vmatpush1.bf16.msra.mxu0 0
    %2540 = vmatprep.subr.bf16.mxu0 0
    %2541 = vmatpush1.bf16.msra.mxu0 0
    %2542 = vmatprep.subr.bf16.mxu0 0
    %2543 = vmatpush1.bf16.msra.mxu0 0
    %2544 = vmatprep.mubr.bf16.mxu0 0
    %2545 = vmatmul.mubr.bf16.gmra.mrb[0].mxu0 %v2507
    %v2546 = vpop.f32.mrb[0].mxu0
    %v2547 = vadd.f32 0.0, %v2546
    %v2548 = vpop.f32.mrb[0].mxu0
    %v2549 = vpop.f32.mrb[0].mxu0
    %v2550 = vpop.f32.mrb[0].mxu0
    %2551 = vdwg.mxu0
    %2553 = vrot.lane.b32.xlu0 %v2547, 32
    %v2554 = vpop.permute.xlu0 %2553
    %2556 = vst.msk [vmem:[#allocation2 + $0x18] sm:$0xff] %vm1182, %v2554
    %2557 = vrot.lane.b32.xlu0 %v2332, 64
    %v2558 = vpop.permute.xlu0 %2557
    %2559 = vrot.lane.b32.xlu0 %v2333, 64
    %v2560 = vpop.permute.xlu0 %2559
    %v2562 = vsel %vm955, %v2558, 0
    %v2565 = vsel %vm955, %v2560, 0
    %2567 = vmatprep.subr.bf16.mxu0 0
    %2568 = vmatpush1.bf16.xpose.msra.mxu0 %v2565
    %2569 = vmatprep.subr.bf16.mxu0 0
    %2570 = vmatpush1.bf16.xpose.msra.mxu0 0
    %2571 = vmatprep.subr.bf16.mxu0 0
    %2572 = vmatpush1.bf16.xpose.msra.mxu0 0
    %2573 = vmatprep.subr.bf16.mxu0 0
    %2574 = vmatpush1.bf16.xpose.msra.mxu0 0
    %2575 = vmatprep.subr.bf16.mxu0 0
    %2576 = vmatpush1.bf16.xpose.msra.mxu0 0
    %2577 = vmatprep.subr.bf16.mxu0 0
    %2578 = vmatpush1.bf16.xpose.msra.mxu0 0
    %2579 = vmatprep.subr.bf16.mxu0 0
    %2580 = vmatpush1.bf16.xpose.msra.mxu0 0
    %2581 = vmatprep.subr.bf16.mxu0 0
    %2582 = vmatpush1.bf16.xpose.msra.mxu0 0
    %2583 = vmatprep.subr.bf16.mxu0 0
    %2584 = vmatpush1.bf16.xpose.msra.mxu0 0
    %2585 = vmatprep.subr.bf16.mxu0 0
    %2586 = vmatpush1.bf16.xpose.msra.mxu0 0
    %2587 = vmatprep.subr.bf16.mxu0 0
    %2588 = vmatpush1.bf16.xpose.msra.mxu0 0
    %2589 = vmatprep.subr.bf16.mxu0 0
    %2590 = vmatpush1.bf16.xpose.msra.mxu0 0
    %2591 = vmatprep.subr.bf16.mxu0 0
    %2592 = vmatpush1.bf16.xpose.msra.mxu0 0
    %2593 = vmatprep.subr.bf16.mxu0 0
    %2594 = vmatpush1.bf16.xpose.msra.mxu0 0
    %2595 = vmatprep.subr.bf16.mxu0 0
    %2596 = vmatpush1.bf16.xpose.msra.mxu0 0
    %2597 = vmatprep.subr.bf16.mxu0 0
    %2598 = vmatpush1.bf16.xpose.msra.mxu0 0
    %2599 = vmatprep.mubr.bf16.mxu0 0
    %2600 = vmatmul.mubr.bf16.gmra.mrb[0].mxu0 %v2562
    %v2601 = vpop.f32.mrb[0].mxu0
    %v2602 = vadd.f32 0.0, %v2601
    %v2603 = vpop.f32.mrb[0].mxu0
    %v2604 = vpop.f32.mrb[0].mxu0
    %v2605 = vpop.f32.mrb[0].mxu0
    %2606 = vdwg.mxu0
    %v2607 = vmul.f32 %v2602, 0.17677669
    %v2608 = vsel %vm1003, %v2607, -inf
    %2609 = vmax.xlane.f32.xlu0 %v2608
    %v2610 = vpop.xlane.xlu0 %2609
    %v2611 = vsub.f32 %v2607, %v2610
    %v2612 = vmul.f32 %v2611, 1.442695
    %v2613 = vpow.pop %v2612
    %v2614 = vsel %vm1003, %v2613, 0.0
    %2615 = vadd.xlane.f32.xlu0 %v2614
    %v2616 = vpop.xlane.xlu0 %2615
    %v2617 = vrcp.pop %v2616
    %v2618 = vmul.f32 %v2613, %v2617
    %v2619 = vpack.c.bf16 %v2618, %v2618
    %2620 = vrot.lane.b32.xlu0 %v2393, 64
    %v2621 = vpop.permute.xlu0 %2620
    %v2623 = vsel %vm1003, %v2619, 0
    %v2626 = vsel %vm1019, %v2621, 0
    %2628 = vmatprep.subr.bf16.mxu0 0
    %2629 = vmatpush1.bf16.msra.mxu0 %v2626
    %2630 = vmatprep.subr.bf16.mxu0 0
    %2631 = vmatpush1.bf16.msra.mxu0 0
    %2632 = vmatprep.subr.bf16.mxu0 0
    %2633 = vmatpush1.bf16.msra.mxu0 0
    %2634 = vmatprep.subr.bf16.mxu0 0
    %2635 = vmatpush1.bf16.msra.mxu0 0
    %2636 = vmatprep.subr.bf16.mxu0 0
    %2637 = vmatpush1.bf16.msra.mxu0 0
    %2638 = vmatprep.subr.bf16.mxu0 0
    %2639 = vmatpush1.bf16.msra.mxu0 0
    %2640 = vmatprep.subr.bf16.mxu0 0
    %2641 = vmatpush1.bf16.msra.mxu0 0
    %2642 = vmatprep.subr.bf16.mxu0 0
    %2643 = vmatpush1.bf16.msra.mxu0 0
    %2644 = vmatprep.subr.bf16.mxu0 0
    %2645 = vmatpush1.bf16.msra.mxu0 0
    %2646 = vmatprep.subr.bf16.mxu0 0
    %2647 = vmatpush1.bf16.msra.mxu0 0
    %2648 = vmatprep.subr.bf16.mxu0 0
    %2649 = vmatpush1.bf16.msra.mxu0 0
    %2650 = vmatprep.subr.bf16.mxu0 0
    %2651 = vmatpush1.bf16.msra.mxu0 0
    %2652 = vmatprep.subr.bf16.mxu0 0
    %2653 = vmatpush1.bf16.msra.mxu0 0
    %2654 = vmatprep.subr.bf16.mxu0 0
    %2655 = vmatpush1.bf16.msra.mxu0 0
    %2656 = vmatprep.subr.bf16.mxu0 0
    %2657 = vmatpush1.bf16.msra.mxu0 0
    %2658 = vmatprep.subr.bf16.mxu0 0
    %2659 = vmatpush1.bf16.msra.mxu0 0
    %2660 = vmatprep.mubr.bf16.mxu0 0
    %2661 = vmatmul.mubr.bf16.gmra.mrb[0].mxu0 %v2623
    %v2662 = vpop.f32.mrb[0].mxu0
    %v2663 = vadd.f32 0.0, %v2662
    %v2664 = vpop.f32.mrb[0].mxu0
    %v2665 = vpop.f32.mrb[0].mxu0
    %v2666 = vpop.f32.mrb[0].mxu0
    %2667 = vdwg.mxu0
    %2669 = vrot.lane.b32.xlu0 %v2663, 64
    %v2670 = vpop.permute.xlu0 %2669
    %2672 = vst.msk [vmem:[#allocation2 + $0x18] sm:$0xff] %vm1299, %v2670
    %2673 = vrot.lane.b32.xlu0 %v2332, 32
    %v2674 = vpop.permute.xlu0 %2673
    %2675 = vrot.lane.b32.xlu0 %v2333, 32
    %v2676 = vpop.permute.xlu0 %2675
    %v2678 = vsel %vm955, %v2674, 0
    %v2681 = vsel %vm955, %v2676, 0
    %2683 = vmatprep.subr.bf16.mxu0 0
    %2684 = vmatpush1.bf16.xpose.msra.mxu0 %v2681
    %2685 = vmatprep.subr.bf16.mxu0 0
    %2686 = vmatpush1.bf16.xpose.msra.mxu0 0
    %2687 = vmatprep.subr.bf16.mxu0 0
    %2688 = vmatpush1.bf16.xpose.msra.mxu0 0
    %2689 = vmatprep.subr.bf16.mxu0 0
    %2690 = vmatpush1.bf16.xpose.msra.mxu0 0
    %2691 = vmatprep.subr.bf16.mxu0 0
    %2692 = vmatpush1.bf16.xpose.msra.mxu0 0
    %2693 = vmatprep.subr.bf16.mxu0 0
    %2694 = vmatpush1.bf16.xpose.msra.mxu0 0
    %2695 = vmatprep.subr.bf16.mxu0 0
    %2696 = vmatpush1.bf16.xpose.msra.mxu0 0
    %2697 = vmatprep.subr.bf16.mxu0 0
    %2698 = vmatpush1.bf16.xpose.msra.mxu0 0
    %2699 = vmatprep.subr.bf16.mxu0 0
    %2700 = vmatpush1.bf16.xpose.msra.mxu0 0
    %2701 = vmatprep.subr.bf16.mxu0 0
    %2702 = vmatpush1.bf16.xpose.msra.mxu0 0
    %2703 = vmatprep.subr.bf16.mxu0 0
    %2704 = vmatpush1.bf16.xpose.msra.mxu0 0
    %2705 = vmatprep.subr.bf16.mxu0 0
    %2706 = vmatpush1.bf16.xpose.msra.mxu0 0
    %2707 = vmatprep.subr.bf16.mxu0 0
    %2708 = vmatpush1.bf16.xpose.msra.mxu0 0
    %2709 = vmatprep.subr.bf16.mxu0 0
    %2710 = vmatpush1.bf16.xpose.msra.mxu0 0
    %2711 = vmatprep.subr.bf16.mxu0 0
    %2712 = vmatpush1.bf16.xpose.msra.mxu0 0
    %2713 = vmatprep.subr.bf16.mxu0 0
    %2714 = vmatpush1.bf16.xpose.msra.mxu0 0
    %2715 = vmatprep.mubr.bf16.mxu0 0
    %2716 = vmatmul.mubr.bf16.gmra.mrb[0].mxu0 %v2678
    %v2717 = vpop.f32.mrb[0].mxu0
    %v2718 = vadd.f32 0.0, %v2717
    %v2719 = vpop.f32.mrb[0].mxu0
    %v2720 = vpop.f32.mrb[0].mxu0
    %v2721 = vpop.f32.mrb[0].mxu0
    %2722 = vdwg.mxu0
    %v2723 = vmul.f32 %v2718, 0.17677669
    %v2724 = vsel %vm1003, %v2723, -inf
    %2725 = vmax.xlane.f32.xlu0 %v2724
    %v2726 = vpop.xlane.xlu0 %2725
    %v2727 = vsub.f32 %v2723, %v2726
    %v2728 = vmul.f32 %v2727, 1.442695
    %v2729 = vpow.pop %v2728
    %v2730 = vsel %vm1003, %v2729, 0.0
    %2731 = vadd.xlane.f32.xlu0 %v2730
    %v2732 = vpop.xlane.xlu0 %2731
    %v2733 = vrcp.pop %v2732
    %v2734 = vmul.f32 %v2729, %v2733
    %v2735 = vpack.c.bf16 %v2734, %v2734
    %2736 = vrot.lane.b32.xlu0 %v2393, 32
    %v2737 = vpop.permute.xlu0 %2736
    %v2739 = vsel %vm1003, %v2735, 0
    %v2742 = vsel %vm1019, %v2737, 0
    %2744 = vmatprep.subr.bf16.mxu0 0
    %2745 = vmatpush1.bf16.msra.mxu0 %v2742
    %2746 = vmatprep.subr.bf16.mxu0 0
    %2747 = vmatpush1.bf16.msra.mxu0 0
    %2748 = vmatprep.subr.bf16.mxu0 0
    %2749 = vmatpush1.bf16.msra.mxu0 0
    %2750 = vmatprep.subr.bf16.mxu0 0
    %2751 = vmatpush1.bf16.msra.mxu0 0
    %2752 = vmatprep.subr.bf16.mxu0 0
    %2753 = vmatpush1.bf16.msra.mxu0 0
    %2754 = vmatprep.subr.bf16.mxu0 0
    %2755 = vmatpush1.bf16.msra.mxu0 0
    %2756 = vmatprep.subr.bf16.mxu0 0
    %2757 = vmatpush1.bf16.msra.mxu0 0
    %2758 = vmatprep.subr.bf16.mxu0 0
    %2759 = vmatpush1.bf16.msra.mxu0 0
    %2760 = vmatprep.subr.bf16.mxu0 0
    %2761 = vmatpush1.bf16.msra.mxu0 0
    %2762 = vmatprep.subr.bf16.mxu0 0
    %2763 = vmatpush1.bf16.msra.mxu0 0
    %2764 = vmatprep.subr.bf16.mxu0 0
    %2765 = vmatpush1.bf16.msra.mxu0 0
    %2766 = vmatprep.subr.bf16.mxu0 0
    %2767 = vmatpush1.bf16.msra.mxu0 0
    %2768 = vmatprep.subr.bf16.mxu0 0
    %2769 = vmatpush1.bf16.msra.mxu0 0
    %2770 = vmatprep.subr.bf16.mxu0 0
    %2771 = vmatpush1.bf16.msra.mxu0 0
    %2772 = vmatprep.subr.bf16.mxu0 0
    %2773 = vmatpush1.bf16.msra.mxu0 0
    %2774 = vmatprep.subr.bf16.mxu0 0
    %2775 = vmatpush1.bf16.msra.mxu0 0
    %2776 = vmatprep.mubr.bf16.mxu0 0
    %2777 = vmatmul.mubr.bf16.gmra.mrb[0].mxu0 %v2739
    %v2778 = vpop.f32.mrb[0].mxu0
    %v2779 = vadd.f32 0.0, %v2778
    %v2780 = vpop.f32.mrb[0].mxu0
    %v2781 = vpop.f32.mrb[0].mxu0
    %v2782 = vpop.f32.mrb[0].mxu0
    %2783 = vdwg.mxu0
    %2785 = vrot.lane.b32.xlu0 %v2779, 96
    %v2786 = vpop.permute.xlu0 %2785
    %2788 = vst.msk [vmem:[#allocation2 + $0x18] sm:$0xff] %vm1416, %v2786
    %v2789 = vld [vmem:[#allocation2] sm:$0xff]
    %v2790 = vld [vmem:[#allocation2 + $0x8] sm:$0xff]
    %v2791 = vld [vmem:[#allocation2 + $0x10] sm:$0xff]
    %v2792 = vld [vmem:[#allocation2 + $0x18] sm:$0xff]
    %v2793 = vpack.c.bf16 %v2791, %v2789
    %v2794 = vpack.c.bf16 %v2792, %v2790
    %v2795 = vld [vmem:[#allocation9] sm:$0xff]
    %v2796 = vld [vmem:[#allocation9 + $0x8] sm:$0xff]
    %v2797 = vld [vmem:[#allocation9 + $0x10] sm:$0xff]
    %v2798 = vld [vmem:[#allocation9 + $0x18] sm:$0xff]
    %v2799 = vld [vmem:[#allocation9 + $0x20] sm:$0xff]
    %v2800 = vld [vmem:[#allocation9 + $0x28] sm:$0xff]
    %v2801 = vld [vmem:[#allocation9 + $0x30] sm:$0xff]
    %v2802 = vld [vmem:[#allocation9 + $0x38] sm:$0xff]
    %v2803 = vld [vmem:[#allocation9 + $0x40] sm:$0xff]
    %v2804 = vld [vmem:[#allocation9 + $0x48] sm:$0xff]
    %v2805 = vld [vmem:[#allocation9 + $0x50] sm:$0xff]
    %v2806 = vld [vmem:[#allocation9 + $0x58] sm:$0xff]
    %v2807 = vld [vmem:[#allocation9 + $0x60] sm:$0xff]
    %v2808 = vld [vmem:[#allocation9 + $0x68] sm:$0xff]
    %v2809 = vld [vmem:[#allocation9 + $0x70] sm:$0xff]
    %v2810 = vld [vmem:[#allocation9 + $0x78] sm:$0xff]
    %v2811 = vld [vmem:[#allocation9 + $0x80] sm:$0xff]
    %v2812 = vld [vmem:[#allocation9 + $0x88] sm:$0xff]
    %v2813 = vld [vmem:[#allocation9 + $0x90] sm:$0xff]
    %v2814 = vld [vmem:[#allocation9 + $0x98] sm:$0xff]
    %v2815 = vld [vmem:[#allocation9 + $0xa0] sm:$0xff]
    %v2816 = vld [vmem:[#allocation9 + $0xa8] sm:$0xff]
    %v2817 = vld [vmem:[#allocation9 + $0xb0] sm:$0xff]
    %v2818 = vld [vmem:[#allocation9 + $0xb8] sm:$0xff]
    %v2819 = vld [vmem:[#allocation9 + $0xc0] sm:$0xff]
    %v2820 = vld [vmem:[#allocation9 + $0xc8] sm:$0xff]
    %v2821 = vld [vmem:[#allocation9 + $0xd0] sm:$0xff]
    %v2822 = vld [vmem:[#allocation9 + $0xd8] sm:$0xff]
    %v2823 = vld [vmem:[#allocation9 + $0xe0] sm:$0xff]
    %v2824 = vld [vmem:[#allocation9 + $0xe8] sm:$0xff]
    %v2825 = vld [vmem:[#allocation9 + $0xf0] sm:$0xff]
    %v2826 = vld [vmem:[#allocation9 + $0xf8] sm:$0xff]
    %v2827 = vld [vmem:[#allocation11] sm:$0x3]
    %v2829 = vlaneseq
    %v2830 = vshrl.u32 %v2829, 7
    %v2831 = vsub.s32 0, %v2830
    %v2832 = vrot.slane %v2827, %v2831
    %v2833 = vlaneseq
    %v2834 = vshrl.u32 %v2833, 7
    %v2835 = vsub.s32 1, %v2834
    %v2836 = vrot.slane %v2827, %v2835
    %v2871 = vunpack.c.l.b16 %v2795
    %v2872 = vunpack.c.h.b16 %v2795
    %v2873 = vunpack.c.l.b16 %v2796
    %v2874 = vunpack.c.h.b16 %v2796
    %v2875 = vunpack.c.l.b16 %v2797
    %v2876 = vunpack.c.h.b16 %v2797
    %v2877 = vunpack.c.l.b16 %v2798
    %v2878 = vunpack.c.h.b16 %v2798
    %v2879 = vunpack.c.l.b16 %v2799
    %v2880 = vunpack.c.h.b16 %v2799
    %v2881 = vunpack.c.l.b16 %v2800
    %v2882 = vunpack.c.h.b16 %v2800
    %v2883 = vunpack.c.l.b16 %v2801
    %v2884 = vunpack.c.h.b16 %v2801
    %v2885 = vunpack.c.l.b16 %v2802
    %v2886 = vunpack.c.h.b16 %v2802
    %v2887 = vunpack.c.l.b16 %v2803
    %v2888 = vunpack.c.h.b16 %v2803
    %v2889 = vunpack.c.l.b16 %v2804
    %v2890 = vunpack.c.h.b16 %v2804
    %v2891 = vunpack.c.l.b16 %v2805
    %v2892 = vunpack.c.h.b16 %v2805
    %v2893 = vunpack.c.l.b16 %v2806
    %v2894 = vunpack.c.h.b16 %v2806
    %v2895 = vunpack.c.l.b16 %v2807
    %v2896 = vunpack.c.h.b16 %v2807
    %v2897 = vunpack.c.l.b16 %v2808
    %v2898 = vunpack.c.h.b16 %v2808
    %v2899 = vunpack.c.l.b16 %v2809
    %v2900 = vunpack.c.h.b16 %v2809
    %v2901 = vunpack.c.l.b16 %v2810
    %v2902 = vunpack.c.h.b16 %v2810
    %v2903 = vunpack.c.l.b16 %v2811
    %v2904 = vunpack.c.h.b16 %v2811
    %v2905 = vunpack.c.l.b16 %v2812
    %v2906 = vunpack.c.h.b16 %v2812
    %v2907 = vunpack.c.l.b16 %v2813
    %v2908 = vunpack.c.h.b16 %v2813
    %v2909 = vunpack.c.l.b16 %v2814
    %v2910 = vunpack.c.h.b16 %v2814
    %v2911 = vunpack.c.l.b16 %v2815
    %v2912 = vunpack.c.h.b16 %v2815
    %v2913 = vunpack.c.l.b16 %v2816
    %v2914 = vunpack.c.h.b16 %v2816
    %v2915 = vunpack.c.l.b16 %v2817
    %v2916 = vunpack.c.h.b16 %v2817
    %v2917 = vunpack.c.l.b16 %v2818
    %v2918 = vunpack.c.h.b16 %v2818
    %v2919 = vunpack.c.l.b16 %v2819
    %v2920 = vunpack.c.h.b16 %v2819
    %v2921 = vunpack.c.l.b16 %v2820
    %v2922 = vunpack.c.h.b16 %v2820
    %v2923 = vunpack.c.l.b16 %v2821
    %v2924 = vunpack.c.h.b16 %v2821
    %v2925 = vunpack.c.l.b16 %v2822
    %v2926 = vunpack.c.h.b16 %v2822
    %v2927 = vunpack.c.l.b16 %v2823
    %v2928 = vunpack.c.h.b16 %v2823
    %v2929 = vunpack.c.l.b16 %v2824
    %v2930 = vunpack.c.h.b16 %v2824
    %v2931 = vunpack.c.l.b16 %v2825
    %v2932 = vunpack.c.h.b16 %v2825
    %v2933 = vunpack.c.l.b16 %v2826
    %v2934 = vunpack.c.h.b16 %v2826
    %v2935 = vpack.c.b16 %v2873, %v2871
    %v2936 = vpack.c.b16 %v2874, %v2872
    %v2937 = vpack.c.b16 %v2877, %v2875
    %v2938 = vpack.c.b16 %v2878, %v2876
    %v2939 = vpack.c.b16 %v2881, %v2879
    %v2940 = vpack.c.b16 %v2882, %v2880
    %v2941 = vpack.c.b16 %v2885, %v2883
    %v2942 = vpack.c.b16 %v2886, %v2884
    %v2943 = vpack.c.b16 %v2889, %v2887
    %v2944 = vpack.c.b16 %v2890, %v2888
    %v2945 = vpack.c.b16 %v2893, %v2891
    %v2946 = vpack.c.b16 %v2894, %v2892
    %v2947 = vpack.c.b16 %v2897, %v2895
    %v2948 = vpack.c.b16 %v2898, %v2896
    %v2949 = vpack.c.b16 %v2901, %v2899
    %v2950 = vpack.c.b16 %v2902, %v2900
    %v2951 = vpack.c.b16 %v2905, %v2903
    %v2952 = vpack.c.b16 %v2906, %v2904
    %v2953 = vpack.c.b16 %v2909, %v2907
    %v2954 = vpack.c.b16 %v2910, %v2908
    %v2955 = vpack.c.b16 %v2913, %v2911
    %v2956 = vpack.c.b16 %v2914, %v2912
    %v2957 = vpack.c.b16 %v2917, %v2915
    %v2958 = vpack.c.b16 %v2918, %v2916
    %v2959 = vpack.c.b16 %v2921, %v2919
    %v2960 = vpack.c.b16 %v2922, %v2920
    %v2961 = vpack.c.b16 %v2925, %v2923
    %v2962 = vpack.c.b16 %v2926, %v2924
    %v2963 = vpack.c.b16 %v2929, %v2927
    %v2964 = vpack.c.b16 %v2930, %v2928
    %v2965 = vpack.c.b16 %v2933, %v2931
    %v2966 = vpack.c.b16 %v2934, %v2932
    %2999 = vmatprep.subr.bf16.mxu0 %v2936
    %3000 = vmatpush1.bf16.msra.mxu0 %v2935
    %3001 = vmatprep.subr.bf16.mxu0 %v2938
    %3002 = vmatpush1.bf16.msra.mxu0 %v2937
    %3003 = vmatprep.subr.bf16.mxu0 %v2940
    %3004 = vmatpush1.bf16.msra.mxu0 %v2939
    %3005 = vmatprep.subr.bf16.mxu0 %v2942
    %3006 = vmatpush1.bf16.msra.mxu0 %v2941
    %3007 = vmatprep.subr.bf16.mxu0 %v2944
    %3008 = vmatpush1.bf16.msra.mxu0 %v2943
    %3009 = vmatprep.subr.bf16.mxu0 %v2946
    %3010 = vmatpush1.bf16.msra.mxu0 %v2945
    %3011 = vmatprep.subr.bf16.mxu0 %v2948
    %3012 = vmatpush1.bf16.msra.mxu0 %v2947
    %3013 = vmatprep.subr.bf16.mxu0 %v2950
    %3014 = vmatpush1.bf16.msra.mxu0 %v2949
    %3015 = vmatprep.subr.bf16.mxu0 %v2952
    %3016 = vmatpush1.bf16.msra.mxu0 %v2951
    %3017 = vmatprep.subr.bf16.mxu0 %v2954
    %3018 = vmatpush1.bf16.msra.mxu0 %v2953
    %3019 = vmatprep.subr.bf16.mxu0 %v2956
    %3020 = vmatpush1.bf16.msra.mxu0 %v2955
    %3021 = vmatprep.subr.bf16.mxu0 %v2958
    %3022 = vmatpush1.bf16.msra.mxu0 %v2957
    %3023 = vmatprep.subr.bf16.mxu0 %v2960
    %3024 = vmatpush1.bf16.msra.mxu0 %v2959
    %3025 = vmatprep.subr.bf16.mxu0 %v2962
    %3026 = vmatpush1.bf16.msra.mxu0 %v2961
    %3027 = vmatprep.subr.bf16.mxu0 %v2964
    %3028 = vmatpush1.bf16.msra.mxu0 %v2963
    %3029 = vmatprep.subr.bf16.mxu0 %v2966
    %3030 = vmatpush1.bf16.msra.mxu0 %v2965
    %3031 = vmatprep.mubr.bf16.mxu0 %v2794
    %3032 = vmatmul.mubr.bf16.gmra.mrb[0].mxu0 %v2793
    %v3033 = vpop.f32.mrb[0].mxu0
    %v3034 = vadd.f32 %v2832, %v3033
    %v3035 = vpop.f32.mrb[0].mxu0
    %v3036 = vadd.f32 %v2836, %v3035
    %v3037 = vpop.f32.mrb[0].mxu0
    %v3038 = vadd.f32 %v2832, %v3037
    %v3039 = vpop.f32.mrb[0].mxu0
    %v3040 = vadd.f32 %v2836, %v3039
    %3041 = vdwg.mxu0
    %v3042 = vadd.f32 %v3034, %v206
    %v3043 = vadd.f32 %v3036, %v207
    %v3044 = vadd.f32 %v3038, %v208
    %v3045 = vadd.f32 %v3040, %v209
    %v3046 = vld [vmem:[#allocation12] sm:$0x3]
    %v3047 = vld [vmem:[#allocation14] sm:$0x3]
    %v3048 = vadd.f32 %v3042, %v3043
    %3049 = vadd.xlane.f32.xlu0 %v3048
    %v3050 = vpop.xlane.xlu0 %3049
    %v3051 = vadd.f32 %v3044, %v3045
    %3052 = vadd.xlane.f32.xlu0 %v3051
    %v3053 = vpop.xlane.xlu0 %3052
    %v3054 = vrcp.pop 256.0
    %v3055 = vmul.f32 %v3050, %v3054
    %v3056 = vmul.f32 %v3053, %v3054
    %v3057 = vsub.f32 %v3042, %v3055
    %v3058 = vsub.f32 %v3043, %v3055
    %v3059 = vsub.f32 %v3044, %v3056
    %v3060 = vsub.f32 %v3045, %v3056
    %v3061 = vmul.f32 %v3057, %v3057
    %v3062 = vmul.f32 %v3058, %v3058
    %v3063 = vmul.f32 %v3059, %v3059
    %v3064 = vmul.f32 %v3060, %v3060
    %v3065 = vadd.f32 %v3061, %v3062
    %3066 = vadd.xlane.f32.xlu0 %v3065
    %v3067 = vpop.xlane.xlu0 %3066
    %v3068 = vadd.f32 %v3063, %v3064
    %3069 = vadd.xlane.f32.xlu0 %v3068
    %v3070 = vpop.xlane.xlu0 %3069
    %v3071 = vmul.f32 %v3067, %v3054
    %v3072 = vmul.f32 %v3070, %v3054
    %v3073 = vadd.f32 %v3071, 1e-05
    %v3074 = vadd.f32 %v3072, 1e-05
    %v3075 = vrsqrt.pop %v3073
    %v3076 = vrsqrt.pop %v3074
    %v3077 = vmul.f32 %v3057, %v3075
    %v3078 = vmul.f32 %v3058, %v3075
    %v3079 = vmul.f32 %v3059, %v3076
    %v3080 = vmul.f32 %v3060, %v3076
    %v3082 = vlaneseq
    %v3083 = vshrl.u32 %v3082, 7
    %v3084 = vsub.s32 0, %v3083
    %v3085 = vrot.slane %v3046, %v3084
    %v3086 = vlaneseq
    %v3087 = vshrl.u32 %v3086, 7
    %v3088 = vsub.s32 1, %v3087
    %v3089 = vrot.slane %v3046, %v3088
    %v3092 = vmul.f32 %v3077, %v3085
    %v3093 = vmul.f32 %v3078, %v3089
    %v3094 = vmul.f32 %v3079, %v3085
    %v3095 = vmul.f32 %v3080, %v3089
    %v3097 = vlaneseq
    %v3098 = vshrl.u32 %v3097, 7
    %v3099 = vsub.s32 0, %v3098
    %v3100 = vrot.slane %v3047, %v3099
    %v3101 = vlaneseq
    %v3102 = vshrl.u32 %v3101, 7
    %v3103 = vsub.s32 1, %v3102
    %v3104 = vrot.slane %v3047, %v3103
    %v3107 = vadd.f32 %v3092, %v3100
    %v3108 = vadd.f32 %v3093, %v3104
    %v3109 = vadd.f32 %v3094, %v3100
    %v3110 = vadd.f32 %v3095, %v3104
    %v3111 = vpack.c.bf16 %v3109, %v3107
    %v3112 = vpack.c.bf16 %v3110, %v3108
    %v3113 = vld [vmem:[#allocation15] sm:$0xff]
    %v3114 = vld [vmem:[#allocation15 + $0x8] sm:$0xff]
    %v3115 = vld [vmem:[#allocation15 + $0x10] sm:$0xff]
    %v3116 = vld [vmem:[#allocation15 + $0x18] sm:$0xff]
    %v3117 = vld [vmem:[#allocation15 + $0x20] sm:$0xff]
    %v3118 = vld [vmem:[#allocation15 + $0x28] sm:$0xff]
    %v3119 = vld [vmem:[#allocation15 + $0x30] sm:$0xff]
    %v3120 = vld [vmem:[#allocation15 + $0x38] sm:$0xff]
    %v3121 = vld [vmem:[#allocation15 + $0x40] sm:$0xff]
    %v3122 = vld [vmem:[#allocation15 + $0x48] sm:$0xff]
    %v3123 = vld [vmem:[#allocation15 + $0x50] sm:$0xff]
    %v3124 = vld [vmem:[#allocation15 + $0x58] sm:$0xff]
    %v3125 = vld [vmem:[#allocation15 + $0x60] sm:$0xff]
    %v3126 = vld [vmem:[#allocation15 + $0x68] sm:$0xff]
    %v3127 = vld [vmem:[#allocation15 + $0x70] sm:$0xff]
    %v3128 = vld [vmem:[#allocation15 + $0x78] sm:$0xff]
    %v3129 = vld [vmem:[#allocation15 + $0x80] sm:$0xff]
    %v3130 = vld [vmem:[#allocation15 + $0x88] sm:$0xff]
    %v3131 = vld [vmem:[#allocation15 + $0x90] sm:$0xff]
    %v3132 = vld [vmem:[#allocation15 + $0x98] sm:$0xff]
    %v3133 = vld [vmem:[#allocation15 + $0xa0] sm:$0xff]
    %v3134 = vld [vmem:[#allocation15 + $0xa8] sm:$0xff]
    %v3135 = vld [vmem:[#allocation15 + $0xb0] sm:$0xff]
    %v3136 = vld [vmem:[#allocation15 + $0xb8] sm:$0xff]
    %v3137 = vld [vmem:[#allocation15 + $0xc0] sm:$0xff]
    %v3138 = vld [vmem:[#allocation15 + $0xc8] sm:$0xff]
    %v3139 = vld [vmem:[#allocation15 + $0xd0] sm:$0xff]
    %v3140 = vld [vmem:[#allocation15 + $0xd8] sm:$0xff]
    %v3141 = vld [vmem:[#allocation15 + $0xe0] sm:$0xff]
    %v3142 = vld [vmem:[#allocation15 + $0xe8] sm:$0xff]
    %v3143 = vld [vmem:[#allocation15 + $0xf0] sm:$0xff]
    %v3144 = vld [vmem:[#allocation15 + $0xf8] sm:$0xff]
    %v3145 = vld [vmem:[#allocation15 + $0x100] sm:$0xff]
    %v3146 = vld [vmem:[#allocation15 + $0x108] sm:$0xff]
    %v3147 = vld [vmem:[#allocation15 + $0x110] sm:$0xff]
    %v3148 = vld [vmem:[#allocation15 + $0x118] sm:$0xff]
    %v3149 = vld [vmem:[#allocation15 + $0x120] sm:$0xff]
    %v3150 = vld [vmem:[#allocation15 + $0x128] sm:$0xff]
    %v3151 = vld [vmem:[#allocation15 + $0x130] sm:$0xff]
    %v3152 = vld [vmem:[#allocation15 + $0x138] sm:$0xff]
    %v3153 = vld [vmem:[#allocation15 + $0x140] sm:$0xff]
    %v3154 = vld [vmem:[#allocation15 + $0x148] sm:$0xff]
    %v3155 = vld [vmem:[#allocation15 + $0x150] sm:$0xff]
    %v3156 = vld [vmem:[#allocation15 + $0x158] sm:$0xff]
    %v3157 = vld [vmem:[#allocation15 + $0x160] sm:$0xff]
    %v3158 = vld [vmem:[#allocation15 + $0x168] sm:$0xff]
    %v3159 = vld [vmem:[#allocation15 + $0x170] sm:$0xff]
    %v3160 = vld [vmem:[#allocation15 + $0x178] sm:$0xff]
    %v3161 = vld [vmem:[#allocation15 + $0x180] sm:$0xff]
    %v3162 = vld [vmem:[#allocation15 + $0x188] sm:$0xff]
    %v3163 = vld [vmem:[#allocation15 + $0x190] sm:$0xff]
    %v3164 = vld [vmem:[#allocation15 + $0x198] sm:$0xff]
    %v3165 = vld [vmem:[#allocation15 + $0x1a0] sm:$0xff]
    %v3166 = vld [vmem:[#allocation15 + $0x1a8] sm:$0xff]
    %v3167 = vld [vmem:[#allocation15 + $0x1b0] sm:$0xff]
    %v3168 = vld [vmem:[#allocation15 + $0x1b8] sm:$0xff]
    %v3169 = vld [vmem:[#allocation15 + $0x1c0] sm:$0xff]
    %v3170 = vld [vmem:[#allocation15 + $0x1c8] sm:$0xff]
    %v3171 = vld [vmem:[#allocation15 + $0x1d0] sm:$0xff]
    %v3172 = vld [vmem:[#allocation15 + $0x1d8] sm:$0xff]
    %v3173 = vld [vmem:[#allocation15 + $0x1e0] sm:$0xff]
    %v3174 = vld [vmem:[#allocation15 + $0x1e8] sm:$0xff]
    %v3175 = vld [vmem:[#allocation15 + $0x1f0] sm:$0xff]
    %v3176 = vld [vmem:[#allocation15 + $0x1f8] sm:$0xff]
    %v3177 = vld [vmem:[#allocation15 + $0x200] sm:$0xff]
    %v3178 = vld [vmem:[#allocation15 + $0x208] sm:$0xff]
    %v3179 = vld [vmem:[#allocation15 + $0x210] sm:$0xff]
    %v3180 = vld [vmem:[#allocation15 + $0x218] sm:$0xff]
    %v3181 = vld [vmem:[#allocation15 + $0x220] sm:$0xff]
    %v3182 = vld [vmem:[#allocation15 + $0x228] sm:$0xff]
    %v3183 = vld [vmem:[#allocation15 + $0x230] sm:$0xff]
    %v3184 = vld [vmem:[#allocation15 + $0x238] sm:$0xff]
    %v3185 = vld [vmem:[#allocation15 + $0x240] sm:$0xff]
    %v3186 = vld [vmem:[#allocation15 + $0x248] sm:$0xff]
    %v3187 = vld [vmem:[#allocation15 + $0x250] sm:$0xff]
    %v3188 = vld [vmem:[#allocation15 + $0x258] sm:$0xff]
    %v3189 = vld [vmem:[#allocation15 + $0x260] sm:$0xff]
    %v3190 = vld [vmem:[#allocation15 + $0x268] sm:$0xff]
    %v3191 = vld [vmem:[#allocation15 + $0x270] sm:$0xff]
    %v3192 = vld [vmem:[#allocation15 + $0x278] sm:$0xff]
    %v3193 = vld [vmem:[#allocation15 + $0x280] sm:$0xff]
    %v3194 = vld [vmem:[#allocation15 + $0x288] sm:$0xff]
    %v3195 = vld [vmem:[#allocation15 + $0x290] sm:$0xff]
    %v3196 = vld [vmem:[#allocation15 + $0x298] sm:$0xff]
    %v3197 = vld [vmem:[#allocation15 + $0x2a0] sm:$0xff]
    %v3198 = vld [vmem:[#allocation15 + $0x2a8] sm:$0xff]
    %v3199 = vld [vmem:[#allocation15 + $0x2b0] sm:$0xff]
    %v3200 = vld [vmem:[#allocation15 + $0x2b8] sm:$0xff]
    %v3201 = vld [vmem:[#allocation15 + $0x2c0] sm:$0xff]
    %v3202 = vld [vmem:[#allocation15 + $0x2c8] sm:$0xff]
    %v3203 = vld [vmem:[#allocation15 + $0x2d0] sm:$0xff]
    %v3204 = vld [vmem:[#allocation15 + $0x2d8] sm:$0xff]
    %v3205 = vld [vmem:[#allocation15 + $0x2e0] sm:$0xff]
    %v3206 = vld [vmem:[#allocation15 + $0x2e8] sm:$0xff]
    %v3207 = vld [vmem:[#allocation15 + $0x2f0] sm:$0xff]
    %v3208 = vld [vmem:[#allocation15 + $0x2f8] sm:$0xff]
    %v3209 = vld [vmem:[#allocation15 + $0x300] sm:$0xff]
    %v3210 = vld [vmem:[#allocation15 + $0x308] sm:$0xff]
    %v3211 = vld [vmem:[#allocation15 + $0x310] sm:$0xff]
    %v3212 = vld [vmem:[#allocation15 + $0x318] sm:$0xff]
    %v3213 = vld [vmem:[#allocation15 + $0x320] sm:$0xff]
    %v3214 = vld [vmem:[#allocation15 + $0x328] sm:$0xff]
    %v3215 = vld [vmem:[#allocation15 + $0x330] sm:$0xff]
    %v3216 = vld [vmem:[#allocation15 + $0x338] sm:$0xff]
    %v3217 = vld [vmem:[#allocation15 + $0x340] sm:$0xff]
    %v3218 = vld [vmem:[#allocation15 + $0x348] sm:$0xff]
    %v3219 = vld [vmem:[#allocation15 + $0x350] sm:$0xff]
    %v3220 = vld [vmem:[#allocation15 + $0x358] sm:$0xff]
    %v3221 = vld [vmem:[#allocation15 + $0x360] sm:$0xff]
    %v3222 = vld [vmem:[#allocation15 + $0x368] sm:$0xff]
    %v3223 = vld [vmem:[#allocation15 + $0x370] sm:$0xff]
    %v3224 = vld [vmem:[#allocation15 + $0x378] sm:$0xff]
    %v3225 = vld [vmem:[#allocation15 + $0x380] sm:$0xff]
    %v3226 = vld [vmem:[#allocation15 + $0x388] sm:$0xff]
    %v3227 = vld [vmem:[#allocation15 + $0x390] sm:$0xff]
    %v3228 = vld [vmem:[#allocation15 + $0x398] sm:$0xff]
    %v3229 = vld [vmem:[#allocation15 + $0x3a0] sm:$0xff]
    %v3230 = vld [vmem:[#allocation15 + $0x3a8] sm:$0xff]
    %v3231 = vld [vmem:[#allocation15 + $0x3b0] sm:$0xff]
    %v3232 = vld [vmem:[#allocation15 + $0x3b8] sm:$0xff]
    %v3233 = vld [vmem:[#allocation15 + $0x3c0] sm:$0xff]
    %v3234 = vld [vmem:[#allocation15 + $0x3c8] sm:$0xff]
    %v3235 = vld [vmem:[#allocation15 + $0x3d0] sm:$0xff]
    %v3236 = vld [vmem:[#allocation15 + $0x3d8] sm:$0xff]
    %v3237 = vld [vmem:[#allocation15 + $0x3e0] sm:$0xff]
    %v3238 = vld [vmem:[#allocation15 + $0x3e8] sm:$0xff]
    %v3239 = vld [vmem:[#allocation15 + $0x3f0] sm:$0xff]
    %v3240 = vld [vmem:[#allocation15 + $0x3f8] sm:$0xff]
    %v3241 = vld [vmem:[#allocation17] sm:$0xff]
    %v3243 = vlaneseq
    %v3244 = vshrl.u32 %v3243, 7
    %v3245 = vsub.s32 0, %v3244
    %v3246 = vrot.slane %v3241, %v3245
    %v3247 = vlaneseq
    %v3248 = vshrl.u32 %v3247, 7
    %v3249 = vsub.s32 1, %v3248
    %v3250 = vrot.slane %v3241, %v3249
    %v3251 = vlaneseq
    %v3252 = vshrl.u32 %v3251, 7
    %v3253 = vsub.s32 2, %v3252
    %v3254 = vrot.slane %v3241, %v3253
    %v3255 = vlaneseq
    %v3256 = vshrl.u32 %v3255, 7
    %v3257 = vsub.s32 3, %v3256
    %v3258 = vrot.slane %v3241, %v3257
    %v3259 = vlaneseq
    %v3260 = vshrl.u32 %v3259, 7
    %v3261 = vsub.s32 4, %v3260
    %v3262 = vrot.slane %v3241, %v3261
    %v3263 = vlaneseq
    %v3264 = vshrl.u32 %v3263, 7
    %v3265 = vsub.s32 5, %v3264
    %v3266 = vrot.slane %v3241, %v3265
    %v3267 = vlaneseq
    %v3268 = vshrl.u32 %v3267, 7
    %v3269 = vsub.s32 6, %v3268
    %v3270 = vrot.slane %v3241, %v3269
    %v3271 = vlaneseq
    %v3272 = vshrl.u32 %v3271, 7
    %v3273 = vsub.s32 7, %v3272
    %v3274 = vrot.slane %v3241, %v3273
    %v3411 = vunpack.c.l.b16 %v3113
    %v3412 = vunpack.c.h.b16 %v3113
    %v3413 = vunpack.c.l.b16 %v3114
    %v3414 = vunpack.c.h.b16 %v3114
    %v3415 = vunpack.c.l.b16 %v3115
    %v3416 = vunpack.c.h.b16 %v3115
    %v3417 = vunpack.c.l.b16 %v3116
    %v3418 = vunpack.c.h.b16 %v3116
    %v3419 = vunpack.c.l.b16 %v3117
    %v3420 = vunpack.c.h.b16 %v3117
    %v3421 = vunpack.c.l.b16 %v3118
    %v3422 = vunpack.c.h.b16 %v3118
    %v3423 = vunpack.c.l.b16 %v3119
    %v3424 = vunpack.c.h.b16 %v3119
    %v3425 = vunpack.c.l.b16 %v3120
    %v3426 = vunpack.c.h.b16 %v3120
    %v3427 = vunpack.c.l.b16 %v3121
    %v3428 = vunpack.c.h.b16 %v3121
    %v3429 = vunpack.c.l.b16 %v3122
    %v3430 = vunpack.c.h.b16 %v3122
    %v3431 = vunpack.c.l.b16 %v3123
    %v3432 = vunpack.c.h.b16 %v3123
    %v3433 = vunpack.c.l.b16 %v3124
    %v3434 = vunpack.c.h.b16 %v3124
    %v3435 = vunpack.c.l.b16 %v3125
    %v3436 = vunpack.c.h.b16 %v3125
    %v3437 = vunpack.c.l.b16 %v3126
    %v3438 = vunpack.c.h.b16 %v3126
    %v3439 = vunpack.c.l.b16 %v3127
    %v3440 = vunpack.c.h.b16 %v3127
    %v3441 = vunpack.c.l.b16 %v3128
    %v3442 = vunpack.c.h.b16 %v3128
    %v3443 = vunpack.c.l.b16 %v3129
    %v3444 = vunpack.c.h.b16 %v3129
    %v3445 = vunpack.c.l.b16 %v3130
    %v3446 = vunpack.c.h.b16 %v3130
    %v3447 = vunpack.c.l.b16 %v3131
    %v3448 = vunpack.c.h.b16 %v3131
    %v3449 = vunpack.c.l.b16 %v3132
    %v3450 = vunpack.c.h.b16 %v3132
    %v3451 = vunpack.c.l.b16 %v3133
    %v3452 = vunpack.c.h.b16 %v3133
    %v3453 = vunpack.c.l.b16 %v3134
    %v3454 = vunpack.c.h.b16 %v3134
    %v3455 = vunpack.c.l.b16 %v3135
    %v3456 = vunpack.c.h.b16 %v3135
    %v3457 = vunpack.c.l.b16 %v3136
    %v3458 = vunpack.c.h.b16 %v3136
    %v3459 = vunpack.c.l.b16 %v3137
    %v3460 = vunpack.c.h.b16 %v3137
    %v3461 = vunpack.c.l.b16 %v3138
    %v3462 = vunpack.c.h.b16 %v3138
    %v3463 = vunpack.c.l.b16 %v3139
    %v3464 = vunpack.c.h.b16 %v3139
    %v3465 = vunpack.c.l.b16 %v3140
    %v3466 = vunpack.c.h.b16 %v3140
    %v3467 = vunpack.c.l.b16 %v3141
    %v3468 = vunpack.c.h.b16 %v3141
    %v3469 = vunpack.c.l.b16 %v3142
    %v3470 = vunpack.c.h.b16 %v3142
    %v3471 = vunpack.c.l.b16 %v3143
    %v3472 = vunpack.c.h.b16 %v3143
    %v3473 = vunpack.c.l.b16 %v3144
    %v3474 = vunpack.c.h.b16 %v3144
    %v3475 = vunpack.c.l.b16 %v3145
    %v3476 = vunpack.c.h.b16 %v3145
    %v3477 = vunpack.c.l.b16 %v3146
    %v3478 = vunpack.c.h.b16 %v3146
    %v3479 = vunpack.c.l.b16 %v3147
    %v3480 = vunpack.c.h.b16 %v3147
    %v3481 = vunpack.c.l.b16 %v3148
    %v3482 = vunpack.c.h.b16 %v3148
    %v3483 = vunpack.c.l.b16 %v3149
    %v3484 = vunpack.c.h.b16 %v3149
    %v3485 = vunpack.c.l.b16 %v3150
    %v3486 = vunpack.c.h.b16 %v3150
    %v3487 = vunpack.c.l.b16 %v3151
    %v3488 = vunpack.c.h.b16 %v3151
    %v3489 = vunpack.c.l.b16 %v3152
    %v3490 = vunpack.c.h.b16 %v3152
    %v3491 = vunpack.c.l.b16 %v3153
    %v3492 = vunpack.c.h.b16 %v3153
    %v3493 = vunpack.c.l.b16 %v3154
    %v3494 = vunpack.c.h.b16 %v3154
    %v3495 = vunpack.c.l.b16 %v3155
    %v3496 = vunpack.c.h.b16 %v3155
    %v3497 = vunpack.c.l.b16 %v3156
    %v3498 = vunpack.c.h.b16 %v3156
    %v3499 = vunpack.c.l.b16 %v3157
    %v3500 = vunpack.c.h.b16 %v3157
    %v3501 = vunpack.c.l.b16 %v3158
    %v3502 = vunpack.c.h.b16 %v3158
    %v3503 = vunpack.c.l.b16 %v3159
    %v3504 = vunpack.c.h.b16 %v3159
    %v3505 = vunpack.c.l.b16 %v3160
    %v3506 = vunpack.c.h.b16 %v3160
    %v3507 = vunpack.c.l.b16 %v3161
    %v3508 = vunpack.c.h.b16 %v3161
    %v3509 = vunpack.c.l.b16 %v3162
    %v3510 = vunpack.c.h.b16 %v3162
    %v3511 = vunpack.c.l.b16 %v3163
    %v3512 = vunpack.c.h.b16 %v3163
    %v3513 = vunpack.c.l.b16 %v3164
    %v3514 = vunpack.c.h.b16 %v3164
    %v3515 = vunpack.c.l.b16 %v3165
    %v3516 = vunpack.c.h.b16 %v3165
    %v3517 = vunpack.c.l.b16 %v3166
    %v3518 = vunpack.c.h.b16 %v3166
    %v3519 = vunpack.c.l.b16 %v3167
    %v3520 = vunpack.c.h.b16 %v3167
    %v3521 = vunpack.c.l.b16 %v3168
    %v3522 = vunpack.c.h.b16 %v3168
    %v3523 = vunpack.c.l.b16 %v3169
    %v3524 = vunpack.c.h.b16 %v3169
    %v3525 = vunpack.c.l.b16 %v3170
    %v3526 = vunpack.c.h.b16 %v3170
    %v3527 = vunpack.c.l.b16 %v3171
    %v3528 = vunpack.c.h.b16 %v3171
    %v3529 = vunpack.c.l.b16 %v3172
    %v3530 = vunpack.c.h.b16 %v3172
    %v3531 = vunpack.c.l.b16 %v3173
    %v3532 = vunpack.c.h.b16 %v3173
    %v3533 = vunpack.c.l.b16 %v3174
    %v3534 = vunpack.c.h.b16 %v3174
    %v3535 = vunpack.c.l.b16 %v3175
    %v3536 = vunpack.c.h.b16 %v3175
    %v3537 = vunpack.c.l.b16 %v3176
    %v3538 = vunpack.c.h.b16 %v3176
    %v3539 = vunpack.c.l.b16 %v3177
    %v3540 = vunpack.c.h.b16 %v3177
    %v3541 = vunpack.c.l.b16 %v3178
    %v3542 = vunpack.c.h.b16 %v3178
    %v3543 = vunpack.c.l.b16 %v3179
    %v3544 = vunpack.c.h.b16 %v3179
    %v3545 = vunpack.c.l.b16 %v3180
    %v3546 = vunpack.c.h.b16 %v3180
    %v3547 = vunpack.c.l.b16 %v3181
    %v3548 = vunpack.c.h.b16 %v3181
    %v3549 = vunpack.c.l.b16 %v3182
    %v3550 = vunpack.c.h.b16 %v3182
    %v3551 = vunpack.c.l.b16 %v3183
    %v3552 = vunpack.c.h.b16 %v3183
    %v3553 = vunpack.c.l.b16 %v3184
    %v3554 = vunpack.c.h.b16 %v3184
    %v3555 = vunpack.c.l.b16 %v3185
    %v3556 = vunpack.c.h.b16 %v3185
    %v3557 = vunpack.c.l.b16 %v3186
    %v3558 = vunpack.c.h.b16 %v3186
    %v3559 = vunpack.c.l.b16 %v3187
    %v3560 = vunpack.c.h.b16 %v3187
    %v3561 = vunpack.c.l.b16 %v3188
    %v3562 = vunpack.c.h.b16 %v3188
    %v3563 = vunpack.c.l.b16 %v3189
    %v3564 = vunpack.c.h.b16 %v3189
    %v3565 = vunpack.c.l.b16 %v3190
    %v3566 = vunpack.c.h.b16 %v3190
    %v3567 = vunpack.c.l.b16 %v3191
    %v3568 = vunpack.c.h.b16 %v3191
    %v3569 = vunpack.c.l.b16 %v3192
    %v3570 = vunpack.c.h.b16 %v3192
    %v3571 = vunpack.c.l.b16 %v3193
    %v3572 = vunpack.c.h.b16 %v3193
    %v3573 = vunpack.c.l.b16 %v3194
    %v3574 = vunpack.c.h.b16 %v3194
    %v3575 = vunpack.c.l.b16 %v3195
    %v3576 = vunpack.c.h.b16 %v3195
    %v3577 = vunpack.c.l.b16 %v3196
    %v3578 = vunpack.c.h.b16 %v3196
    %v3579 = vunpack.c.l.b16 %v3197
    %v3580 = vunpack.c.h.b16 %v3197
    %v3581 = vunpack.c.l.b16 %v3198
    %v3582 = vunpack.c.h.b16 %v3198
    %v3583 = vunpack.c.l.b16 %v3199
    %v3584 = vunpack.c.h.b16 %v3199
    %v3585 = vunpack.c.l.b16 %v3200
    %v3586 = vunpack.c.h.b16 %v3200
    %v3587 = vunpack.c.l.b16 %v3201
    %v3588 = vunpack.c.h.b16 %v3201
    %v3589 = vunpack.c.l.b16 %v3202
    %v3590 = vunpack.c.h.b16 %v3202
    %v3591 = vunpack.c.l.b16 %v3203
    %v3592 = vunpack.c.h.b16 %v3203
    %v3593 = vunpack.c.l.b16 %v3204
    %v3594 = vunpack.c.h.b16 %v3204
    %v3595 = vunpack.c.l.b16 %v3205
    %v3596 = vunpack.c.h.b16 %v3205
    %v3597 = vunpack.c.l.b16 %v3206
    %v3598 = vunpack.c.h.b16 %v3206
    %v3599 = vunpack.c.l.b16 %v3207
    %v3600 = vunpack.c.h.b16 %v3207
    %v3601 = vunpack.c.l.b16 %v3208
    %v3602 = vunpack.c.h.b16 %v3208
    %v3603 = vunpack.c.l.b16 %v3209
    %v3604 = vunpack.c.h.b16 %v3209
    %v3605 = vunpack.c.l.b16 %v3210
    %v3606 = vunpack.c.h.b16 %v3210
    %v3607 = vunpack.c.l.b16 %v3211
    %v3608 = vunpack.c.h.b16 %v3211
    %v3609 = vunpack.c.l.b16 %v3212
    %v3610 = vunpack.c.h.b16 %v3212
    %v3611 = vunpack.c.l.b16 %v3213
    %v3612 = vunpack.c.h.b16 %v3213
    %v3613 = vunpack.c.l.b16 %v3214
    %v3614 = vunpack.c.h.b16 %v3214
    %v3615 = vunpack.c.l.b16 %v3215
    %v3616 = vunpack.c.h.b16 %v3215
    %v3617 = vunpack.c.l.b16 %v3216
    %v3618 = vunpack.c.h.b16 %v3216
    %v3619 = vunpack.c.l.b16 %v3217
    %v3620 = vunpack.c.h.b16 %v3217
    %v3621 = vunpack.c.l.b16 %v3218
    %v3622 = vunpack.c.h.b16 %v3218
    %v3623 = vunpack.c.l.b16 %v3219
    %v3624 = vunpack.c.h.b16 %v3219
    %v3625 = vunpack.c.l.b16 %v3220
    %v3626 = vunpack.c.h.b16 %v3220
    %v3627 = vunpack.c.l.b16 %v3221
    %v3628 = vunpack.c.h.b16 %v3221
    %v3629 = vunpack.c.l.b16 %v3222
    %v3630 = vunpack.c.h.b16 %v3222
    %v3631 = vunpack.c.l.b16 %v3223
    %v3632 = vunpack.c.h.b16 %v3223
    %v3633 = vunpack.c.l.b16 %v3224
    %v3634 = vunpack.c.h.b16 %v3224
    %v3635 = vunpack.c.l.b16 %v3225
    %v3636 = vunpack.c.h.b16 %v3225
    %v3637 = vunpack.c.l.b16 %v3226
    %v3638 = vunpack.c.h.b16 %v3226
    %v3639 = vunpack.c.l.b16 %v3227
    %v3640 = vunpack.c.h.b16 %v3227
    %v3641 = vunpack.c.l.b16 %v3228
    %v3642 = vunpack.c.h.b16 %v3228
    %v3643 = vunpack.c.l.b16 %v3229
    %v3644 = vunpack.c.h.b16 %v3229
    %v3645 = vunpack.c.l.b16 %v3230
    %v3646 = vunpack.c.h.b16 %v3230
    %v3647 = vunpack.c.l.b16 %v3231
    %v3648 = vunpack.c.h.b16 %v3231
    %v3649 = vunpack.c.l.b16 %v3232
    %v3650 = vunpack.c.h.b16 %v3232
    %v3651 = vunpack.c.l.b16 %v3233
    %v3652 = vunpack.c.h.b16 %v3233
    %v3653 = vunpack.c.l.b16 %v3234
    %v3654 = vunpack.c.h.b16 %v3234
    %v3655 = vunpack.c.l.b16 %v3235
    %v3656 = vunpack.c.h.b16 %v3235
    %v3657 = vunpack.c.l.b16 %v3236
    %v3658 = vunpack.c.h.b16 %v3236
    %v3659 = vunpack.c.l.b16 %v3237
    %v3660 = vunpack.c.h.b16 %v3237
    %v3661 = vunpack.c.l.b16 %v3238
    %v3662 = vunpack.c.h.b16 %v3238
    %v3663 = vunpack.c.l.b16 %v3239
    %v3664 = vunpack.c.h.b16 %v3239
    %v3665 = vunpack.c.l.b16 %v3240
    %v3666 = vunpack.c.h.b16 %v3240
    %v3667 = vpack.c.b16 %v3419, %v3411
    %v3668 = vpack.c.b16 %v3420, %v3412
    %v3669 = vpack.c.b16 %v3421, %v3413
    %v3670 = vpack.c.b16 %v3422, %v3414
    %v3671 = vpack.c.b16 %v3423, %v3415
    %v3672 = vpack.c.b16 %v3424, %v3416
    %v3673 = vpack.c.b16 %v3425, %v3417
    %v3674 = vpack.c.b16 %v3426, %v3418
    %v3675 = vpack.c.b16 %v3435, %v3427
    %v3676 = vpack.c.b16 %v3436, %v3428
    %v3677 = vpack.c.b16 %v3437, %v3429
    %v3678 = vpack.c.b16 %v3438, %v3430
    %v3679 = vpack.c.b16 %v3439, %v3431
    %v3680 = vpack.c.b16 %v3440, %v3432
    %v3681 = vpack.c.b16 %v3441, %v3433
    %v3682 = vpack.c.b16 %v3442, %v3434
    %v3683 = vpack.c.b16 %v3451, %v3443
    %v3684 = vpack.c.b16 %v3452, %v3444
    %v3685 = vpack.c.b16 %v3453, %v3445
    %v3686 = vpack.c.b16 %v3454, %v3446
    %v3687 = vpack.c.b16 %v3455, %v3447
    %v3688 = vpack.c.b16 %v3456, %v3448
    %v3689 = vpack.c.b16 %v3457, %v3449
    %v3690 = vpack.c.b16 %v3458, %v3450
    %v3691 = vpack.c.b16 %v3467, %v3459
    %v3692 = vpack.c.b16 %v3468, %v3460
    %v3693 = vpack.c.b16 %v3469, %v3461
    %v3694 = vpack.c.b16 %v3470, %v3462
    %v3695 = vpack.c.b16 %v3471, %v3463
    %v3696 = vpack.c.b16 %v3472, %v3464
    %v3697 = vpack.c.b16 %v3473, %v3465
    %v3698 = vpack.c.b16 %v3474, %v3466
    %v3699 = vpack.c.b16 %v3483, %v3475
    %v3700 = vpack.c.b16 %v3484, %v3476
    %v3701 = vpack.c.b16 %v3485, %v3477
    %v3702 = vpack.c.b16 %v3486, %v3478
    %v3703 = vpack.c.b16 %v3487, %v3479
    %v3704 = vpack.c.b16 %v3488, %v3480
    %v3705 = vpack.c.b16 %v3489, %v3481
    %v3706 = vpack.c.b16 %v3490, %v3482
    %v3707 = vpack.c.b16 %v3499, %v3491
    %v3708 = vpack.c.b16 %v3500, %v3492
    %v3709 = vpack.c.b16 %v3501, %v3493
    %v3710 = vpack.c.b16 %v3502, %v3494
    %v3711 = vpack.c.b16 %v3503, %v3495
    %v3712 = vpack.c.b16 %v3504, %v3496
    %v3713 = vpack.c.b16 %v3505, %v3497
    %v3714 = vpack.c.b16 %v3506, %v3498
    %v3715 = vpack.c.b16 %v3515, %v3507
    %v3716 = vpack.c.b16 %v3516, %v3508
    %v3717 = vpack.c.b16 %v3517, %v3509
    %v3718 = vpack.c.b16 %v3518, %v3510
    %v3719 = vpack.c.b16 %v3519, %v3511
    %v3720 = vpack.c.b16 %v3520, %v3512
    %v3721 = vpack.c.b16 %v3521, %v3513
    %v3722 = vpack.c.b16 %v3522, %v3514
    %v3723 = vpack.c.b16 %v3531, %v3523
    %v3724 = vpack.c.b16 %v3532, %v3524
    %v3725 = vpack.c.b16 %v3533, %v3525
    %v3726 = vpack.c.b16 %v3534, %v3526
    %v3727 = vpack.c.b16 %v3535, %v3527
    %v3728 = vpack.c.b16 %v3536, %v3528
    %v3729 = vpack.c.b16 %v3537, %v3529
    %v3730 = vpack.c.b16 %v3538, %v3530
    %v3731 = vpack.c.b16 %v3547, %v3539
    %v3732 = vpack.c.b16 %v3548, %v3540
    %v3733 = vpack.c.b16 %v3549, %v3541
    %v3734 = vpack.c.b16 %v3550, %v3542
    %v3735 = vpack.c.b16 %v3551, %v3543
    %v3736 = vpack.c.b16 %v3552, %v3544
    %v3737 = vpack.c.b16 %v3553, %v3545
    %v3738 = vpack.c.b16 %v3554, %v3546
    %v3739 = vpack.c.b16 %v3563, %v3555
    %v3740 = vpack.c.b16 %v3564, %v3556
    %v3741 = vpack.c.b16 %v3565, %v3557
    %v3742 = vpack.c.b16 %v3566, %v3558
    %v3743 = vpack.c.b16 %v3567, %v3559
    %v3744 = vpack.c.b16 %v3568, %v3560
    %v3745 = vpack.c.b16 %v3569, %v3561
    %v3746 = vpack.c.b16 %v3570, %v3562
    %v3747 = vpack.c.b16 %v3579, %v3571
    %v3748 = vpack.c.b16 %v3580, %v3572
    %v3749 = vpack.c.b16 %v3581, %v3573
    %v3750 = vpack.c.b16 %v3582, %v3574
    %v3751 = vpack.c.b16 %v3583, %v3575
    %v3752 = vpack.c.b16 %v3584, %v3576
    %v3753 = vpack.c.b16 %v3585, %v3577
    %v3754 = vpack.c.b16 %v3586, %v3578
    %v3755 = vpack.c.b16 %v3595, %v3587
    %v3756 = vpack.c.b16 %v3596, %v3588
    %v3757 = vpack.c.b16 %v3597, %v3589
    %v3758 = vpack.c.b16 %v3598, %v3590
    %v3759 = vpack.c.b16 %v3599, %v3591
    %v3760 = vpack.c.b16 %v3600, %v3592
    %v3761 = vpack.c.b16 %v3601, %v3593
    %v3762 = vpack.c.b16 %v3602, %v3594
    %v3763 = vpack.c.b16 %v3611, %v3603
    %v3764 = vpack.c.b16 %v3612, %v3604
    %v3765 = vpack.c.b16 %v3613, %v3605
    %v3766 = vpack.c.b16 %v3614, %v3606
    %v3767 = vpack.c.b16 %v3615, %v3607
    %v3768 = vpack.c.b16 %v3616, %v3608
    %v3769 = vpack.c.b16 %v3617, %v3609
    %v3770 = vpack.c.b16 %v3618, %v3610
    %v3771 = vpack.c.b16 %v3627, %v3619
    %v3772 = vpack.c.b16 %v3628, %v3620
    %v3773 = vpack.c.b16 %v3629, %v3621
    %v3774 = vpack.c.b16 %v3630, %v3622
    %v3775 = vpack.c.b16 %v3631, %v3623
    %v3776 = vpack.c.b16 %v3632, %v3624
    %v3777 = vpack.c.b16 %v3633, %v3625
    %v3778 = vpack.c.b16 %v3634, %v3626
    %v3779 = vpack.c.b16 %v3643, %v3635
    %v3780 = vpack.c.b16 %v3644, %v3636
    %v3781 = vpack.c.b16 %v3645, %v3637
    %v3782 = vpack.c.b16 %v3646, %v3638
    %v3783 = vpack.c.b16 %v3647, %v3639
    %v3784 = vpack.c.b16 %v3648, %v3640
    %v3785 = vpack.c.b16 %v3649, %v3641
    %v3786 = vpack.c.b16 %v3650, %v3642
    %v3787 = vpack.c.b16 %v3659, %v3651
    %v3788 = vpack.c.b16 %v3660, %v3652
    %v3789 = vpack.c.b16 %v3661, %v3653
    %v3790 = vpack.c.b16 %v3662, %v3654
    %v3791 = vpack.c.b16 %v3663, %v3655
    %v3792 = vpack.c.b16 %v3664, %v3656
    %v3793 = vpack.c.b16 %v3665, %v3657
    %v3794 = vpack.c.b16 %v3666, %v3658
    %3923 = vmatprep.subr.bf16.mxu0 %v3668
    %3924 = vmatpush1.bf16.msra.mxu0 %v3667
    %3925 = vmatprep.subr.bf16.mxu0 %v3676
    %3926 = vmatpush1.bf16.msra.mxu0 %v3675
    %3927 = vmatprep.subr.bf16.mxu0 %v3684
    %3928 = vmatpush1.bf16.msra.mxu0 %v3683
    %3929 = vmatprep.subr.bf16.mxu0 %v3692
    %3930 = vmatpush1.bf16.msra.mxu0 %v3691
    %3931 = vmatprep.subr.bf16.mxu0 %v3700
    %3932 = vmatpush1.bf16.msra.mxu0 %v3699
    %3933 = vmatprep.subr.bf16.mxu0 %v3708
    %3934 = vmatpush1.bf16.msra.mxu0 %v3707
    %3935 = vmatprep.subr.bf16.mxu0 %v3716
    %3936 = vmatpush1.bf16.msra.mxu0 %v3715
    %3937 = vmatprep.subr.bf16.mxu0 %v3724
    %3938 = vmatpush1.bf16.msra.mxu0 %v3723
    %3939 = vmatprep.subr.bf16.mxu0 %v3732
    %3940 = vmatpush1.bf16.msra.mxu0 %v3731
    %3941 = vmatprep.subr.bf16.mxu0 %v3740
    %3942 = vmatpush1.bf16.msra.mxu0 %v3739
    %3943 = vmatprep.subr.bf16.mxu0 %v3748
    %3944 = vmatpush1.bf16.msra.mxu0 %v3747
    %3945 = vmatprep.subr.bf16.mxu0 %v3756
    %3946 = vmatpush1.bf16.msra.mxu0 %v3755
    %3947 = vmatprep.subr.bf16.mxu0 %v3764
    %3948 = vmatpush1.bf16.msra.mxu0 %v3763
    %3949 = vmatprep.subr.bf16.mxu0 %v3772
    %3950 = vmatpush1.bf16.msra.mxu0 %v3771
    %3951 = vmatprep.subr.bf16.mxu0 %v3780
    %3952 = vmatpush1.bf16.msra.mxu0 %v3779
    %3953 = vmatprep.subr.bf16.mxu0 %v3788
    %3954 = vmatpush1.bf16.msra.mxu0 %v3787
    %3955 = vmatprep.mubr.bf16.mxu0 %v3112
    %3956 = vmatmul.mubr.bf16.gmra.mrb[0].mxu0 %v3111
    %v3957 = vpop.f32.mrb[0].mxu0
    %v3958 = vadd.f32 %v3246, %v3957
    %v3959 = vpop.f32.mrb[0].mxu0
    %v3960 = vadd.f32 %v3250, %v3959
    %v3961 = vpop.f32.mrb[0].mxu0
    %v3962 = vadd.f32 %v3246, %v3961
    %v3963 = vpop.f32.mrb[0].mxu0
    %v3964 = vadd.f32 %v3250, %v3963
    %3965 = vdwg.mxu0
    %3966 = vmatprep.subr.bf16.mxu0 %v3670
    %3967 = vmatpush1.bf16.msra.mxu0 %v3669
    %3968 = vmatprep.subr.bf16.mxu0 %v3678
    %3969 = vmatpush1.bf16.msra.mxu0 %v3677
    %3970 = vmatprep.subr.bf16.mxu0 %v3686
    %3971 = vmatpush1.bf16.msra.mxu0 %v3685
    %3972 = vmatprep.subr.bf16.mxu0 %v3694
    %3973 = vmatpush1.bf16.msra.mxu0 %v3693
    %3974 = vmatprep.subr.bf16.mxu0 %v3702
    %3975 = vmatpush1.bf16.msra.mxu0 %v3701
    %3976 = vmatprep.subr.bf16.mxu0 %v3710
    %3977 = vmatpush1.bf16.msra.mxu0 %v3709
    %3978 = vmatprep.subr.bf16.mxu0 %v3718
    %3979 = vmatpush1.bf16.msra.mxu0 %v3717
    %3980 = vmatprep.subr.bf16.mxu0 %v3726
    %3981 = vmatpush1.bf16.msra.mxu0 %v3725
    %3982 = vmatprep.subr.bf16.mxu0 %v3734
    %3983 = vmatpush1.bf16.msra.mxu0 %v3733
    %3984 = vmatprep.subr.bf16.mxu0 %v3742
    %3985 = vmatpush1.bf16.msra.mxu0 %v3741
    %3986 = vmatprep.subr.bf16.mxu0 %v3750
    %3987 = vmatpush1.bf16.msra.mxu0 %v3749
    %3988 = vmatprep.subr.bf16.mxu0 %v3758
    %3989 = vmatpush1.bf16.msra.mxu0 %v3757
    %3990 = vmatprep.subr.bf16.mxu0 %v3766
    %3991 = vmatpush1.bf16.msra.mxu0 %v3765
    %3992 = vmatprep.subr.bf16.mxu0 %v3774
    %3993 = vmatpush1.bf16.msra.mxu0 %v3773
    %3994 = vmatprep.subr.bf16.mxu0 %v3782
    %3995 = vmatpush1.bf16.msra.mxu0 %v3781
    %3996 = vmatprep.subr.bf16.mxu0 %v3790
    %3997 = vmatpush1.bf16.msra.mxu0 %v3789
    %3998 = vmatprep.mubr.bf16.mxu0 %v3112
    %3999 = vmatmul.mubr.bf16.gmra.mrb[0].mxu0 %v3111
    %v4000 = vpop.f32.mrb[0].mxu0
    %v4001 = vadd.f32 %v3254, %v4000
    %v4002 = vpop.f32.mrb[0].mxu0
    %v4003 = vadd.f32 %v3258, %v4002
    %v4004 = vpop.f32.mrb[0].mxu0
    %v4005 = vadd.f32 %v3254, %v4004
    %v4006 = vpop.f32.mrb[0].mxu0
    %v4007 = vadd.f32 %v3258, %v4006
    %4008 = vdwg.mxu0
    %4009 = vmatprep.subr.bf16.mxu0 %v3672
    %4010 = vmatpush1.bf16.msra.mxu0 %v3671
    %4011 = vmatprep.subr.bf16.mxu0 %v3680
    %4012 = vmatpush1.bf16.msra.mxu0 %v3679
    %4013 = vmatprep.subr.bf16.mxu0 %v3688
    %4014 = vmatpush1.bf16.msra.mxu0 %v3687
    %4015 = vmatprep.subr.bf16.mxu0 %v3696
    %4016 = vmatpush1.bf16.msra.mxu0 %v3695
    %4017 = vmatprep.subr.bf16.mxu0 %v3704
    %4018 = vmatpush1.bf16.msra.mxu0 %v3703
    %4019 = vmatprep.subr.bf16.mxu0 %v3712
    %4020 = vmatpush1.bf16.msra.mxu0 %v3711
    %4021 = vmatprep.subr.bf16.mxu0 %v3720
    %4022 = vmatpush1.bf16.msra.mxu0 %v3719
    %4023 = vmatprep.subr.bf16.mxu0 %v3728
    %4024 = vmatpush1.bf16.msra.mxu0 %v3727
    %4025 = vmatprep.subr.bf16.mxu0 %v3736
    %4026 = vmatpush1.bf16.msra.mxu0 %v3735
    %4027 = vmatprep.subr.bf16.mxu0 %v3744
    %4028 = vmatpush1.bf16.msra.mxu0 %v3743
    %4029 = vmatprep.subr.bf16.mxu0 %v3752
    %4030 = vmatpush1.bf16.msra.mxu0 %v3751
    %4031 = vmatprep.subr.bf16.mxu0 %v3760
    %4032 = vmatpush1.bf16.msra.mxu0 %v3759
    %4033 = vmatprep.subr.bf16.mxu0 %v3768
    %4034 = vmatpush1.bf16.msra.mxu0 %v3767
    %4035 = vmatprep.subr.bf16.mxu0 %v3776
    %4036 = vmatpush1.bf16.msra.mxu0 %v3775
    %4037 = vmatprep.subr.bf16.mxu0 %v3784
    %4038 = vmatpush1.bf16.msra.mxu0 %v3783
    %4039 = vmatprep.subr.bf16.mxu0 %v3792
    %4040 = vmatpush1.bf16.msra.mxu0 %v3791
    %4041 = vmatprep.mubr.bf16.mxu0 %v3112
    %4042 = vmatmul.mubr.bf16.gmra.mrb[0].mxu0 %v3111
    %v4043 = vpop.f32.mrb[0].mxu0
    %v4044 = vadd.f32 %v3262, %v4043
    %v4045 = vpop.f32.mrb[0].mxu0
    %v4046 = vadd.f32 %v3266, %v4045
    %v4047 = vpop.f32.mrb[0].mxu0
    %v4048 = vadd.f32 %v3262, %v4047
    %v4049 = vpop.f32.mrb[0].mxu0
    %v4050 = vadd.f32 %v3266, %v4049
    %4051 = vdwg.mxu0
    %4052 = vmatprep.subr.bf16.mxu0 %v3674
    %4053 = vmatpush1.bf16.msra.mxu0 %v3673
    %4054 = vmatprep.subr.bf16.mxu0 %v3682
    %4055 = vmatpush1.bf16.msra.mxu0 %v3681
    %4056 = vmatprep.subr.bf16.mxu0 %v3690
    %4057 = vmatpush1.bf16.msra.mxu0 %v3689
    %4058 = vmatprep.subr.bf16.mxu0 %v3698
    %4059 = vmatpush1.bf16.msra.mxu0 %v3697
    %4060 = vmatprep.subr.bf16.mxu0 %v3706
    %4061 = vmatpush1.bf16.msra.mxu0 %v3705
    %4062 = vmatprep.subr.bf16.mxu0 %v3714
    %4063 = vmatpush1.bf16.msra.mxu0 %v3713
    %4064 = vmatprep.subr.bf16.mxu0 %v3722
    %4065 = vmatpush1.bf16.msra.mxu0 %v3721
    %4066 = vmatprep.subr.bf16.mxu0 %v3730
    %4067 = vmatpush1.bf16.msra.mxu0 %v3729
    %4068 = vmatprep.subr.bf16.mxu0 %v3738
    %4069 = vmatpush1.bf16.msra.mxu0 %v3737
    %4070 = vmatprep.subr.bf16.mxu0 %v3746
    %4071 = vmatpush1.bf16.msra.mxu0 %v3745
    %4072 = vmatprep.subr.bf16.mxu0 %v3754
    %4073 = vmatpush1.bf16.msra.mxu0 %v3753
    %4074 = vmatprep.subr.bf16.mxu0 %v3762
    %4075 = vmatpush1.bf16.msra.mxu0 %v3761
    %4076 = vmatprep.subr.bf16.mxu0 %v3770
    %4077 = vmatpush1.bf16.msra.mxu0 %v3769
    %4078 = vmatprep.subr.bf16.mxu0 %v3778
    %4079 = vmatpush1.bf16.msra.mxu0 %v3777
    %4080 = vmatprep.subr.bf16.mxu0 %v3786
    %4081 = vmatpush1.bf16.msra.mxu0 %v3785
    %4082 = vmatprep.subr.bf16.mxu0 %v3794
    %4083 = vmatpush1.bf16.msra.mxu0 %v3793
    %4084 = vmatprep.mubr.bf16.mxu0 %v3112
    %4085 = vmatmul.mubr.bf16.gmra.mrb[0].mxu0 %v3111
    %v4086 = vpop.f32.mrb[0].mxu0
    %v4087 = vadd.f32 %v3270, %v4086
    %v4088 = vpop.f32.mrb[0].mxu0
    %v4089 = vadd.f32 %v3274, %v4088
    %v4090 = vpop.f32.mrb[0].mxu0
    %v4091 = vadd.f32 %v3270, %v4090
    %v4092 = vpop.f32.mrb[0].mxu0
    %v4093 = vadd.f32 %v3274, %v4092
    %4094 = vdwg.mxu0
    %v4095 = vmul.f32 %v3958, 0.5
    %v4096 = vmul.f32 %v3960, 0.5
    %v4097 = vmul.f32 %v4001, 0.5
    %v4098 = vmul.f32 %v4003, 0.5
    %v4099 = vmul.f32 %v4044, 0.5
    %v4100 = vmul.f32 %v4046, 0.5
    %v4101 = vmul.f32 %v4087, 0.5
    %v4102 = vmul.f32 %v4089, 0.5
    %v4103 = vmul.f32 %v3962, 0.5
    %v4104 = vmul.f32 %v3964, 0.5
    %v4105 = vmul.f32 %v4005, 0.5
    %v4106 = vmul.f32 %v4007, 0.5
    %v4107 = vmul.f32 %v4048, 0.5
    %v4108 = vmul.f32 %v4050, 0.5
    %v4109 = vmul.f32 %v4091, 0.5
    %v4110 = vmul.f32 %v4093, 0.5
    %v4111 = vmul.f32 %v3958, 0.044715
    %v4112 = vmul.f32 %v3960, 0.044715
    %v4113 = vmul.f32 %v4001, 0.044715
    %v4114 = vmul.f32 %v4003, 0.044715
    %v4115 = vmul.f32 %v4044, 0.044715
    %v4116 = vmul.f32 %v4046, 0.044715
    %v4117 = vmul.f32 %v4087, 0.044715
    %v4118 = vmul.f32 %v4089, 0.044715
    %v4119 = vmul.f32 %v3962, 0.044715
    %v4120 = vmul.f32 %v3964, 0.044715
    %v4121 = vmul.f32 %v4005, 0.044715
    %v4122 = vmul.f32 %v4007, 0.044715
    %v4123 = vmul.f32 %v4048, 0.044715
    %v4124 = vmul.f32 %v4050, 0.044715
    %v4125 = vmul.f32 %v4091, 0.044715
    %v4126 = vmul.f32 %v4093, 0.044715
    %v4127 = vmul.f32 %v4111, %v3958
    %v4128 = vmul.f32 %v4112, %v3960
    %v4129 = vmul.f32 %v4113, %v4001
    %v4130 = vmul.f32 %v4114, %v4003
    %v4131 = vmul.f32 %v4115, %v4044
    %v4132 = vmul.f32 %v4116, %v4046
    %v4133 = vmul.f32 %v4117, %v4087
    %v4134 = vmul.f32 %v4118, %v4089
    %v4135 = vmul.f32 %v4119, %v3962
    %v4136 = vmul.f32 %v4120, %v3964
    %v4137 = vmul.f32 %v4121, %v4005
    %v4138 = vmul.f32 %v4122, %v4007
    %v4139 = vmul.f32 %v4123, %v4048
    %v4140 = vmul.f32 %v4124, %v4050
    %v4141 = vmul.f32 %v4125, %v4091
    %v4142 = vmul.f32 %v4126, %v4093
    %v4143 = vmul.f32 %v4127, %v3958
    %v4144 = vmul.f32 %v4128, %v3960
    %v4145 = vmul.f32 %v4129, %v4001
    %v4146 = vmul.f32 %v4130, %v4003
    %v4147 = vmul.f32 %v4131, %v4044
    %v4148 = vmul.f32 %v4132, %v4046
    %v4149 = vmul.f32 %v4133, %v4087
    %v4150 = vmul.f32 %v4134, %v4089
    %v4151 = vmul.f32 %v4135, %v3962
    %v4152 = vmul.f32 %v4136, %v3964
    %v4153 = vmul.f32 %v4137, %v4005
    %v4154 = vmul.f32 %v4138, %v4007
    %v4155 = vmul.f32 %v4139, %v4048
    %v4156 = vmul.f32 %v4140, %v4050
    %v4157 = vmul.f32 %v4141, %v4091
    %v4158 = vmul.f32 %v4142, %v4093
    %v4159 = vadd.f32 %v3958, %v4143
    %v4160 = vadd.f32 %v3960, %v4144
    %v4161 = vadd.f32 %v4001, %v4145
    %v4162 = vadd.f32 %v4003, %v4146
    %v4163 = vadd.f32 %v4044, %v4147
    %v4164 = vadd.f32 %v4046, %v4148
    %v4165 = vadd.f32 %v4087, %v4149
    %v4166 = vadd.f32 %v4089, %v4150
    %v4167 = vadd.f32 %v3962, %v4151
    %v4168 = vadd.f32 %v3964, %v4152
    %v4169 = vadd.f32 %v4005, %v4153
    %v4170 = vadd.f32 %v4007, %v4154
    %v4171 = vadd.f32 %v4048, %v4155
    %v4172 = vadd.f32 %v4050, %v4156
    %v4173 = vadd.f32 %v4091, %v4157
    %v4174 = vadd.f32 %v4093, %v4158
    %v4175 = vmul.f32 %v4159, 0.7978846
    %v4176 = vmul.f32 %v4160, 0.7978846
    %v4177 = vmul.f32 %v4161, 0.7978846
    %v4178 = vmul.f32 %v4162, 0.7978846
    %v4179 = vmul.f32 %v4163, 0.7978846
    %v4180 = vmul.f32 %v4164, 0.7978846
    %v4181 = vmul.f32 %v4165, 0.7978846
    %v4182 = vmul.f32 %v4166, 0.7978846
    %v4183 = vmul.f32 %v4167, 0.7978846
    %v4184 = vmul.f32 %v4168, 0.7978846
    %v4185 = vmul.f32 %v4169, 0.7978846
    %v4186 = vmul.f32 %v4170, 0.7978846
    %v4187 = vmul.f32 %v4171, 0.7978846
    %v4188 = vmul.f32 %v4172, 0.7978846
    %v4189 = vmul.f32 %v4173, 0.7978846
    %v4190 = vmul.f32 %v4174, 0.7978846
    %v4191 = vtanh.pop %v4175
    %v4192 = vtanh.pop %v4176
    %v4193 = vtanh.pop %v4177
    %v4194 = vtanh.pop %v4178
    %v4195 = vtanh.pop %v4179
    %v4196 = vtanh.pop %v4180
    %v4197 = vtanh.pop %v4181
    %v4198 = vtanh.pop %v4182
    %v4199 = vtanh.pop %v4183
    %v4200 = vtanh.pop %v4184
    %v4201 = vtanh.pop %v4185
    %v4202 = vtanh.pop %v4186
    %v4203 = vtanh.pop %v4187
    %v4204 = vtanh.pop %v4188
    %v4205 = vtanh.pop %v4189
    %v4206 = vtanh.pop %v4190
    %v4207 = vadd.f32 %v4191, 1.0
    %v4208 = vadd.f32 %v4192, 1.0
    %v4209 = vadd.f32 %v4193, 1.0
    %v4210 = vadd.f32 %v4194, 1.0
    %v4211 = vadd.f32 %v4195, 1.0
    %v4212 = vadd.f32 %v4196, 1.0
    %v4213 = vadd.f32 %v4197, 1.0
    %v4214 = vadd.f32 %v4198, 1.0
    %v4215 = vadd.f32 %v4199, 1.0
    %v4216 = vadd.f32 %v4200, 1.0
    %v4217 = vadd.f32 %v4201, 1.0
    %v4218 = vadd.f32 %v4202, 1.0
    %v4219 = vadd.f32 %v4203, 1.0
    %v4220 = vadd.f32 %v4204, 1.0
    %v4221 = vadd.f32 %v4205, 1.0
    %v4222 = vadd.f32 %v4206, 1.0
    %v4223 = vmul.f32 %v4095, %v4207
    %v4224 = vmul.f32 %v4096, %v4208
    %v4225 = vmul.f32 %v4097, %v4209
    %v4226 = vmul.f32 %v4098, %v4210
    %v4227 = vmul.f32 %v4099, %v4211
    %v4228 = vmul.f32 %v4100, %v4212
    %v4229 = vmul.f32 %v4101, %v4213
    %v4230 = vmul.f32 %v4102, %v4214
    %v4231 = vmul.f32 %v4103, %v4215
    %v4232 = vmul.f32 %v4104, %v4216
    %v4233 = vmul.f32 %v4105, %v4217
    %v4234 = vmul.f32 %v4106, %v4218
    %v4235 = vmul.f32 %v4107, %v4219
    %v4236 = vmul.f32 %v4108, %v4220
    %v4237 = vmul.f32 %v4109, %v4221
    %v4238 = vmul.f32 %v4110, %v4222
    %v4239 = vpack.c.bf16 %v4231, %v4223
    %v4240 = vpack.c.bf16 %v4232, %v4224
    %v4241 = vpack.c.bf16 %v4233, %v4225
    %v4242 = vpack.c.bf16 %v4234, %v4226
    %v4243 = vpack.c.bf16 %v4235, %v4227
    %v4244 = vpack.c.bf16 %v4236, %v4228
    %v4245 = vpack.c.bf16 %v4237, %v4229
    %v4246 = vpack.c.bf16 %v4238, %v4230
    %v4247 = vld [vmem:[#allocation18] sm:$0xff]
    %v4248 = vld [vmem:[#allocation18 + $0x8] sm:$0xff]
    %v4249 = vld [vmem:[#allocation18 + $0x10] sm:$0xff]
    %v4250 = vld [vmem:[#allocation18 + $0x18] sm:$0xff]
    %v4251 = vld [vmem:[#allocation18 + $0x20] sm:$0xff]
    %v4252 = vld [vmem:[#allocation18 + $0x28] sm:$0xff]
    %v4253 = vld [vmem:[#allocation18 + $0x30] sm:$0xff]
    %v4254 = vld [vmem:[#allocation18 + $0x38] sm:$0xff]
    %v4255 = vld [vmem:[#allocation18 + $0x40] sm:$0xff]
    %v4256 = vld [vmem:[#allocation18 + $0x48] sm:$0xff]
    %v4257 = vld [vmem:[#allocation18 + $0x50] sm:$0xff]
    %v4258 = vld [vmem:[#allocation18 + $0x58] sm:$0xff]
    %v4259 = vld [vmem:[#allocation18 + $0x60] sm:$0xff]
    %v4260 = vld [vmem:[#allocation18 + $0x68] sm:$0xff]
    %v4261 = vld [vmem:[#allocation18 + $0x70] sm:$0xff]
    %v4262 = vld [vmem:[#allocation18 + $0x78] sm:$0xff]
    %v4263 = vld [vmem:[#allocation18 + $0x80] sm:$0xff]
    %v4264 = vld [vmem:[#allocation18 + $0x88] sm:$0xff]
    %v4265 = vld [vmem:[#allocation18 + $0x90] sm:$0xff]
    %v4266 = vld [vmem:[#allocation18 + $0x98] sm:$0xff]
    %v4267 = vld [vmem:[#allocation18 + $0xa0] sm:$0xff]
    %v4268 = vld [vmem:[#allocation18 + $0xa8] sm:$0xff]
    %v4269 = vld [vmem:[#allocation18 + $0xb0] sm:$0xff]
    %v4270 = vld [vmem:[#allocation18 + $0xb8] sm:$0xff]
    %v4271 = vld [vmem:[#allocation18 + $0xc0] sm:$0xff]
    %v4272 = vld [vmem:[#allocation18 + $0xc8] sm:$0xff]
    %v4273 = vld [vmem:[#allocation18 + $0xd0] sm:$0xff]
    %v4274 = vld [vmem:[#allocation18 + $0xd8] sm:$0xff]
    %v4275 = vld [vmem:[#allocation18 + $0xe0] sm:$0xff]
    %v4276 = vld [vmem:[#allocation18 + $0xe8] sm:$0xff]
    %v4277 = vld [vmem:[#allocation18 + $0xf0] sm:$0xff]
    %v4278 = vld [vmem:[#allocation18 + $0xf8] sm:$0xff]
    %v4279 = vld [vmem:[#allocation18 + $0x100] sm:$0xff]
    %v4280 = vld [vmem:[#allocation18 + $0x108] sm:$0xff]
    %v4281 = vld [vmem:[#allocation18 + $0x110] sm:$0xff]
    %v4282 = vld [vmem:[#allocation18 + $0x118] sm:$0xff]
    %v4283 = vld [vmem:[#allocation18 + $0x120] sm:$0xff]
    %v4284 = vld [vmem:[#allocation18 + $0x128] sm:$0xff]
    %v4285 = vld [vmem:[#allocation18 + $0x130] sm:$0xff]
    %v4286 = vld [vmem:[#allocation18 + $0x138] sm:$0xff]
    %v4287 = vld [vmem:[#allocation18 + $0x140] sm:$0xff]
    %v4288 = vld [vmem:[#allocation18 + $0x148] sm:$0xff]
    %v4289 = vld [vmem:[#allocation18 + $0x150] sm:$0xff]
    %v4290 = vld [vmem:[#allocation18 + $0x158] sm:$0xff]
    %v4291 = vld [vmem:[#allocation18 + $0x160] sm:$0xff]
    %v4292 = vld [vmem:[#allocation18 + $0x168] sm:$0xff]
    %v4293 = vld [vmem:[#allocation18 + $0x170] sm:$0xff]
    %v4294 = vld [vmem:[#allocation18 + $0x178] sm:$0xff]
    %v4295 = vld [vmem:[#allocation18 + $0x180] sm:$0xff]
    %v4296 = vld [vmem:[#allocation18 + $0x188] sm:$0xff]
    %v4297 = vld [vmem:[#allocation18 + $0x190] sm:$0xff]
    %v4298 = vld [vmem:[#allocation18 + $0x198] sm:$0xff]
    %v4299 = vld [vmem:[#allocation18 + $0x1a0] sm:$0xff]
    %v4300 = vld [vmem:[#allocation18 + $0x1a8] sm:$0xff]
    %v4301 = vld [vmem:[#allocation18 + $0x1b0] sm:$0xff]
    %v4302 = vld [vmem:[#allocation18 + $0x1b8] sm:$0xff]
    %v4303 = vld [vmem:[#allocation18 + $0x1c0] sm:$0xff]
    %v4304 = vld [vmem:[#allocation18 + $0x1c8] sm:$0xff]
    %v4305 = vld [vmem:[#allocation18 + $0x1d0] sm:$0xff]
    %v4306 = vld [vmem:[#allocation18 + $0x1d8] sm:$0xff]
    %v4307 = vld [vmem:[#allocation18 + $0x1e0] sm:$0xff]
    %v4308 = vld [vmem:[#allocation18 + $0x1e8] sm:$0xff]
    %v4309 = vld [vmem:[#allocation18 + $0x1f0] sm:$0xff]
    %v4310 = vld [vmem:[#allocation18 + $0x1f8] sm:$0xff]
    %v4311 = vld [vmem:[#allocation18 + $0x200] sm:$0xff]
    %v4312 = vld [vmem:[#allocation18 + $0x208] sm:$0xff]
    %v4313 = vld [vmem:[#allocation18 + $0x210] sm:$0xff]
    %v4314 = vld [vmem:[#allocation18 + $0x218] sm:$0xff]
    %v4315 = vld [vmem:[#allocation18 + $0x220] sm:$0xff]
    %v4316 = vld [vmem:[#allocation18 + $0x228] sm:$0xff]
    %v4317 = vld [vmem:[#allocation18 + $0x230] sm:$0xff]
    %v4318 = vld [vmem:[#allocation18 + $0x238] sm:$0xff]
    %v4319 = vld [vmem:[#allocation18 + $0x240] sm:$0xff]
    %v4320 = vld [vmem:[#allocation18 + $0x248] sm:$0xff]
    %v4321 = vld [vmem:[#allocation18 + $0x250] sm:$0xff]
    %v4322 = vld [vmem:[#allocation18 + $0x258] sm:$0xff]
    %v4323 = vld [vmem:[#allocation18 + $0x260] sm:$0xff]
    %v4324 = vld [vmem:[#allocation18 + $0x268] sm:$0xff]
    %v4325 = vld [vmem:[#allocation18 + $0x270] sm:$0xff]
    %v4326 = vld [vmem:[#allocation18 + $0x278] sm:$0xff]
    %v4327 = vld [vmem:[#allocation18 + $0x280] sm:$0xff]
    %v4328 = vld [vmem:[#allocation18 + $0x288] sm:$0xff]
    %v4329 = vld [vmem:[#allocation18 + $0x290] sm:$0xff]
    %v4330 = vld [vmem:[#allocation18 + $0x298] sm:$0xff]
    %v4331 = vld [vmem:[#allocation18 + $0x2a0] sm:$0xff]
    %v4332 = vld [vmem:[#allocation18 + $0x2a8] sm:$0xff]
    %v4333 = vld [vmem:[#allocation18 + $0x2b0] sm:$0xff]
    %v4334 = vld [vmem:[#allocation18 + $0x2b8] sm:$0xff]
    %v4335 = vld [vmem:[#allocation18 + $0x2c0] sm:$0xff]
    %v4336 = vld [vmem:[#allocation18 + $0x2c8] sm:$0xff]
    %v4337 = vld [vmem:[#allocation18 + $0x2d0] sm:$0xff]
    %v4338 = vld [vmem:[#allocation18 + $0x2d8] sm:$0xff]
    %v4339 = vld [vmem:[#allocation18 + $0x2e0] sm:$0xff]
    %v4340 = vld [vmem:[#allocation18 + $0x2e8] sm:$0xff]
    %v4341 = vld [vmem:[#allocation18 + $0x2f0] sm:$0xff]
    %v4342 = vld [vmem:[#allocation18 + $0x2f8] sm:$0xff]
    %v4343 = vld [vmem:[#allocation18 + $0x300] sm:$0xff]
    %v4344 = vld [vmem:[#allocation18 + $0x308] sm:$0xff]
    %v4345 = vld [vmem:[#allocation18 + $0x310] sm:$0xff]
    %v4346 = vld [vmem:[#allocation18 + $0x318] sm:$0xff]
    %v4347 = vld [vmem:[#allocation18 + $0x320] sm:$0xff]
    %v4348 = vld [vmem:[#allocation18 + $0x328] sm:$0xff]
    %v4349 = vld [vmem:[#allocation18 + $0x330] sm:$0xff]
    %v4350 = vld [vmem:[#allocation18 + $0x338] sm:$0xff]
    %v4351 = vld [vmem:[#allocation18 + $0x340] sm:$0xff]
    %v4352 = vld [vmem:[#allocation18 + $0x348] sm:$0xff]
    %v4353 = vld [vmem:[#allocation18 + $0x350] sm:$0xff]
    %v4354 = vld [vmem:[#allocation18 + $0x358] sm:$0xff]
    %v4355 = vld [vmem:[#allocation18 + $0x360] sm:$0xff]
    %v4356 = vld [vmem:[#allocation18 + $0x368] sm:$0xff]
    %v4357 = vld [vmem:[#allocation18 + $0x370] sm:$0xff]
    %v4358 = vld [vmem:[#allocation18 + $0x378] sm:$0xff]
    %v4359 = vld [vmem:[#allocation18 + $0x380] sm:$0xff]
    %v4360 = vld [vmem:[#allocation18 + $0x388] sm:$0xff]
    %v4361 = vld [vmem:[#allocation18 + $0x390] sm:$0xff]
    %v4362 = vld [vmem:[#allocation18 + $0x398] sm:$0xff]
    %v4363 = vld [vmem:[#allocation18 + $0x3a0] sm:$0xff]
    %v4364 = vld [vmem:[#allocation18 + $0x3a8] sm:$0xff]
    %v4365 = vld [vmem:[#allocation18 + $0x3b0] sm:$0xff]
    %v4366 = vld [vmem:[#allocation18 + $0x3b8] sm:$0xff]
    %v4367 = vld [vmem:[#allocation18 + $0x3c0] sm:$0xff]
    %v4368 = vld [vmem:[#allocation18 + $0x3c8] sm:$0xff]
    %v4369 = vld [vmem:[#allocation18 + $0x3d0] sm:$0xff]
    %v4370 = vld [vmem:[#allocation18 + $0x3d8] sm:$0xff]
    %v4371 = vld [vmem:[#allocation18 + $0x3e0] sm:$0xff]
    %v4372 = vld [vmem:[#allocation18 + $0x3e8] sm:$0xff]
    %v4373 = vld [vmem:[#allocation18 + $0x3f0] sm:$0xff]
    %v4374 = vld [vmem:[#allocation18 + $0x3f8] sm:$0xff]
    %v4375 = vld [vmem:[#allocation20] sm:$0x3]
    %v4377 = vlaneseq
    %v4378 = vshrl.u32 %v4377, 7
    %v4379 = vsub.s32 0, %v4378
    %v4380 = vrot.slane %v4375, %v4379
    %v4381 = vlaneseq
    %v4382 = vshrl.u32 %v4381, 7
    %v4383 = vsub.s32 1, %v4382
    %v4384 = vrot.slane %v4375, %v4383
    %v4515 = vunpack.c.l.b16 %v4247
    %v4516 = vunpack.c.h.b16 %v4247
    %v4517 = vunpack.c.l.b16 %v4248
    %v4518 = vunpack.c.h.b16 %v4248
    %v4519 = vunpack.c.l.b16 %v4249
    %v4520 = vunpack.c.h.b16 %v4249
    %v4521 = vunpack.c.l.b16 %v4250
    %v4522 = vunpack.c.h.b16 %v4250
    %v4523 = vunpack.c.l.b16 %v4251
    %v4524 = vunpack.c.h.b16 %v4251
    %v4525 = vunpack.c.l.b16 %v4252
    %v4526 = vunpack.c.h.b16 %v4252
    %v4527 = vunpack.c.l.b16 %v4253
    %v4528 = vunpack.c.h.b16 %v4253
    %v4529 = vunpack.c.l.b16 %v4254
    %v4530 = vunpack.c.h.b16 %v4254
    %v4531 = vunpack.c.l.b16 %v4255
    %v4532 = vunpack.c.h.b16 %v4255
    %v4533 = vunpack.c.l.b16 %v4256
    %v4534 = vunpack.c.h.b16 %v4256
    %v4535 = vunpack.c.l.b16 %v4257
    %v4536 = vunpack.c.h.b16 %v4257
    %v4537 = vunpack.c.l.b16 %v4258
    %v4538 = vunpack.c.h.b16 %v4258
    %v4539 = vunpack.c.l.b16 %v4259
    %v4540 = vunpack.c.h.b16 %v4259
    %v4541 = vunpack.c.l.b16 %v4260
    %v4542 = vunpack.c.h.b16 %v4260
    %v4543 = vunpack.c.l.b16 %v4261
    %v4544 = vunpack.c.h.b16 %v4261
    %v4545 = vunpack.c.l.b16 %v4262
    %v4546 = vunpack.c.h.b16 %v4262
    %v4547 = vunpack.c.l.b16 %v4263
    %v4548 = vunpack.c.h.b16 %v4263
    %v4549 = vunpack.c.l.b16 %v4264
    %v4550 = vunpack.c.h.b16 %v4264
    %v4551 = vunpack.c.l.b16 %v4265
    %v4552 = vunpack.c.h.b16 %v4265
    %v4553 = vunpack.c.l.b16 %v4266
    %v4554 = vunpack.c.h.b16 %v4266
    %v4555 = vunpack.c.l.b16 %v4267
    %v4556 = vunpack.c.h.b16 %v4267
    %v4557 = vunpack.c.l.b16 %v4268
    %v4558 = vunpack.c.h.b16 %v4268
    %v4559 = vunpack.c.l.b16 %v4269
    %v4560 = vunpack.c.h.b16 %v4269
    %v4561 = vunpack.c.l.b16 %v4270
    %v4562 = vunpack.c.h.b16 %v4270
    %v4563 = vunpack.c.l.b16 %v4271
    %v4564 = vunpack.c.h.b16 %v4271
    %v4565 = vunpack.c.l.b16 %v4272
    %v4566 = vunpack.c.h.b16 %v4272
    %v4567 = vunpack.c.l.b16 %v4273
    %v4568 = vunpack.c.h.b16 %v4273
    %v4569 = vunpack.c.l.b16 %v4274
    %v4570 = vunpack.c.h.b16 %v4274
    %v4571 = vunpack.c.l.b16 %v4275
    %v4572 = vunpack.c.h.b16 %v4275
    %v4573 = vunpack.c.l.b16 %v4276
    %v4574 = vunpack.c.h.b16 %v4276
    %v4575 = vunpack.c.l.b16 %v4277
    %v4576 = vunpack.c.h.b16 %v4277
    %v4577 = vunpack.c.l.b16 %v4278
    %v4578 = vunpack.c.h.b16 %v4278
    %v4579 = vunpack.c.l.b16 %v4279
    %v4580 = vunpack.c.h.b16 %v4279
    %v4581 = vunpack.c.l.b16 %v4280
    %v4582 = vunpack.c.h.b16 %v4280
    %v4583 = vunpack.c.l.b16 %v4281
    %v4584 = vunpack.c.h.b16 %v4281
    %v4585 = vunpack.c.l.b16 %v4282
    %v4586 = vunpack.c.h.b16 %v4282
    %v4587 = vunpack.c.l.b16 %v4283
    %v4588 = vunpack.c.h.b16 %v4283
    %v4589 = vunpack.c.l.b16 %v4284
    %v4590 = vunpack.c.h.b16 %v4284
    %v4591 = vunpack.c.l.b16 %v4285
    %v4592 = vunpack.c.h.b16 %v4285
    %v4593 = vunpack.c.l.b16 %v4286
    %v4594 = vunpack.c.h.b16 %v4286
    %v4595 = vunpack.c.l.b16 %v4287
    %v4596 = vunpack.c.h.b16 %v4287
    %v4597 = vunpack.c.l.b16 %v4288
    %v4598 = vunpack.c.h.b16 %v4288
    %v4599 = vunpack.c.l.b16 %v4289
    %v4600 = vunpack.c.h.b16 %v4289
    %v4601 = vunpack.c.l.b16 %v4290
    %v4602 = vunpack.c.h.b16 %v4290
    %v4603 = vunpack.c.l.b16 %v4291
    %v4604 = vunpack.c.h.b16 %v4291
    %v4605 = vunpack.c.l.b16 %v4292
    %v4606 = vunpack.c.h.b16 %v4292
    %v4607 = vunpack.c.l.b16 %v4293
    %v4608 = vunpack.c.h.b16 %v4293
    %v4609 = vunpack.c.l.b16 %v4294
    %v4610 = vunpack.c.h.b16 %v4294
    %v4611 = vunpack.c.l.b16 %v4295
    %v4612 = vunpack.c.h.b16 %v4295
    %v4613 = vunpack.c.l.b16 %v4296
    %v4614 = vunpack.c.h.b16 %v4296
    %v4615 = vunpack.c.l.b16 %v4297
    %v4616 = vunpack.c.h.b16 %v4297
    %v4617 = vunpack.c.l.b16 %v4298
    %v4618 = vunpack.c.h.b16 %v4298
    %v4619 = vunpack.c.l.b16 %v4299
    %v4620 = vunpack.c.h.b16 %v4299
    %v4621 = vunpack.c.l.b16 %v4300
    %v4622 = vunpack.c.h.b16 %v4300
    %v4623 = vunpack.c.l.b16 %v4301
    %v4624 = vunpack.c.h.b16 %v4301
    %v4625 = vunpack.c.l.b16 %v4302
    %v4626 = vunpack.c.h.b16 %v4302
    %v4627 = vunpack.c.l.b16 %v4303
    %v4628 = vunpack.c.h.b16 %v4303
    %v4629 = vunpack.c.l.b16 %v4304
    %v4630 = vunpack.c.h.b16 %v4304
    %v4631 = vunpack.c.l.b16 %v4305
    %v4632 = vunpack.c.h.b16 %v4305
    %v4633 = vunpack.c.l.b16 %v4306
    %v4634 = vunpack.c.h.b16 %v4306
    %v4635 = vunpack.c.l.b16 %v4307
    %v4636 = vunpack.c.h.b16 %v4307
    %v4637 = vunpack.c.l.b16 %v4308
    %v4638 = vunpack.c.h.b16 %v4308
    %v4639 = vunpack.c.l.b16 %v4309
    %v4640 = vunpack.c.h.b16 %v4309
    %v4641 = vunpack.c.l.b16 %v4310
    %v4642 = vunpack.c.h.b16 %v4310
    %v4643 = vunpack.c.l.b16 %v4311
    %v4644 = vunpack.c.h.b16 %v4311
    %v4645 = vunpack.c.l.b16 %v4312
    %v4646 = vunpack.c.h.b16 %v4312
    %v4647 = vunpack.c.l.b16 %v4313
    %v4648 = vunpack.c.h.b16 %v4313
    %v4649 = vunpack.c.l.b16 %v4314
    %v4650 = vunpack.c.h.b16 %v4314
    %v4651 = vunpack.c.l.b16 %v4315
    %v4652 = vunpack.c.h.b16 %v4315
    %v4653 = vunpack.c.l.b16 %v4316
    %v4654 = vunpack.c.h.b16 %v4316
    %v4655 = vunpack.c.l.b16 %v4317
    %v4656 = vunpack.c.h.b16 %v4317
    %v4657 = vunpack.c.l.b16 %v4318
    %v4658 = vunpack.c.h.b16 %v4318
    %v4659 = vunpack.c.l.b16 %v4319
    %v4660 = vunpack.c.h.b16 %v4319
    %v4661 = vunpack.c.l.b16 %v4320
    %v4662 = vunpack.c.h.b16 %v4320
    %v4663 = vunpack.c.l.b16 %v4321
    %v4664 = vunpack.c.h.b16 %v4321
    %v4665 = vunpack.c.l.b16 %v4322
    %v4666 = vunpack.c.h.b16 %v4322
    %v4667 = vunpack.c.l.b16 %v4323
    %v4668 = vunpack.c.h.b16 %v4323
    %v4669 = vunpack.c.l.b16 %v4324
    %v4670 = vunpack.c.h.b16 %v4324
    %v4671 = vunpack.c.l.b16 %v4325
    %v4672 = vunpack.c.h.b16 %v4325
    %v4673 = vunpack.c.l.b16 %v4326
    %v4674 = vunpack.c.h.b16 %v4326
    %v4675 = vunpack.c.l.b16 %v4327
    %v4676 = vunpack.c.h.b16 %v4327
    %v4677 = vunpack.c.l.b16 %v4328
    %v4678 = vunpack.c.h.b16 %v4328
    %v4679 = vunpack.c.l.b16 %v4329
    %v4680 = vunpack.c.h.b16 %v4329
    %v4681 = vunpack.c.l.b16 %v4330
    %v4682 = vunpack.c.h.b16 %v4330
    %v4683 = vunpack.c.l.b16 %v4331
    %v4684 = vunpack.c.h.b16 %v4331
    %v4685 = vunpack.c.l.b16 %v4332
    %v4686 = vunpack.c.h.b16 %v4332
    %v4687 = vunpack.c.l.b16 %v4333
    %v4688 = vunpack.c.h.b16 %v4333
    %v4689 = vunpack.c.l.b16 %v4334
    %v4690 = vunpack.c.h.b16 %v4334
    %v4691 = vunpack.c.l.b16 %v4335
    %v4692 = vunpack.c.h.b16 %v4335
    %v4693 = vunpack.c.l.b16 %v4336
    %v4694 = vunpack.c.h.b16 %v4336
    %v4695 = vunpack.c.l.b16 %v4337
    %v4696 = vunpack.c.h.b16 %v4337
    %v4697 = vunpack.c.l.b16 %v4338
    %v4698 = vunpack.c.h.b16 %v4338
    %v4699 = vunpack.c.l.b16 %v4339
    %v4700 = vunpack.c.h.b16 %v4339
    %v4701 = vunpack.c.l.b16 %v4340
    %v4702 = vunpack.c.h.b16 %v4340
    %v4703 = vunpack.c.l.b16 %v4341
    %v4704 = vunpack.c.h.b16 %v4341
    %v4705 = vunpack.c.l.b16 %v4342
    %v4706 = vunpack.c.h.b16 %v4342
    %v4707 = vunpack.c.l.b16 %v4343
    %v4708 = vunpack.c.h.b16 %v4343
    %v4709 = vunpack.c.l.b16 %v4344
    %v4710 = vunpack.c.h.b16 %v4344
    %v4711 = vunpack.c.l.b16 %v4345
    %v4712 = vunpack.c.h.b16 %v4345
    %v4713 = vunpack.c.l.b16 %v4346
    %v4714 = vunpack.c.h.b16 %v4346
    %v4715 = vunpack.c.l.b16 %v4347
    %v4716 = vunpack.c.h.b16 %v4347
    %v4717 = vunpack.c.l.b16 %v4348
    %v4718 = vunpack.c.h.b16 %v4348
    %v4719 = vunpack.c.l.b16 %v4349
    %v4720 = vunpack.c.h.b16 %v4349
    %v4721 = vunpack.c.l.b16 %v4350
    %v4722 = vunpack.c.h.b16 %v4350
    %v4723 = vunpack.c.l.b16 %v4351
    %v4724 = vunpack.c.h.b16 %v4351
    %v4725 = vunpack.c.l.b16 %v4352
    %v4726 = vunpack.c.h.b16 %v4352
    %v4727 = vunpack.c.l.b16 %v4353
    %v4728 = vunpack.c.h.b16 %v4353
    %v4729 = vunpack.c.l.b16 %v4354
    %v4730 = vunpack.c.h.b16 %v4354
    %v4731 = vunpack.c.l.b16 %v4355
    %v4732 = vunpack.c.h.b16 %v4355
    %v4733 = vunpack.c.l.b16 %v4356
    %v4734 = vunpack.c.h.b16 %v4356
    %v4735 = vunpack.c.l.b16 %v4357
    %v4736 = vunpack.c.h.b16 %v4357
    %v4737 = vunpack.c.l.b16 %v4358
    %v4738 = vunpack.c.h.b16 %v4358
    %v4739 = vunpack.c.l.b16 %v4359
    %v4740 = vunpack.c.h.b16 %v4359
    %v4741 = vunpack.c.l.b16 %v4360
    %v4742 = vunpack.c.h.b16 %v4360
    %v4743 = vunpack.c.l.b16 %v4361
    %v4744 = vunpack.c.h.b16 %v4361
    %v4745 = vunpack.c.l.b16 %v4362
    %v4746 = vunpack.c.h.b16 %v4362
    %v4747 = vunpack.c.l.b16 %v4363
    %v4748 = vunpack.c.h.b16 %v4363
    %v4749 = vunpack.c.l.b16 %v4364
    %v4750 = vunpack.c.h.b16 %v4364
    %v4751 = vunpack.c.l.b16 %v4365
    %v4752 = vunpack.c.h.b16 %v4365
    %v4753 = vunpack.c.l.b16 %v4366
    %v4754 = vunpack.c.h.b16 %v4366
    %v4755 = vunpack.c.l.b16 %v4367
    %v4756 = vunpack.c.h.b16 %v4367
    %v4757 = vunpack.c.l.b16 %v4368
    %v4758 = vunpack.c.h.b16 %v4368
    %v4759 = vunpack.c.l.b16 %v4369
    %v4760 = vunpack.c.h.b16 %v4369
    %v4761 = vunpack.c.l.b16 %v4370
    %v4762 = vunpack.c.h.b16 %v4370
    %v4763 = vunpack.c.l.b16 %v4371
    %v4764 = vunpack.c.h.b16 %v4371
    %v4765 = vunpack.c.l.b16 %v4372
    %v4766 = vunpack.c.h.b16 %v4372
    %v4767 = vunpack.c.l.b16 %v4373
    %v4768 = vunpack.c.h.b16 %v4373
    %v4769 = vunpack.c.l.b16 %v4374
    %v4770 = vunpack.c.h.b16 %v4374
    %v4771 = vpack.c.b16 %v4517, %v4515
    %v4772 = vpack.c.b16 %v4518, %v4516
    %v4773 = vpack.c.b16 %v4521, %v4519
    %v4774 = vpack.c.b16 %v4522, %v4520
    %v4775 = vpack.c.b16 %v4525, %v4523
    %v4776 = vpack.c.b16 %v4526, %v4524
    %v4777 = vpack.c.b16 %v4529, %v4527
    %v4778 = vpack.c.b16 %v4530, %v4528
    %v4779 = vpack.c.b16 %v4533, %v4531
    %v4780 = vpack.c.b16 %v4534, %v4532
    %v4781 = vpack.c.b16 %v4537, %v4535
    %v4782 = vpack.c.b16 %v4538, %v4536
    %v4783 = vpack.c.b16 %v4541, %v4539
    %v4784 = vpack.c.b16 %v4542, %v4540
    %v4785 = vpack.c.b16 %v4545, %v4543
    %v4786 = vpack.c.b16 %v4546, %v4544
    %v4787 = vpack.c.b16 %v4549, %v4547
    %v4788 = vpack.c.b16 %v4550, %v4548
    %v4789 = vpack.c.b16 %v4553, %v4551
    %v4790 = vpack.c.b16 %v4554, %v4552
    %v4791 = vpack.c.b16 %v4557, %v4555
    %v4792 = vpack.c.b16 %v4558, %v4556
    %v4793 = vpack.c.b16 %v4561, %v4559
    %v4794 = vpack.c.b16 %v4562, %v4560
    %v4795 = vpack.c.b16 %v4565, %v4563
    %v4796 = vpack.c.b16 %v4566, %v4564
    %v4797 = vpack.c.b16 %v4569, %v4567
    %v4798 = vpack.c.b16 %v4570, %v4568
    %v4799 = vpack.c.b16 %v4573, %v4571
    %v4800 = vpack.c.b16 %v4574, %v4572
    %v4801 = vpack.c.b16 %v4577, %v4575
    %v4802 = vpack.c.b16 %v4578, %v4576
    %v4803 = vpack.c.b16 %v4581, %v4579
    %v4804 = vpack.c.b16 %v4582, %v4580
    %v4805 = vpack.c.b16 %v4585, %v4583
    %v4806 = vpack.c.b16 %v4586, %v4584
    %v4807 = vpack.c.b16 %v4589, %v4587
    %v4808 = vpack.c.b16 %v4590, %v4588
    %v4809 = vpack.c.b16 %v4593, %v4591
    %v4810 = vpack.c.b16 %v4594, %v4592
    %v4811 = vpack.c.b16 %v4597, %v4595
    %v4812 = vpack.c.b16 %v4598, %v4596
    %v4813 = vpack.c.b16 %v4601, %v4599
    %v4814 = vpack.c.b16 %v4602, %v4600
    %v4815 = vpack.c.b16 %v4605, %v4603
    %v4816 = vpack.c.b16 %v4606, %v4604
    %v4817 = vpack.c.b16 %v4609, %v4607
    %v4818 = vpack.c.b16 %v4610, %v4608
    %v4819 = vpack.c.b16 %v4613, %v4611
    %v4820 = vpack.c.b16 %v4614, %v4612
    %v4821 = vpack.c.b16 %v4617, %v4615
    %v4822 = vpack.c.b16 %v4618, %v4616
    %v4823 = vpack.c.b16 %v4621, %v4619
    %v4824 = vpack.c.b16 %v4622, %v4620
    %v4825 = vpack.c.b16 %v4625, %v4623
    %v4826 = vpack.c.b16 %v4626, %v4624
    %v4827 = vpack.c.b16 %v4629, %v4627
    %v4828 = vpack.c.b16 %v4630, %v4628
    %v4829 = vpack.c.b16 %v4633, %v4631
    %v4830 = vpack.c.b16 %v4634, %v4632
    %v4831 = vpack.c.b16 %v4637, %v4635
    %v4832 = vpack.c.b16 %v4638, %v4636
    %v4833 = vpack.c.b16 %v4641, %v4639
    %v4834 = vpack.c.b16 %v4642, %v4640
    %v4835 = vpack.c.b16 %v4645, %v4643
    %v4836 = vpack.c.b16 %v4646, %v4644
    %v4837 = vpack.c.b16 %v4649, %v4647
    %v4838 = vpack.c.b16 %v4650, %v4648
    %v4839 = vpack.c.b16 %v4653, %v4651
    %v4840 = vpack.c.b16 %v4654, %v4652
    %v4841 = vpack.c.b16 %v4657, %v4655
    %v4842 = vpack.c.b16 %v4658, %v4656
    %v4843 = vpack.c.b16 %v4661, %v4659
    %v4844 = vpack.c.b16 %v4662, %v4660
    %v4845 = vpack.c.b16 %v4665, %v4663
    %v4846 = vpack.c.b16 %v4666, %v4664
    %v4847 = vpack.c.b16 %v4669, %v4667
    %v4848 = vpack.c.b16 %v4670, %v4668
    %v4849 = vpack.c.b16 %v4673, %v4671
    %v4850 = vpack.c.b16 %v4674, %v4672
    %v4851 = vpack.c.b16 %v4677, %v4675
    %v4852 = vpack.c.b16 %v4678, %v4676
    %v4853 = vpack.c.b16 %v4681, %v4679
    %v4854 = vpack.c.b16 %v4682, %v4680
    %v4855 = vpack.c.b16 %v4685, %v4683
    %v4856 = vpack.c.b16 %v4686, %v4684
    %v4857 = vpack.c.b16 %v4689, %v4687
    %v4858 = vpack.c.b16 %v4690, %v4688
    %v4859 = vpack.c.b16 %v4693, %v4691
    %v4860 = vpack.c.b16 %v4694, %v4692
    %v4861 = vpack.c.b16 %v4697, %v4695
    %v4862 = vpack.c.b16 %v4698, %v4696
    %v4863 = vpack.c.b16 %v4701, %v4699
    %v4864 = vpack.c.b16 %v4702, %v4700
    %v4865 = vpack.c.b16 %v4705, %v4703
    %v4866 = vpack.c.b16 %v4706, %v4704
    %v4867 = vpack.c.b16 %v4709, %v4707
    %v4868 = vpack.c.b16 %v4710, %v4708
    %v4869 = vpack.c.b16 %v4713, %v4711
    %v4870 = vpack.c.b16 %v4714, %v4712
    %v4871 = vpack.c.b16 %v4717, %v4715
    %v4872 = vpack.c.b16 %v4718, %v4716
    %v4873 = vpack.c.b16 %v4721, %v4719
    %v4874 = vpack.c.b16 %v4722, %v4720
    %v4875 = vpack.c.b16 %v4725, %v4723
    %v4876 = vpack.c.b16 %v4726, %v4724
    %v4877 = vpack.c.b16 %v4729, %v4727
    %v4878 = vpack.c.b16 %v4730, %v4728
    %v4879 = vpack.c.b16 %v4733, %v4731
    %v4880 = vpack.c.b16 %v4734, %v4732
    %v4881 = vpack.c.b16 %v4737, %v4735
    %v4882 = vpack.c.b16 %v4738, %v4736
    %v4883 = vpack.c.b16 %v4741, %v4739
    %v4884 = vpack.c.b16 %v4742, %v4740
    %v4885 = vpack.c.b16 %v4745, %v4743
    %v4886 = vpack.c.b16 %v4746, %v4744
    %v4887 = vpack.c.b16 %v4749, %v4747
    %v4888 = vpack.c.b16 %v4750, %v4748
    %v4889 = vpack.c.b16 %v4753, %v4751
    %v4890 = vpack.c.b16 %v4754, %v4752
    %v4891 = vpack.c.b16 %v4757, %v4755
    %v4892 = vpack.c.b16 %v4758, %v4756
    %v4893 = vpack.c.b16 %v4761, %v4759
    %v4894 = vpack.c.b16 %v4762, %v4760
    %v4895 = vpack.c.b16 %v4765, %v4763
    %v4896 = vpack.c.b16 %v4766, %v4764
    %v4897 = vpack.c.b16 %v4769, %v4767
    %v4898 = vpack.c.b16 %v4770, %v4768
    %5027 = vmatprep.subr.bf16.mxu0 %v4772
    %5028 = vmatpush1.bf16.msra.mxu0 %v4771
    %5029 = vmatprep.subr.bf16.mxu0 %v4774
    %5030 = vmatpush1.bf16.msra.mxu0 %v4773
    %5031 = vmatprep.subr.bf16.mxu0 %v4776
    %5032 = vmatpush1.bf16.msra.mxu0 %v4775
    %5033 = vmatprep.subr.bf16.mxu0 %v4778
    %5034 = vmatpush1.bf16.msra.mxu0 %v4777
    %5035 = vmatprep.subr.bf16.mxu0 %v4780
    %5036 = vmatpush1.bf16.msra.mxu0 %v4779
    %5037 = vmatprep.subr.bf16.mxu0 %v4782
    %5038 = vmatpush1.bf16.msra.mxu0 %v4781
    %5039 = vmatprep.subr.bf16.mxu0 %v4784
    %5040 = vmatpush1.bf16.msra.mxu0 %v4783
    %5041 = vmatprep.subr.bf16.mxu0 %v4786
    %5042 = vmatpush1.bf16.msra.mxu0 %v4785
    %5043 = vmatprep.subr.bf16.mxu0 %v4788
    %5044 = vmatpush1.bf16.msra.mxu0 %v4787
    %5045 = vmatprep.subr.bf16.mxu0 %v4790
    %5046 = vmatpush1.bf16.msra.mxu0 %v4789
    %5047 = vmatprep.subr.bf16.mxu0 %v4792
    %5048 = vmatpush1.bf16.msra.mxu0 %v4791
    %5049 = vmatprep.subr.bf16.mxu0 %v4794
    %5050 = vmatpush1.bf16.msra.mxu0 %v4793
    %5051 = vmatprep.subr.bf16.mxu0 %v4796
    %5052 = vmatpush1.bf16.msra.mxu0 %v4795
    %5053 = vmatprep.subr.bf16.mxu0 %v4798
    %5054 = vmatpush1.bf16.msra.mxu0 %v4797
    %5055 = vmatprep.subr.bf16.mxu0 %v4800
    %5056 = vmatpush1.bf16.msra.mxu0 %v4799
    %5057 = vmatprep.subr.bf16.mxu0 %v4802
    %5058 = vmatpush1.bf16.msra.mxu0 %v4801
    %5059 = vmatprep.mubr.bf16.mxu0 %v4240
    %5060 = vmatmul.mubr.bf16.gmra.mrb[0].mxu0 %v4239
    %v5061 = vpop.f32.mrb[0].mxu0
    %v5062 = vadd.f32 %v4380, %v5061
    %v5063 = vpop.f32.mrb[0].mxu0
    %v5064 = vadd.f32 %v4384, %v5063
    %v5065 = vpop.f32.mrb[0].mxu0
    %v5066 = vadd.f32 %v4380, %v5065
    %v5067 = vpop.f32.mrb[0].mxu0
    %v5068 = vadd.f32 %v4384, %v5067
    %5069 = vdwg.mxu0
    %5070 = vmatprep.subr.bf16.mxu0 %v4804
    %5071 = vmatpush1.bf16.msra.mxu0 %v4803
    %5072 = vmatprep.subr.bf16.mxu0 %v4806
    %5073 = vmatpush1.bf16.msra.mxu0 %v4805
    %5074 = vmatprep.subr.bf16.mxu0 %v4808
    %5075 = vmatpush1.bf16.msra.mxu0 %v4807
    %5076 = vmatprep.subr.bf16.mxu0 %v4810
    %5077 = vmatpush1.bf16.msra.mxu0 %v4809
    %5078 = vmatprep.subr.bf16.mxu0 %v4812
    %5079 = vmatpush1.bf16.msra.mxu0 %v4811
    %5080 = vmatprep.subr.bf16.mxu0 %v4814
    %5081 = vmatpush1.bf16.msra.mxu0 %v4813
    %5082 = vmatprep.subr.bf16.mxu0 %v4816
    %5083 = vmatpush1.bf16.msra.mxu0 %v4815
    %5084 = vmatprep.subr.bf16.mxu0 %v4818
    %5085 = vmatpush1.bf16.msra.mxu0 %v4817
    %5086 = vmatprep.subr.bf16.mxu0 %v4820
    %5087 = vmatpush1.bf16.msra.mxu0 %v4819
    %5088 = vmatprep.subr.bf16.mxu0 %v4822
    %5089 = vmatpush1.bf16.msra.mxu0 %v4821
    %5090 = vmatprep.subr.bf16.mxu0 %v4824
    %5091 = vmatpush1.bf16.msra.mxu0 %v4823
    %5092 = vmatprep.subr.bf16.mxu0 %v4826
    %5093 = vmatpush1.bf16.msra.mxu0 %v4825
    %5094 = vmatprep.subr.bf16.mxu0 %v4828
    %5095 = vmatpush1.bf16.msra.mxu0 %v4827
    %5096 = vmatprep.subr.bf16.mxu0 %v4830
    %5097 = vmatpush1.bf16.msra.mxu0 %v4829
    %5098 = vmatprep.subr.bf16.mxu0 %v4832
    %5099 = vmatpush1.bf16.msra.mxu0 %v4831
    %5100 = vmatprep.subr.bf16.mxu0 %v4834
    %5101 = vmatpush1.bf16.msra.mxu0 %v4833
    %5102 = vmatprep.mubr.bf16.mxu0 %v4242
    %5103 = vmatmul.mubr.bf16.gmra.mrb[0].mxu0 %v4241
    %v5104 = vpop.f32.mrb[0].mxu0
    %v5105 = vadd.f32 %v5062, %v5104
    %v5106 = vpop.f32.mrb[0].mxu0
    %v5107 = vadd.f32 %v5064, %v5106
    %v5108 = vpop.f32.mrb[0].mxu0
    %v5109 = vadd.f32 %v5066, %v5108
    %v5110 = vpop.f32.mrb[0].mxu0
    %v5111 = vadd.f32 %v5068, %v5110
    %5112 = vdwg.mxu0
    %5113 = vmatprep.subr.bf16.mxu0 %v4836
    %5114 = vmatpush1.bf16.msra.mxu0 %v4835
    %5115 = vmatprep.subr.bf16.mxu0 %v4838
    %5116 = vmatpush1.bf16.msra.mxu0 %v4837
    %5117 = vmatprep.subr.bf16.mxu0 %v4840
    %5118 = vmatpush1.bf16.msra.mxu0 %v4839
    %5119 = vmatprep.subr.bf16.mxu0 %v4842
    %5120 = vmatpush1.bf16.msra.mxu0 %v4841
    %5121 = vmatprep.subr.bf16.mxu0 %v4844
    %5122 = vmatpush1.bf16.msra.mxu0 %v4843
    %5123 = vmatprep.subr.bf16.mxu0 %v4846
    %5124 = vmatpush1.bf16.msra.mxu0 %v4845
    %5125 = vmatprep.subr.bf16.mxu0 %v4848
    %5126 = vmatpush1.bf16.msra.mxu0 %v4847
    %5127 = vmatprep.subr.bf16.mxu0 %v4850
    %5128 = vmatpush1.bf16.msra.mxu0 %v4849
    %5129 = vmatprep.subr.bf16.mxu0 %v4852
    %5130 = vmatpush1.bf16.msra.mxu0 %v4851
    %5131 = vmatprep.subr.bf16.mxu0 %v4854
    %5132 = vmatpush1.bf16.msra.mxu0 %v4853
    %5133 = vmatprep.subr.bf16.mxu0 %v4856
    %5134 = vmatpush1.bf16.msra.mxu0 %v4855
    %5135 = vmatprep.subr.bf16.mxu0 %v4858
    %5136 = vmatpush1.bf16.msra.mxu0 %v4857
    %5137 = vmatprep.subr.bf16.mxu0 %v4860
    %5138 = vmatpush1.bf16.msra.mxu0 %v4859
    %5139 = vmatprep.subr.bf16.mxu0 %v4862
    %5140 = vmatpush1.bf16.msra.mxu0 %v4861
    %5141 = vmatprep.subr.bf16.mxu0 %v4864
    %5142 = vmatpush1.bf16.msra.mxu0 %v4863
    %5143 = vmatprep.subr.bf16.mxu0 %v4866
    %5144 = vmatpush1.bf16.msra.mxu0 %v4865
    %5145 = vmatprep.mubr.bf16.mxu0 %v4244
    %5146 = vmatmul.mubr.bf16.gmra.mrb[0].mxu0 %v4243
    %v5147 = vpop.f32.mrb[0].mxu0
    %v5148 = vadd.f32 %v5105, %v5147
    %v5149 = vpop.f32.mrb[0].mxu0
    %v5150 = vadd.f32 %v5107, %v5149
    %v5151 = vpop.f32.mrb[0].mxu0
    %v5152 = vadd.f32 %v5109, %v5151
    %v5153 = vpop.f32.mrb[0].mxu0
    %v5154 = vadd.f32 %v5111, %v5153
    %5155 = vdwg.mxu0
    %5156 = vmatprep.subr.bf16.mxu0 %v4868
    %5157 = vmatpush1.bf16.msra.mxu0 %v4867
    %5158 = vmatprep.subr.bf16.mxu0 %v4870
    %5159 = vmatpush1.bf16.msra.mxu0 %v4869
    %5160 = vmatprep.subr.bf16.mxu0 %v4872
    %5161 = vmatpush1.bf16.msra.mxu0 %v4871
    %5162 = vmatprep.subr.bf16.mxu0 %v4874
    %5163 = vmatpush1.bf16.msra.mxu0 %v4873
    %5164 = vmatprep.subr.bf16.mxu0 %v4876
    %5165 = vmatpush1.bf16.msra.mxu0 %v4875
    %5166 = vmatprep.subr.bf16.mxu0 %v4878
    %5167 = vmatpush1.bf16.msra.mxu0 %v4877
    %5168 = vmatprep.subr.bf16.mxu0 %v4880
    %5169 = vmatpush1.bf16.msra.mxu0 %v4879
    %5170 = vmatprep.subr.bf16.mxu0 %v4882
    %5171 = vmatpush1.bf16.msra.mxu0 %v4881
    %5172 = vmatprep.subr.bf16.mxu0 %v4884
    %5173 = vmatpush1.bf16.msra.mxu0 %v4883
    %5174 = vmatprep.subr.bf16.mxu0 %v4886
    %5175 = vmatpush1.bf16.msra.mxu0 %v4885
    %5176 = vmatprep.subr.bf16.mxu0 %v4888
    %5177 = vmatpush1.bf16.msra.mxu0 %v4887
    %5178 = vmatprep.subr.bf16.mxu0 %v4890
    %5179 = vmatpush1.bf16.msra.mxu0 %v4889
    %5180 = vmatprep.subr.bf16.mxu0 %v4892
    %5181 = vmatpush1.bf16.msra.mxu0 %v4891
    %5182 = vmatprep.subr.bf16.mxu0 %v4894
    %5183 = vmatpush1.bf16.msra.mxu0 %v4893
    %5184 = vmatprep.subr.bf16.mxu0 %v4896
    %5185 = vmatpush1.bf16.msra.mxu0 %v4895
    %5186 = vmatprep.subr.bf16.mxu0 %v4898
    %5187 = vmatpush1.bf16.msra.mxu0 %v4897
    %5188 = vmatprep.mubr.bf16.mxu0 %v4246
    %5189 = vmatmul.mubr.bf16.gmra.mrb[0].mxu0 %v4245
    %v5190 = vpop.f32.mrb[0].mxu0
    %v5191 = vadd.f32 %v5148, %v5190
    %v5192 = vpop.f32.mrb[0].mxu0
    %v5193 = vadd.f32 %v5150, %v5192
    %v5194 = vpop.f32.mrb[0].mxu0
    %v5195 = vadd.f32 %v5152, %v5194
    %v5196 = vpop.f32.mrb[0].mxu0
    %v5197 = vadd.f32 %v5154, %v5196
    %5198 = vdwg.mxu0
    %v5199 = vadd.f32 %v5191, %v3107
    %v5200 = vadd.f32 %v5193, %v3108
    %v5201 = vadd.f32 %v5195, %v3109
    %v5202 = vadd.f32 %v5197, %v3110
    %v5203 = vld [vmem:[#allocation21] sm:$0x3]
    %v5204 = vld [vmem:[#allocation23] sm:$0x3]
    %v5205 = vadd.f32 %v5199, %v5200
    %5206 = vadd.xlane.f32.xlu0 %v5205
    %v5207 = vpop.xlane.xlu0 %5206
    %v5208 = vadd.f32 %v5201, %v5202
    %5209 = vadd.xlane.f32.xlu0 %v5208
    %v5210 = vpop.xlane.xlu0 %5209
    %v5211 = vmul.f32 %v5207, %v3054
    %v5212 = vmul.f32 %v5210, %v3054
    %v5213 = vsub.f32 %v5199, %v5211
    %v5214 = vsub.f32 %v5200, %v5211
    %v5215 = vsub.f32 %v5201, %v5212
    %v5216 = vsub.f32 %v5202, %v5212
    %v5217 = vmul.f32 %v5213, %v5213
    %v5218 = vmul.f32 %v5214, %v5214
    %v5219 = vmul.f32 %v5215, %v5215
    %v5220 = vmul.f32 %v5216, %v5216
    %v5221 = vadd.f32 %v5217, %v5218
    %5222 = vadd.xlane.f32.xlu0 %v5221
    %v5223 = vpop.xlane.xlu0 %5222
    %v5224 = vadd.f32 %v5219, %v5220
    %5225 = vadd.xlane.f32.xlu0 %v5224
    %v5226 = vpop.xlane.xlu0 %5225
    %v5227 = vmul.f32 %v5223, %v3054
    %v5228 = vmul.f32 %v5226, %v3054
    %v5229 = vadd.f32 %v5227, 1e-05
    %v5230 = vadd.f32 %v5228, 1e-05
    %v5231 = vrsqrt.pop %v5229
    %v5232 = vrsqrt.pop %v5230
    %v5233 = vmul.f32 %v5213, %v5231
    %v5234 = vmul.f32 %v5214, %v5231
    %v5235 = vmul.f32 %v5215, %v5232
    %v5236 = vmul.f32 %v5216, %v5232
    %v5238 = vlaneseq
    %v5239 = vshrl.u32 %v5238, 7
    %v5240 = vsub.s32 0, %v5239
    %v5241 = vrot.slane %v5203, %v5240
    %v5242 = vlaneseq
    %v5243 = vshrl.u32 %v5242, 7
    %v5244 = vsub.s32 1, %v5243
    %v5245 = vrot.slane %v5203, %v5244
    %v5248 = vmul.f32 %v5233, %v5241
    %v5249 = vmul.f32 %v5234, %v5245
    %v5250 = vmul.f32 %v5235, %v5241
    %v5251 = vmul.f32 %v5236, %v5245
    %v5253 = vlaneseq
    %v5254 = vshrl.u32 %v5253, 7
    %v5255 = vsub.s32 0, %v5254
    %v5256 = vrot.slane %v5204, %v5255
    %v5257 = vlaneseq
    %v5258 = vshrl.u32 %v5257, 7
    %v5259 = vsub.s32 1, %v5258
    %v5260 = vrot.slane %v5204, %v5259
    %v5263 = vadd.f32 %v5248, %v5256
    %v5264 = vadd.f32 %v5249, %v5260
    %v5265 = vadd.f32 %v5250, %v5256
    %v5266 = vadd.f32 %v5251, %v5260
    %5267 = vst [vmem:[#allocation24] sm:$0xff] %v5263
    %5268 = vst [vmem:[#allocation24 + $0x8] sm:$0xff] %v5264
    %5269 = vst [vmem:[#allocation24 + $0x10] sm:$0xff] %v5265
    %5270 = vst [vmem:[#allocation24 + $0x18] sm:$0xff] %v5266
    // Predicated region
    $region106: #{tpu_custom_call.1} parent=1 // pred_check
      _
    $region107: #{tpu_custom_call.1} parent=1 // pred_check_branch
      %5272 = sbr.rel (0) target = $region109
    $region108: #{tpu_custom_call.1} parent=1 // pred_region
      %s5274 = ssub.s32 512, 512
      %5275 = vsyncadd [#allocation5], %s5274
      %s5276 = sshll.u32 [#allocation24], 4
      %s5277 = int_to_ptr.vmem [resolvable:$true] %s5276
      %5282 = dma.vmem_to_hbm [thread:$0]  %s5277, 512, %s13, [#allocation5], 256, 256, 16
    $region109: #{tpu_custom_call.1} parent=1 // pred_fallthru
      _
    // Predicated region
    $region110: #{tpu_custom_call.1} parent=1 // pred_check
      _
    $region111: #{tpu_custom_call.1} parent=1 // pred_check_branch
      %5284 = sbr.rel (0) target = $region113
    $region112: #{tpu_custom_call.1} parent=1 // pred_region
      %5285 = dma.done [#allocation5], 512
    $region113: #{tpu_custom_call.1} parent=1 // pred_fallthru
      _
    %5286 = vsyncpa [#allocation4], 1
    %5287 = vsyncpa [#allocation7], 1
    %5288 = vsyncpa [#allocation10], 1
    %5289 = vsyncpa [#allocation13], 1
    %5290 = vsyncpa [#allocation16], 1
    %5291 = vsyncpa [#allocation19], 1
    %5292 = vsyncpa [#allocation22], 1
    %5293 = vsyncpa [#allocation5], 1

</llo_original>
